<compile_context>
chip_gen: v5e
topology: v5e:2x2
jax: 0.10.0
libtpu: 0.0.40
codegen_flags: <defaults>
</compile_context>

<pallas_src>
import functools
import math

import jax
import jax.numpy as jnp
from jax import lax
from jax.experimental import pallas as pl
from jax.experimental.pallas import tpu as pltpu

EPS = 1e-5
K = 3  # kernel size (padding='same')


# --------------------------------------------------------------------------- #
# Kernel helpers
# --------------------------------------------------------------------------- #
def _zero_halo(pad_ref, B, H, W, C):
    """Zero only the 1-pixel halo of the (B, H+2, W+2, C) padded scratch."""
    Hp, Wp = H + 2, W + 2
    pad_ref[:, 0:1, :, :] = jnp.zeros((B, 1, Wp, C), jnp.float32)
    pad_ref[:, H + 1:Hp, :, :] = jnp.zeros((B, 1, Wp, C), jnp.float32)
    pad_ref[:, :, 0:1, :] = jnp.zeros((B, Hp, 1, C), jnp.float32)
    pad_ref[:, :, W + 1:Wp, :] = jnp.zeros((B, Hp, 1, C), jnp.float32)


def _conv3x3(pad_ref, w_ref, B, H, W, C):
    """3x3 'same' conv as 9 accumulating MXU dots (no im2col temp)."""
    HW = H * W
    acc = jnp.zeros((B * HW, C), jnp.float32)
    for kh in range(K):
        for kw in range(K):
            patch = pad_ref[:, kh:kh + H, kw:kw + W, :].reshape(B * HW, C)
            acc = acc + jnp.dot(patch, w_ref[kh * K + kw],
                                preferred_element_type=jnp.float32)
    return acc


# --------------------------------------------------------------------------- #
# Kernels
# --------------------------------------------------------------------------- #
def _conv_stats_kernel(x_ref, w_ref, y_ref, stats_ref, pad_ref, *, H, W, C, B):
    """conv1 (zero-pad in VMEM) + per-block BN1 partial stats (no bias: BN cancels it)."""
    _zero_halo(pad_ref, B, H, W, C)
    pad_ref[:, 1:1 + H, 1:1 + W, :] = x_ref[...]
    y = _conv3x3(pad_ref, w_ref, B, H, W, C)              # (B*HW, C)
    y_ref[...] = y.reshape(B, H * W, C)
    stats_ref[0, 0:1, :] = jnp.sum(y, axis=0, keepdims=True)
    stats_ref[0, 1:2, :] = jnp.sum(y * y, axis=0, keepdims=True)


def _bn_relu_conv_stats_kernel(y1_ref, sc_ref, sh_ref, w_ref,
                               y2_ref, stats_ref, pad_ref, *, H, W, C, B):
    """folded BN1 -> ReLU -> conv2 + per-block BN2 partial stats."""
    HW = H * W
    h = jnp.maximum(y1_ref[...] * sc_ref[...] + sh_ref[...], 0.0)   # (B, HW, C)
    _zero_halo(pad_ref, B, H, W, C)
    pad_ref[:, 1:1 + H, 1:1 + W, :] = h.reshape(B, H, W, C)
    y = _conv3x3(pad_ref, w_ref, B, H, W, C)
    y2_ref[...] = y.reshape(B, HW, C)
    stats_ref[0, 0:1, :] = jnp.sum(y, axis=0, keepdims=True)
    stats_ref[0, 1:2, :] = jnp.sum(y * y, axis=0, keepdims=True)


def _bn_residual_relu_kernel(y2_ref, x_ref, sc_ref, sh_ref, out_ref):
    """folded BN2 + residual add + ReLU (works for lane-dense and fallback layouts)."""
    out_ref[...] = jnp.maximum(
        y2_ref[...] * sc_ref[...] + sh_ref[...] + x_ref[...], 0.0)


# --------------------------------------------------------------------------- #
# Wrapper helpers
# --------------------------------------------------------------------------- #
def _fold_bn(stats, gamma, beta, count):
    """stats: (G, 2, C) per-block [sum, sumsq].  Returns folded (scale, shift)."""
    s = jnp.sum(stats[:, 0, :], axis=0)
    ss = jnp.sum(stats[:, 1, :], axis=0)
    mean = s / count
    var = ss / count - mean * mean          # biased variance (training mode)
    scale = gamma * lax.rsqrt(var + EPS)
    shift = beta - mean * scale
    return scale, shift


def _vmem_limit_bytes():
    """Generation-keyed VMEM budget (v5e/v6e have 128 MiB, v7x only 64 MiB)."""
    try:
        kind = jax.devices()[0].device_kind.lower()
    except Exception:
        kind = ""
    if "v5" in kind or "v6" in kind:
        return 64 * 1024 * 1024
    return 32 * 1024 * 1024                 # v7x / unknown: conservative


def _pick_batch_block(N, per_sample_bytes, budget_bytes):
    """Largest Bblk dividing N within budget, keeping >=2 grid steps when N>=2."""
    best = 1
    for b in range(1, N + 1):
        if N % b:
            continue
        if b * per_sample_bytes > budget_bytes:
            continue
        if N >= 2 and N // b < 2:           # keep >=2 parallel steps (v7x megacore)
            continue
        best = b
    return best


def _pick_row_block(total_rows, p_rows, max_rows=2048):
    """Row-block size: multiple of lcm(p_rows, 8), divides total_rows, >=2 steps."""
    base = (p_rows * 8) // math.gcd(p_rows, 8)
    best = None
    r = base
    while r <= min(total_rows, max_rows):
        if total_rows % r == 0 and total_rows // r >= 2:
            best = r
        r += base
    return best if best is not None else total_rows


# --------------------------------------------------------------------------- #
# Wrapper
# --------------------------------------------------------------------------- #
@jax.jit
def residual_block_nchw(x_nchw, params):
    """x_nchw: (N, C, H, W) float32. Returns (N, C, H, W)."""
    w1, b1, g1, be1, w2, b2, g2, be2 = params
    del b1, b2   # conv biases cancel exactly under training-mode BatchNorm
    N, C, H, W = x_nchw.shape
    HW = H * W
    pad = K // 2
    Hp, Wp = H + 2 * pad, W + 2 * pad

    # TODO(synk): NHWC entry point would remove these two full-tensor transposes.
    x = jnp.transpose(x_nchw, (0, 2, 3, 1))                 # NHWC

    # HWIO (3,3,C,C) -> (9, Cin, Cout): one (C,C) weight per tap.
    w1f = w1.reshape(K * K, C, C)
    w2f = w2.reshape(K * K, C, C)

    vmem_limit = _vmem_limit_bytes()
    cparams = pltpu.CompilerParams(
        dimension_semantics=("parallel",),
        vmem_limit_bytes=vmem_limit)

    # per-sample VMEM estimate (pad scratch + double-buffered in/out + conv acc)
    per_sample = 4 * C * (Hp * Wp + 6 * HW)
    Bblk = _pick_batch_block(N, per_sample, budget_bytes=vmem_limit // 4)
    G = N // Bblk

    x_spec = pl.BlockSpec((Bblk, H, W, C), lambda n: (n, 0, 0, 0))
    y_spec = pl.BlockSpec((Bblk, HW, C), lambda n: (n, 0, 0))
    stats_spec = pl.BlockSpec((1, 2, C), lambda n: (n, 0, 0))
    w_spec = pl.BlockSpec((K * K, C, C), lambda n: (0, 0, 0))
    vec_spec = pl.BlockSpec((1, C), lambda n: (0, 0))

    y_shape = jax.ShapeDtypeStruct((N, HW, C), jnp.float32)
    stats_shape = jax.ShapeDtypeStruct((G, 2, C), jnp.float32)
    pad_scratch = pltpu.VMEM((Bblk, Hp, Wp, C), jnp.float32)

    # ---- pass 1: conv1 (in-VMEM zero padding) + partial BN1 stats ----------
    y1, st1 = pl.pallas_call(
        functools.partial(_conv_stats_kernel, H=H, W=W, C=C, B=Bblk),
        grid=(G,),
        in_specs=[x_spec, w_spec],
        out_specs=[y_spec, stats_spec],
        out_shape=[y_shape, stats_shape],
        scratch_shapes=[pad_scratch],
        compiler_params=cparams,
    )(x, w1f)
    sc1, sh1 = _fold_bn(st1, g1, be1, N * HW)

    # ---- pass 2: folded BN1 -> ReLU -> conv2 + partial BN2 stats -----------
    y2, st2 = pl.pallas_call(
        functools.partial(_bn_relu_conv_stats_kernel, H=H, W=W, C=C, B=Bblk),
        grid=(G,),
        in_specs=[y_spec, vec_spec, vec_spec, w_spec],
        out_specs=[y_spec, stats_spec],
        out_shape=[y_shape, stats_shape],
        scratch_shapes=[pad_scratch],
        compiler_params=cparams,
    )(y1, sc1.reshape(1, C), sh1.reshape(1, C), w2f)
    sc2, sh2 = _fold_bn(st2, g2, be2, N * HW)

    # ---- pass 3: folded BN2 + residual + ReLU (lane-dense when possible) ---
    flat = N * HW * C
    period = (C * 128) // math.gcd(C, 128)                  # lcm(C, 128)
    if flat % 128 == 0 and flat % period == 0:
        total_rows = flat // 128
        p_rows = period // 128
        Rblk = _pick_row_block(total_rows, p_rows)
        # One block-sized channel-periodic scale/shift pattern (<= ~1 MB),
        # instead of materialising jnp.tile(sc, HW) full tensors in HBM.
        ch = jnp.arange(Rblk * 128, dtype=jnp.int32) % C
        sc_t = sc2[ch].reshape(Rblk, 128)
        sh_t = sh2[ch].reshape(Rblk, 128)
        data_spec = pl.BlockSpec((Rblk, 128), lambda r: (r, 0))
        bcast_spec = pl.BlockSpec((Rblk, 128), lambda r: (0, 0))
        out_flat = pl.pallas_call(
            _bn_residual_relu_kernel,
            grid=(total_rows // Rblk,),
            in_specs=[data_spec, data_spec, bcast_spec, bcast_spec],
            out_specs=data_spec,
            out_shape=jax.ShapeDtypeStruct((total_rows, 128), jnp.float32),
            compiler_params=cparams,
        )(y2.reshape(total_rows, 128), x.reshape(total_rows, 128), sc_t, sh_t)
        out = out_flat.reshape(N, H, W, C)
    else:
        data_spec = pl.BlockSpec((Bblk, HW, C), lambda n: (n, 0, 0))
        bcast_spec = pl.BlockSpec((1, 1, C), lambda n: (0, 0, 0))
        out_flat = pl.pallas_call(
            _bn_residual_relu_kernel,
            grid=(G,),
            in_specs=[data_spec, data_spec, bcast_spec, bcast_spec],
            out_specs=data_spec,
            out_shape=jax.ShapeDtypeStruct((N, HW, C), jnp.float32),
            compiler_params=cparams,
        )(y2, x.reshape(N, HW, C), sc2.reshape(1, 1, C), sh2.reshape(1, 1, C))
        out = out_flat.reshape(N, H, W, C)

    return jnp.transpose(out, (0, 3, 1, 2))                 # back to NCHW


# --------------------------------------------------------------------------- #
# Reference & test harness
# --------------------------------------------------------------------------- #
def _reference_nchw(x_nchw, params):
    """Pure-JAX reference matching PyTorch training-mode forward (with conv biases)."""
    w1, b1, g1, be1, w2, b2, g2, be2 = params
    x = jnp.transpose(x_nchw, (0, 2, 3, 1))

    def conv(h, w, b):
        y = lax.conv_general_dilated(
            h, w, window_strides=(1, 1), padding='SAME',
            dimension_numbers=('NHWC', 'HWIO', 'NHWC'))
        return y + b[None, None, None, :]

    def bn(h, g, be):
        m = jnp.mean(h, axis=(0, 1, 2), keepdims=True)
        v = jnp.mean((h - m) ** 2, axis=(0, 1, 2), keepdims=True)
        return (h - m) * lax.rsqrt(v + EPS) * g + be

    h = jnp.maximum(bn(conv(x, w1, b1), g1, be1), 0.0)
    h = bn(conv(h, w2, b2), g2, be2)
    out = jnp.maximum(h + x, 0.0)
    return jnp.transpose(out, (0, 3, 1, 2))


def init_params(key, channels, ksize=K):
    ks = jax.random.split(key, 8)
    fan_in = channels * ksize * ksize
    scale = 1.0 / jnp.sqrt(fan_in)
    w1 = jax.random.uniform(ks[0], (ksize, ksize, channels, channels),
                            jnp.float32, -scale, scale)       # HWIO
    b1 = jax.random.uniform(ks[1], (channels,), jnp.float32, -scale, scale)
    g1 = 1.0 + 0.1 * jax.random.normal(ks[2], (channels,), jnp.float32)
    be1 = 0.1 * jax.random.normal(ks[3], (channels,), jnp.float32)
    w2 = jax.random.uniform(ks[4], (ksize, ksize, channels, channels),
                            jnp.float32, -scale, scale)
    b2 = jax.random.uniform(ks[5], (channels,), jnp.float32, -scale, scale)
    g2 = 1.0 + 0.1 * jax.random.normal(ks[6], (channels,), jnp.float32)
    be2 = 0.1 * jax.random.normal(ks[7], (channels,), jnp.float32)
    return (w1, b1, g1, be1, w2, b2, g2, be2)


if __name__ == "__main__":
    key = jax.random.PRNGKey(0)
    k_x, k_p = jax.random.split(key)

    N, C, H, W = 2, 4, 16, 16
    x = jax.random.normal(k_x, (N, C, H, W), jnp.float32)
    params = init_params(k_p, C)

    out = residual_block_nchw(x, params)
    out = jax.block_until_ready(out)

    ref = _reference_nchw(x, params)
    assert out.shape == (N, C, H, W)
    assert jnp.allclose(out, ref, atol=2e-4, rtol=2e-4), "mismatch vs JAX reference"

    print("KERNEL_OK")
</pallas_src>

<mosaic_0001>
module attributes {stable_mosaic.version = 11 : i64} {
  func.func @_conv_stats_kernel(%arg0: i32, %arg1: memref<1x16x16x4xf32, #tpu.memory_space<vmem>>, %arg2: memref<9x4x4xf32, #tpu.memory_space<vmem>>, %arg3: memref<1x256x4xf32, #tpu.memory_space<vmem>>, %arg4: memref<1x2x4xf32, #tpu.memory_space<vmem>>, %arg5: memref<1x18x18x4xf32, #tpu.memory_space<vmem>>) attributes {dimension_semantics = [#tpu.dimension_semantics<parallel>], iteration_bounds = array<i64: 2>, scalar_prefetch = 0 : i64, scratch_operands = 1 : i64, tpu.core_type = #tpu.core_type<tc>, window_params = [{transform_indices = @transform_0, window_bounds = array<i64: 1, 16, 16, 4>}, {pipeline_mode = #tpu.pipeline_mode<synchronous>, transform_indices = @transform_1, window_bounds = array<i64: 9, 4, 4>}, {transform_indices = @transform_2, window_bounds = array<i64: 1, 256, 4>}, {transform_indices = @transform_3, window_bounds = array<i64: 1, 2, 4>}]} {
    %cst = arith.constant 0.000000e+00 : f32
    %0 = vector.broadcast %cst : f32 to vector<1x1x18x4xf32>
    %c0 = arith.constant 0 : index
    %c0_0 = arith.constant 0 : index
    %c0_1 = arith.constant 0 : index
    %c0_2 = arith.constant 0 : index
    %1 = vector.load %arg5[%c0, %c0_0, %c0_1, %c0_2] : memref<1x18x18x4xf32, #tpu.memory_space<vmem>>, vector<1x1x18x4xf32>
    tpu.vector_store %arg5[%c0, %c0_0, %c0_1, %c0_2], %0 {strides = array<i32>} : memref<1x18x18x4xf32, #tpu.memory_space<vmem>>, vector<1x1x18x4xf32>,
    %cst_3 = arith.constant 0.000000e+00 : f32
    %2 = vector.broadcast %cst_3 : f32 to vector<1x1x18x4xf32>
    %c0_4 = arith.constant 0 : index
    %c17 = arith.constant 17 : index
    %c0_5 = arith.constant 0 : index
    %c0_6 = arith.constant 0 : index
    %3 = vector.load %arg5[%c0_4, %c17, %c0_5, %c0_6] : memref<1x18x18x4xf32, #tpu.memory_space<vmem>>, vector<1x1x18x4xf32>
    tpu.vector_store %arg5[%c0_4, %c17, %c0_5, %c0_6], %2 {strides = array<i32>} : memref<1x18x18x4xf32, #tpu.memory_space<vmem>>, vector<1x1x18x4xf32>,
    %cst_7 = arith.constant 0.000000e+00 : f32
    %4 = vector.broadcast %cst_7 : f32 to vector<1x18x1x4xf32>
    %c0_8 = arith.constant 0 : index
    %c0_9 = arith.constant 0 : index
    %c0_10 = arith.constant 0 : index
    %c0_11 = arith.constant 0 : index
    %5 = vector.load %arg5[%c0_8, %c0_9, %c0_10, %c0_11] : memref<1x18x18x4xf32, #tpu.memory_space<vmem>>, vector<1x18x1x4xf32>
    tpu.vector_store %arg5[%c0_8, %c0_9, %c0_10, %c0_11], %4 {strides = array<i32>} : memref<1x18x18x4xf32, #tpu.memory_space<vmem>>, vector<1x18x1x4xf32>,
    %cst_12 = arith.constant 0.000000e+00 : f32
    %6 = vector.broadcast %cst_12 : f32 to vector<1x18x1x4xf32>
    %c0_13 = arith.constant 0 : index
    %c0_14 = arith.constant 0 : index
    %c17_15 = arith.constant 17 : index
    %c0_16 = arith.constant 0 : index
    %7 = vector.load %arg5[%c0_13, %c0_14, %c17_15, %c0_16] : memref<1x18x18x4xf32, #tpu.memory_space<vmem>>, vector<1x18x1x4xf32>
    tpu.vector_store %arg5[%c0_13, %c0_14, %c17_15, %c0_16], %6 {strides = array<i32>} : memref<1x18x18x4xf32, #tpu.memory_space<vmem>>, vector<1x18x1x4xf32>,
    %c0_17 = arith.constant 0 : index
    %c0_18 = arith.constant 0 : index
    %c0_19 = arith.constant 0 : index
    %c0_20 = arith.constant 0 : index
    %8 = vector.load %arg1[%c0_17, %c0_18, %c0_19, %c0_20] : memref<1x16x16x4xf32, #tpu.memory_space<vmem>>, vector<1x16x16x4xf32>
    %c0_21 = arith.constant 0 : index
    %c1 = arith.constant 1 : index
    %c1_22 = arith.constant 1 : index
    %c0_23 = arith.constant 0 : index
    %9 = vector.load %arg5[%c0_21, %c1, %c1_22, %c0_23] : memref<1x18x18x4xf32, #tpu.memory_space<vmem>>, vector<1x16x16x4xf32>
    tpu.vector_store %arg5[%c0_21, %c1, %c1_22, %c0_23], %8 {strides = array<i32>} : memref<1x18x18x4xf32, #tpu.memory_space<vmem>>, vector<1x16x16x4xf32>,
    %cst_24 = arith.constant 0.000000e+00 : f32
    %10 = vector.broadcast %cst_24 : f32 to vector<256x4xf32>
    %c0_25 = arith.constant 0 : index
    %c0_26 = arith.constant 0 : index
    %c0_27 = arith.constant 0 : index
    %c0_28 = arith.constant 0 : index
    %11 = vector.load %arg5[%c0_25, %c0_26, %c0_27, %c0_28] : memref<1x18x18x4xf32, #tpu.memory_space<vmem>>, vector<1x16x16x4xf32>
    %12 = vector.shape_cast %11 : vector<1x16x16x4xf32> to vector<256x4xf32>
    %c0_29 = arith.constant 0 : index
    %c0_30 = arith.constant 0 : index
    %c0_31 = arith.constant 0 : index
    %13 = vector.load %arg2[%c0_29, %c0_30, %c0_31] : memref<9x4x4xf32, #tpu.memory_space<vmem>>, vector<1x4x4xf32>
    %14 = vector.shape_cast %13 : vector<1x4x4xf32> to vector<4x4xf32>
    %cst_32 = arith.constant dense<0.000000e+00> : vector<256x4xf32>
    %15 = tpu.matmul %12, %14, %cst_32 {dimension_numbers = #tpu.dot_dimension_numbers<[1], [0], [0], [1], [0, 0, 1, 1], [], []>} : vector<256x4xf32>, vector<4x4xf32>, vector<256x4xf32> -> vector<256x4xf32>
    %16 = arith.addf %10, %15 : vector<256x4xf32>
    %c0_33 = arith.constant 0 : index
    %c0_34 = arith.constant 0 : index
    %c1_35 = arith.constant 1 : index
    %c0_36 = arith.constant 0 : index
    %17 = vector.load %arg5[%c0_33, %c0_34, %c1_35, %c0_36] : memref<1x18x18x4xf32, #tpu.memory_space<vmem>>, vector<1x16x16x4xf32>
    %18 = vector.shape_cast %17 : vector<1x16x16x4xf32> to vector<256x4xf32>
    %c1_37 = arith.constant 1 : index
    %c0_38 = arith.constant 0 : index
    %c0_39 = arith.constant 0 : index
    %19 = vector.load %arg2[%c1_37, %c0_38, %c0_39] : memref<9x4x4xf32, #tpu.memory_space<vmem>>, vector<1x4x4xf32>
    %20 = vector.shape_cast %19 : vector<1x4x4xf32> to vector<4x4xf32>
    %cst_40 = arith.constant dense<0.000000e+00> : vector<256x4xf32>
    %21 = tpu.matmul %18, %20, %cst_40 {dimension_numbers = #tpu.dot_dimension_numbers<[1], [0], [0], [1], [0, 0, 1, 1], [], []>} : vector<256x4xf32>, vector<4x4xf32>, vector<256x4xf32> -> vector<256x4xf32>
    %22 = arith.addf %16, %21 : vector<256x4xf32>
    %c0_41 = arith.constant 0 : index
    %c0_42 = arith.constant 0 : index
    %c2 = arith.constant 2 : index
    %c0_43 = arith.constant 0 : index
    %23 = vector.load %arg5[%c0_41, %c0_42, %c2, %c0_43] : memref<1x18x18x4xf32, #tpu.memory_space<vmem>>, vector<1x16x16x4xf32>
    %24 = vector.shape_cast %23 : vector<1x16x16x4xf32> to vector<256x4xf32>
    %c2_44 = arith.constant 2 : index
    %c0_45 = arith.constant 0 : index
    %c0_46 = arith.constant 0 : index
    %25 = vector.load %arg2[%c2_44, %c0_45, %c0_46] : memref<9x4x4xf32, #tpu.memory_space<vmem>>, vector<1x4x4xf32>
    %26 = vector.shape_cast %25 : vector<1x4x4xf32> to vector<4x4xf32>
    %cst_47 = arith.constant dense<0.000000e+00> : vector<256x4xf32>
    %27 = tpu.matmul %24, %26, %cst_47 {dimension_numbers = #tpu.dot_dimension_numbers<[1], [0], [0], [1], [0, 0, 1, 1], [], []>} : vector<256x4xf32>, vector<4x4xf32>, vector<256x4xf32> -> vector<256x4xf32>
    %28 = arith.addf %22, %27 : vector<256x4xf32>
    %c0_48 = arith.constant 0 : index
    %c1_49 = arith.constant 1 : index
    %c0_50 = arith.constant 0 : index
    %c0_51 = arith.constant 0 : index
    %29 = vector.load %arg5[%c0_48, %c1_49, %c0_50, %c0_51] : memref<1x18x18x4xf32, #tpu.memory_space<vmem>>, vector<1x16x16x4xf32>
    %30 = vector.shape_cast %29 : vector<1x16x16x4xf32> to vector<256x4xf32>
    %c3 = arith.constant 3 : index
    %c0_52 = arith.constant 0 : index
    %c0_53 = arith.constant 0 : index
    %31 = vector.load %arg2[%c3, %c0_52, %c0_53] : memref<9x4x4xf32, #tpu.memory_space<vmem>>, vector<1x4x4xf32>
    %32 = vector.shape_cast %31 : vector<1x4x4xf32> to vector<4x4xf32>
    %cst_54 = arith.constant dense<0.000000e+00> : vector<256x4xf32>
    %33 = tpu.matmul %30, %32, %cst_54 {dimension_numbers = #tpu.dot_dimension_numbers<[1], [0], [0], [1], [0, 0, 1, 1], [], []>} : vector<256x4xf32>, vector<4x4xf32>, vector<256x4xf32> -> vector<256x4xf32>
    %34 = arith.addf %28, %33 : vector<256x4xf32>
    %c0_55 = arith.constant 0 : index
    %c1_56 = arith.constant 1 : index
    %c1_57 = arith.constant 1 : index
    %c0_58 = arith.constant 0 : index
    %35 = vector.load %arg5[%c0_55, %c1_56, %c1_57, %c0_58] : memref<1x18x18x4xf32, #tpu.memory_space<vmem>>, vector<1x16x16x4xf32>
    %36 = vector.shape_cast %35 : vector<1x16x16x4xf32> to vector<256x4xf32>
    %c4 = arith.constant 4 : index
    %c0_59 = arith.constant 0 : index
    %c0_60 = arith.constant 0 : index
    %37 = vector.load %arg2[%c4, %c0_59, %c0_60] : memref<9x4x4xf32, #tpu.memory_space<vmem>>, vector<1x4x4xf32>
    %38 = vector.shape_cast %37 : vector<1x4x4xf32> to vector<4x4xf32>
    %cst_61 = arith.constant dense<0.000000e+00> : vector<256x4xf32>
    %39 = tpu.matmul %36, %38, %cst_61 {dimension_numbers = #tpu.dot_dimension_numbers<[1], [0], [0], [1], [0, 0, 1, 1], [], []>} : vector<256x4xf32>, vector<4x4xf32>, vector<256x4xf32> -> vector<256x4xf32>
    %40 = arith.addf %34, %39 : vector<256x4xf32>
    %c0_62 = arith.constant 0 : index
    %c1_63 = arith.constant 1 : index
    %c2_64 = arith.constant 2 : index
    %c0_65 = arith.constant 0 : index
    %41 = vector.load %arg5[%c0_62, %c1_63, %c2_64, %c0_65] : memref<1x18x18x4xf32, #tpu.memory_space<vmem>>, vector<1x16x16x4xf32>
    %42 = vector.shape_cast %41 : vector<1x16x16x4xf32> to vector<256x4xf32>
    %c5 = arith.constant 5 : index
    %c0_66 = arith.constant 0 : index
    %c0_67 = arith.constant 0 : index
    %43 = vector.load %arg2[%c5, %c0_66, %c0_67] : memref<9x4x4xf32, #tpu.memory_space<vmem>>, vector<1x4x4xf32>
    %44 = vector.shape_cast %43 : vector<1x4x4xf32> to vector<4x4xf32>
    %cst_68 = arith.constant dense<0.000000e+00> : vector<256x4xf32>
    %45 = tpu.matmul %42, %44, %cst_68 {dimension_numbers = #tpu.dot_dimension_numbers<[1], [0], [0], [1], [0, 0, 1, 1], [], []>} : vector<256x4xf32>, vector<4x4xf32>, vector<256x4xf32> -> vector<256x4xf32>
    %46 = arith.addf %40, %45 : vector<256x4xf32>
    %c0_69 = arith.constant 0 : index
    %c2_70 = arith.constant 2 : index
    %c0_71 = arith.constant 0 : index
    %c0_72 = arith.constant 0 : index
    %47 = vector.load %arg5[%c0_69, %c2_70, %c0_71, %c0_72] : memref<1x18x18x4xf32, #tpu.memory_space<vmem>>, vector<1x16x16x4xf32>
    %48 = vector.shape_cast %47 : vector<1x16x16x4xf32> to vector<256x4xf32>
    %c6 = arith.constant 6 : index
    %c0_73 = arith.constant 0 : index
    %c0_74 = arith.constant 0 : index
    %49 = vector.load %arg2[%c6, %c0_73, %c0_74] : memref<9x4x4xf32, #tpu.memory_space<vmem>>, vector<1x4x4xf32>
    %50 = vector.shape_cast %49 : vector<1x4x4xf32> to vector<4x4xf32>
    %cst_75 = arith.constant dense<0.000000e+00> : vector<256x4xf32>
    %51 = tpu.matmul %48, %50, %cst_75 {dimension_numbers = #tpu.dot_dimension_numbers<[1], [0], [0], [1], [0, 0, 1, 1], [], []>} : vector<256x4xf32>, vector<4x4xf32>, vector<256x4xf32> -> vector<256x4xf32>
    %52 = arith.addf %46, %51 : vector<256x4xf32>
    %c0_76 = arith.constant 0 : index
    %c2_77 = arith.constant 2 : index
    %c1_78 = arith.constant 1 : index
    %c0_79 = arith.constant 0 : index
    %53 = vector.load %arg5[%c0_76, %c2_77, %c1_78, %c0_79] : memref<1x18x18x4xf32, #tpu.memory_space<vmem>>, vector<1x16x16x4xf32>
    %54 = vector.shape_cast %53 : vector<1x16x16x4xf32> to vector<256x4xf32>
    %c7 = arith.constant 7 : index
    %c0_80 = arith.constant 0 : index
    %c0_81 = arith.constant 0 : index
    %55 = vector.load %arg2[%c7, %c0_80, %c0_81] : memref<9x4x4xf32, #tpu.memory_space<vmem>>, vector<1x4x4xf32>
    %56 = vector.shape_cast %55 : vector<1x4x4xf32> to vector<4x4xf32>
    %cst_82 = arith.constant dense<0.000000e+00> : vector<256x4xf32>
    %57 = tpu.matmul %54, %56, %cst_82 {dimension_numbers = #tpu.dot_dimension_numbers<[1], [0], [0], [1], [0, 0, 1, 1], [], []>} : vector<256x4xf32>, vector<4x4xf32>, vector<256x4xf32> -> vector<256x4xf32>
    %58 = arith.addf %52, %57 : vector<256x4xf32>
    %c0_83 = arith.constant 0 : index
    %c2_84 = arith.constant 2 : index
    %c2_85 = arith.constant 2 : index
    %c0_86 = arith.constant 0 : index
    %59 = vector.load %arg5[%c0_83, %c2_84, %c2_85, %c0_86] : memref<1x18x18x4xf32, #tpu.memory_space<vmem>>, vector<1x16x16x4xf32>
    %60 = vector.shape_cast %59 : vector<1x16x16x4xf32> to vector<256x4xf32>
    %c8 = arith.constant 8 : index
    %c0_87 = arith.constant 0 : index
    %c0_88 = arith.constant 0 : index
    %61 = vector.load %arg2[%c8, %c0_87, %c0_88] : memref<9x4x4xf32, #tpu.memory_space<vmem>>, vector<1x4x4xf32>
    %62 = vector.shape_cast %61 : vector<1x4x4xf32> to vector<4x4xf32>
    %cst_89 = arith.constant dense<0.000000e+00> : vector<256x4xf32>
    %63 = tpu.matmul %60, %62, %cst_89 {dimension_numbers = #tpu.dot_dimension_numbers<[1], [0], [0], [1], [0, 0, 1, 1], [], []>} : vector<256x4xf32>, vector<4x4xf32>, vector<256x4xf32> -> vector<256x4xf32>
    %64 = arith.addf %58, %63 : vector<256x4xf32>
    %65 = vector.shape_cast %64 : vector<256x4xf32> to vector<1x256x4xf32>
    %c0_90 = arith.constant 0 : index
    %c0_91 = arith.constant 0 : index
    %c0_92 = arith.constant 0 : index
    %66 = vector.load %arg3[%c0_90, %c0_91, %c0_92] : memref<1x256x4xf32, #tpu.memory_space<vmem>>, vector<1x256x4xf32>
    tpu.vector_store %arg3[%c0_90, %c0_91, %c0_92], %65 {strides = array<i32>} : memref<1x256x4xf32, #tpu.memory_space<vmem>>, vector<1x256x4xf32>,
    %cst_93 = arith.constant dense<0.000000e+00> : vector<4xf32>
    %67 = vector.multi_reduction <add>, %64, %cst_93 [0] : vector<256x4xf32> to vector<4xf32>
    %68 = vector.shape_cast %67 : vector<4xf32> to vector<1x4xf32>
    %c0_94 = arith.constant 0 : index
    %c0_95 = arith.constant 0 : index
    %c0_96 = arith.constant 0 : index
    %69 = vector.load %arg4[%c0_94, %c0_95, %c0_96] : memref<1x2x4xf32, #tpu.memory_space<vmem>>, vector<1x1x4xf32>
    %70 = vector.shape_cast %69 : vector<1x1x4xf32> to vector<1x4xf32>
    %71 = vector.shape_cast %68 : vector<1x4xf32> to vector<1x1x4xf32>
    tpu.vector_store %arg4[%c0_94, %c0_95, %c0_96], %71 {strides = array<i32>} : memref<1x2x4xf32, #tpu.memory_space<vmem>>, vector<1x1x4xf32>,
    %72 = arith.mulf %64, %64 : vector<256x4xf32>
    %cst_97 = arith.constant dense<0.000000e+00> : vector<4xf32>
    %73 = vector.multi_reduction <add>, %72, %cst_97 [0] : vector<256x4xf32> to vector<4xf32>
    %74 = vector.shape_cast %73 : vector<4xf32> to vector<1x4xf32>
    %c0_98 = arith.constant 0 : index
    %c1_99 = arith.constant 1 : index
    %c0_100 = arith.constant 0 : index
    %75 = vector.load %arg4[%c0_98, %c1_99, %c0_100] : memref<1x2x4xf32, #tpu.memory_space<vmem>>, vector<1x1x4xf32>
    %76 = vector.shape_cast %75 : vector<1x1x4xf32> to vector<1x4xf32>
    %77 = vector.shape_cast %74 : vector<1x4xf32> to vector<1x1x4xf32>
    tpu.vector_store %arg4[%c0_98, %c1_99, %c0_100], %77 {strides = array<i32>} : memref<1x2x4xf32, #tpu.memory_space<vmem>>, vector<1x1x4xf32>,
    return
  }
  func.func @transform_0(%arg0: i32) -> (i32, i32, i32, i32) {
    %c0_i32 = arith.constant 0 : i32
    %c0_i32_0 = arith.constant 0 : i32
    %c0_i32_1 = arith.constant 0 : i32
    %c0_i32_2 = arith.constant 0 : i32
    return %arg0, %c0_i32, %c0_i32_0, %c0_i32_1 : i32, i32, i32, i32
  }
  func.func @transform_1(%arg0: i32) -> (i32, i32, i32) {
    %c0_i32 = arith.constant 0 : i32
    %c0_i32_0 = arith.constant 0 : i32
    %c0_i32_1 = arith.constant 0 : i32
    %c0_i32_2 = arith.constant 0 : i32
    return %c0_i32, %c0_i32_0, %c0_i32_1 : i32, i32, i32
  }
  func.func @transform_2(%arg0: i32) -> (i32, i32, i32) {
    %c0_i32 = arith.constant 0 : i32
    %c0_i32_0 = arith.constant 0 : i32
    %c0_i32_1 = arith.constant 0 : i32
    return %arg0, %c0_i32, %c0_i32_0 : i32, i32, i32
  }
  func.func @transform_3(%arg0: i32) -> (i32, i32, i32) {
    %c0_i32 = arith.constant 0 : i32
    %c0_i32_0 = arith.constant 0 : i32
    %c0_i32_1 = arith.constant 0 : i32
    return %arg0, %c0_i32, %c0_i32_0 : i32, i32, i32
  }
}

module attributes {stable_mosaic.version = 11 : i64} {
  func.func @_bn_relu_conv_stats_kernel(%arg0: i32, %arg1: memref<1x256x4xf32, #tpu.memory_space<vmem>>, %arg2: memref<1x4xf32, #tpu.memory_space<vmem>>, %arg3: memref<1x4xf32, #tpu.memory_space<vmem>>, %arg4: memref<9x4x4xf32, #tpu.memory_space<vmem>>, %arg5: memref<1x256x4xf32, #tpu.memory_space<vmem>>, %arg6: memref<1x2x4xf32, #tpu.memory_space<vmem>>, %arg7: memref<1x18x18x4xf32, #tpu.memory_space<vmem>>) attributes {dimension_semantics = [#tpu.dimension_semantics<parallel>], iteration_bounds = array<i64: 2>, scalar_prefetch = 0 : i64, scratch_operands = 1 : i64, tpu.core_type = #tpu.core_type<tc>, window_params = [{transform_indices = @transform_0, window_bounds = array<i64: 1, 256, 4>}, {pipeline_mode = #tpu.pipeline_mode<synchronous>, transform_indices = @transform_1, window_bounds = array<i64: 1, 4>}, {pipeline_mode = #tpu.pipeline_mode<synchronous>, transform_indices = @transform_2, window_bounds = array<i64: 1, 4>}, {pipeline_mode = #tpu.pipeline_mode<synchronous>, transform_indices = @transform_3, window_bounds = array<i64: 9, 4, 4>}, {transform_indices = @transform_4, window_bounds = array<i64: 1, 256, 4>}, {transform_indices = @transform_5, window_bounds = array<i64: 1, 2, 4>}]} {
    %c0 = arith.constant 0 : index
    %c0_0 = arith.constant 0 : index
    %c0_1 = arith.constant 0 : index
    %0 = vector.load %arg1[%c0, %c0_0, %c0_1] : memref<1x256x4xf32, #tpu.memory_space<vmem>>, vector<1x256x4xf32>
    %c0_2 = arith.constant 0 : index
    %c0_3 = arith.constant 0 : index
    %1 = vector.load %arg2[%c0_2, %c0_3] : memref<1x4xf32, #tpu.memory_space<vmem>>, vector<1x4xf32>
    %2 = vector.shape_cast %1 : vector<1x4xf32> to vector<1x1x4xf32>
    %3 = vector.broadcast %2 : vector<1x1x4xf32> to vector<1x256x4xf32>
    %4 = arith.mulf %0, %3 : vector<1x256x4xf32>
    %c0_4 = arith.constant 0 : index
    %c0_5 = arith.constant 0 : index
    %5 = vector.load %arg3[%c0_4, %c0_5] : memref<1x4xf32, #tpu.memory_space<vmem>>, vector<1x4xf32>
    %6 = vector.shape_cast %5 : vector<1x4xf32> to vector<1x1x4xf32>
    %7 = vector.broadcast %6 : vector<1x1x4xf32> to vector<1x256x4xf32>
    %8 = arith.addf %4, %7 : vector<1x256x4xf32>
    %cst = arith.constant 0.000000e+00 : f32
    %9 = vector.broadcast %cst : f32 to vector<1x256x4xf32>
    %10 = arith.maximumf %8, %9 : vector<1x256x4xf32>
    %cst_6 = arith.constant 0.000000e+00 : f32
    %11 = vector.broadcast %cst_6 : f32 to vector<1x1x18x4xf32>
    %c0_7 = arith.constant 0 : index
    %c0_8 = arith.constant 0 : index
    %c0_9 = arith.constant 0 : index
    %c0_10 = arith.constant 0 : index
    %12 = vector.load %arg7[%c0_7, %c0_8, %c0_9, %c0_10] : memref<1x18x18x4xf32, #tpu.memory_space<vmem>>, vector<1x1x18x4xf32>
    tpu.vector_store %arg7[%c0_7, %c0_8, %c0_9, %c0_10], %11 {strides = array<i32>} : memref<1x18x18x4xf32, #tpu.memory_space<vmem>>, vector<1x1x18x4xf32>,
    %cst_11 = arith.constant 0.000000e+00 : f32
    %13 = vector.broadcast %cst_11 : f32 to vector<1x1x18x4xf32>
    %c0_12 = arith.constant 0 : index
    %c17 = arith.constant 17 : index
    %c0_13 = arith.constant 0 : index
    %c0_14 = arith.constant 0 : index
    %14 = vector.load %arg7[%c0_12, %c17, %c0_13, %c0_14] : memref<1x18x18x4xf32, #tpu.memory_space<vmem>>, vector<1x1x18x4xf32>
    tpu.vector_store %arg7[%c0_12, %c17, %c0_13, %c0_14], %13 {strides = array<i32>} : memref<1x18x18x4xf32, #tpu.memory_space<vmem>>, vector<1x1x18x4xf32>,
    %cst_15 = arith.constant 0.000000e+00 : f32
    %15 = vector.broadcast %cst_15 : f32 to vector<1x18x1x4xf32>
    %c0_16 = arith.constant 0 : index
    %c0_17 = arith.constant 0 : index
    %c0_18 = arith.constant 0 : index
    %c0_19 = arith.constant 0 : index
    %16 = vector.load %arg7[%c0_16, %c0_17, %c0_18, %c0_19] : memref<1x18x18x4xf32, #tpu.memory_space<vmem>>, vector<1x18x1x4xf32>
    tpu.vector_store %arg7[%c0_16, %c0_17, %c0_18, %c0_19], %15 {strides = array<i32>} : memref<1x18x18x4xf32, #tpu.memory_space<vmem>>, vector<1x18x1x4xf32>,
    %cst_20 = arith.constant 0.000000e+00 : f32
    %17 = vector.broadcast %cst_20 : f32 to vector<1x18x1x4xf32>
    %c0_21 = arith.constant 0 : index
    %c0_22 = arith.constant 0 : index
    %c17_23 = arith.constant 17 : index
    %c0_24 = arith.constant 0 : index
    %18 = vector.load %arg7[%c0_21, %c0_22, %c17_23, %c0_24] : memref<1x18x18x4xf32, #tpu.memory_space<vmem>>, vector<1x18x1x4xf32>
    tpu.vector_store %arg7[%c0_21, %c0_22, %c17_23, %c0_24], %17 {strides = array<i32>} : memref<1x18x18x4xf32, #tpu.memory_space<vmem>>, vector<1x18x1x4xf32>,
    %19 = vector.shape_cast %10 : vector<1x256x4xf32> to vector<1x16x16x4xf32>
    %c0_25 = arith.constant 0 : index
    %c1 = arith.constant 1 : index
    %c1_26 = arith.constant 1 : index
    %c0_27 = arith.constant 0 : index
    %20 = vector.load %arg7[%c0_25, %c1, %c1_26, %c0_27] : memref<1x18x18x4xf32, #tpu.memory_space<vmem>>, vector<1x16x16x4xf32>
    tpu.vector_store %arg7[%c0_25, %c1, %c1_26, %c0_27], %19 {strides = array<i32>} : memref<1x18x18x4xf32, #tpu.memory_space<vmem>>, vector<1x16x16x4xf32>,
    %cst_28 = arith.constant 0.000000e+00 : f32
    %21 = vector.broadcast %cst_28 : f32 to vector<256x4xf32>
    %c0_29 = arith.constant 0 : index
    %c0_30 = arith.constant 0 : index
    %c0_31 = arith.constant 0 : index
    %c0_32 = arith.constant 0 : index
    %22 = vector.load %arg7[%c0_29, %c0_30, %c0_31, %c0_32] : memref<1x18x18x4xf32, #tpu.memory_space<vmem>>, vector<1x16x16x4xf32>
    %23 = vector.shape_cast %22 : vector<1x16x16x4xf32> to vector<256x4xf32>
    %c0_33 = arith.constant 0 : index
    %c0_34 = arith.constant 0 : index
    %c0_35 = arith.constant 0 : index
    %24 = vector.load %arg4[%c0_33, %c0_34, %c0_35] : memref<9x4x4xf32, #tpu.memory_space<vmem>>, vector<1x4x4xf32>
    %25 = vector.shape_cast %24 : vector<1x4x4xf32> to vector<4x4xf32>
    %cst_36 = arith.constant dense<0.000000e+00> : vector<256x4xf32>
    %26 = tpu.matmul %23, %25, %cst_36 {dimension_numbers = #tpu.dot_dimension_numbers<[1], [0], [0], [1], [0, 0, 1, 1], [], []>} : vector<256x4xf32>, vector<4x4xf32>, vector<256x4xf32> -> vector<256x4xf32>
    %27 = arith.addf %21, %26 : vector<256x4xf32>
    %c0_37 = arith.constant 0 : index
    %c0_38 = arith.constant 0 : index
    %c1_39 = arith.constant 1 : index
    %c0_40 = arith.constant 0 : index
    %28 = vector.load %arg7[%c0_37, %c0_38, %c1_39, %c0_40] : memref<1x18x18x4xf32, #tpu.memory_space<vmem>>, vector<1x16x16x4xf32>
    %29 = vector.shape_cast %28 : vector<1x16x16x4xf32> to vector<256x4xf32>
    %c1_41 = arith.constant 1 : index
    %c0_42 = arith.constant 0 : index
    %c0_43 = arith.constant 0 : index
    %30 = vector.load %arg4[%c1_41, %c0_42, %c0_43] : memref<9x4x4xf32, #tpu.memory_space<vmem>>, vector<1x4x4xf32>
    %31 = vector.shape_cast %30 : vector<1x4x4xf32> to vector<4x4xf32>
    %cst_44 = arith.constant dense<0.000000e+00> : vector<256x4xf32>
    %32 = tpu.matmul %29, %31, %cst_44 {dimension_numbers = #tpu.dot_dimension_numbers<[1], [0], [0], [1], [0, 0, 1, 1], [], []>} : vector<256x4xf32>, vector<4x4xf32>, vector<256x4xf32> -> vector<256x4xf32>
    %33 = arith.addf %27, %32 : vector<256x4xf32>
    %c0_45 = arith.constant 0 : index
    %c0_46 = arith.constant 0 : index
    %c2 = arith.constant 2 : index
    %c0_47 = arith.constant 0 : index
    %34 = vector.load %arg7[%c0_45, %c0_46, %c2, %c0_47] : memref<1x18x18x4xf32, #tpu.memory_space<vmem>>, vector<1x16x16x4xf32>
    %35 = vector.shape_cast %34 : vector<1x16x16x4xf32> to vector<256x4xf32>
    %c2_48 = arith.constant 2 : index
    %c0_49 = arith.constant 0 : index
    %c0_50 = arith.constant 0 : index
    %36 = vector.load %arg4[%c2_48, %c0_49, %c0_50] : memref<9x4x4xf32, #tpu.memory_space<vmem>>, vector<1x4x4xf32>
    %37 = vector.shape_cast %36 : vector<1x4x4xf32> to vector<4x4xf32>
    %cst_51 = arith.constant dense<0.000000e+00> : vector<256x4xf32>
    %38 = tpu.matmul %35, %37, %cst_51 {dimension_numbers = #tpu.dot_dimension_numbers<[1], [0], [0], [1], [0, 0, 1, 1], [], []>} : vector<256x4xf32>, vector<4x4xf32>, vector<256x4xf32> -> vector<256x4xf32>
    %39 = arith.addf %33, %38 : vector<256x4xf32>
    %c0_52 = arith.constant 0 : index
    %c1_53 = arith.constant 1 : index
    %c0_54 = arith.constant 0 : index
    %c0_55 = arith.constant 0 : index
    %40 = vector.load %arg7[%c0_52, %c1_53, %c0_54, %c0_55] : memref<1x18x18x4xf32, #tpu.memory_space<vmem>>, vector<1x16x16x4xf32>
    %41 = vector.shape_cast %40 : vector<1x16x16x4xf32> to vector<256x4xf32>
    %c3 = arith.constant 3 : index
    %c0_56 = arith.constant 0 : index
    %c0_57 = arith.constant 0 : index
    %42 = vector.load %arg4[%c3, %c0_56, %c0_57] : memref<9x4x4xf32, #tpu.memory_space<vmem>>, vector<1x4x4xf32>
    %43 = vector.shape_cast %42 : vector<1x4x4xf32> to vector<4x4xf32>
    %cst_58 = arith.constant dense<0.000000e+00> : vector<256x4xf32>
    %44 = tpu.matmul %41, %43, %cst_58 {dimension_numbers = #tpu.dot_dimension_numbers<[1], [0], [0], [1], [0, 0, 1, 1], [], []>} : vector<256x4xf32>, vector<4x4xf32>, vector<256x4xf32> -> vector<256x4xf32>
    %45 = arith.addf %39, %44 : vector<256x4xf32>
    %c0_59 = arith.constant 0 : index
    %c1_60 = arith.constant 1 : index
    %c1_61 = arith.constant 1 : index
    %c0_62 = arith.constant 0 : index
    %46 = vector.load %arg7[%c0_59, %c1_60, %c1_61, %c0_62] : memref<1x18x18x4xf32, #tpu.memory_space<vmem>>, vector<1x16x16x4xf32>
    %47 = vector.shape_cast %46 : vector<1x16x16x4xf32> to vector<256x4xf32>
    %c4 = arith.constant 4 : index
    %c0_63 = arith.constant 0 : index
    %c0_64 = arith.constant 0 : index
    %48 = vector.load %arg4[%c4, %c0_63, %c0_64] : memref<9x4x4xf32, #tpu.memory_space<vmem>>, vector<1x4x4xf32>
    %49 = vector.shape_cast %48 : vector<1x4x4xf32> to vector<4x4xf32>
    %cst_65 = arith.constant dense<0.000000e+00> : vector<256x4xf32>
    %50 = tpu.matmul %47, %49, %cst_65 {dimension_numbers = #tpu.dot_dimension_numbers<[1], [0], [0], [1], [0, 0, 1, 1], [], []>} : vector<256x4xf32>, vector<4x4xf32>, vector<256x4xf32> -> vector<256x4xf32>
    %51 = arith.addf %45, %50 : vector<256x4xf32>
    %c0_66 = arith.constant 0 : index
    %c1_67 = arith.constant 1 : index
    %c2_68 = arith.constant 2 : index
    %c0_69 = arith.constant 0 : index
    %52 = vector.load %arg7[%c0_66, %c1_67, %c2_68, %c0_69] : memref<1x18x18x4xf32, #tpu.memory_space<vmem>>, vector<1x16x16x4xf32>
    %53 = vector.shape_cast %52 : vector<1x16x16x4xf32> to vector<256x4xf32>
    %c5 = arith.constant 5 : index
    %c0_70 = arith.constant 0 : index
    %c0_71 = arith.constant 0 : index
    %54 = vector.load %arg4[%c5, %c0_70, %c0_71] : memref<9x4x4xf32, #tpu.memory_space<vmem>>, vector<1x4x4xf32>
    %55 = vector.shape_cast %54 : vector<1x4x4xf32> to vector<4x4xf32>
    %cst_72 = arith.constant dense<0.000000e+00> : vector<256x4xf32>
    %56 = tpu.matmul %53, %55, %cst_72 {dimension_numbers = #tpu.dot_dimension_numbers<[1], [0], [0], [1], [0, 0, 1, 1], [], []>} : vector<256x4xf32>, vector<4x4xf32>, vector<256x4xf32> -> vector<256x4xf32>
    %57 = arith.addf %51, %56 : vector<256x4xf32>
    %c0_73 = arith.constant 0 : index
    %c2_74 = arith.constant 2 : index
    %c0_75 = arith.constant 0 : index
    %c0_76 = arith.constant 0 : index
    %58 = vector.load %arg7[%c0_73, %c2_74, %c0_75, %c0_76] : memref<1x18x18x4xf32, #tpu.memory_space<vmem>>, vector<1x16x16x4xf32>
    %59 = vector.shape_cast %58 : vector<1x16x16x4xf32> to vector<256x4xf32>
    %c6 = arith.constant 6 : index
    %c0_77 = arith.constant 0 : index
    %c0_78 = arith.constant 0 : index
    %60 = vector.load %arg4[%c6, %c0_77, %c0_78] : memref<9x4x4xf32, #tpu.memory_space<vmem>>, vector<1x4x4xf32>
    %61 = vector.shape_cast %60 : vector<1x4x4xf32> to vector<4x4xf32>
    %cst_79 = arith.constant dense<0.000000e+00> : vector<256x4xf32>
    %62 = tpu.matmul %59, %61, %cst_79 {dimension_numbers = #tpu.dot_dimension_numbers<[1], [0], [0], [1], [0, 0, 1, 1], [], []>} : vector<256x4xf32>, vector<4x4xf32>, vector<256x4xf32> -> vector<256x4xf32>
    %63 = arith.addf %57, %62 : vector<256x4xf32>
    %c0_80 = arith.constant 0 : index
    %c2_81 = arith.constant 2 : index
    %c1_82 = arith.constant 1 : index
    %c0_83 = arith.constant 0 : index
    %64 = vector.load %arg7[%c0_80, %c2_81, %c1_82, %c0_83] : memref<1x18x18x4xf32, #tpu.memory_space<vmem>>, vector<1x16x16x4xf32>
    %65 = vector.shape_cast %64 : vector<1x16x16x4xf32> to vector<256x4xf32>
    %c7 = arith.constant 7 : index
    %c0_84 = arith.constant 0 : index
    %c0_85 = arith.constant 0 : index
    %66 = vector.load %arg4[%c7, %c0_84, %c0_85] : memref<9x4x4xf32, #tpu.memory_space<vmem>>, vector<1x4x4xf32>
    %67 = vector.shape_cast %66 : vector<1x4x4xf32> to vector<4x4xf32>
    %cst_86 = arith.constant dense<0.000000e+00> : vector<256x4xf32>
    %68 = tpu.matmul %65, %67, %cst_86 {dimension_numbers = #tpu.dot_dimension_numbers<[1], [0], [0], [1], [0, 0, 1, 1], [], []>} : vector<256x4xf32>, vector<4x4xf32>, vector<256x4xf32> -> vector<256x4xf32>
    %69 = arith.addf %63, %68 : vector<256x4xf32>
    %c0_87 = arith.constant 0 : index
    %c2_88 = arith.constant 2 : index
    %c2_89 = arith.constant 2 : index
    %c0_90 = arith.constant 0 : index
    %70 = vector.load %arg7[%c0_87, %c2_88, %c2_89, %c0_90] : memref<1x18x18x4xf32, #tpu.memory_space<vmem>>, vector<1x16x16x4xf32>
    %71 = vector.shape_cast %70 : vector<1x16x16x4xf32> to vector<256x4xf32>
    %c8 = arith.constant 8 : index
    %c0_91 = arith.constant 0 : index
    %c0_92 = arith.constant 0 : index
    %72 = vector.load %arg4[%c8, %c0_91, %c0_92] : memref<9x4x4xf32, #tpu.memory_space<vmem>>, vector<1x4x4xf32>
    %73 = vector.shape_cast %72 : vector<1x4x4xf32> to vector<4x4xf32>
    %cst_93 = arith.constant dense<0.000000e+00> : vector<256x4xf32>
    %74 = tpu.matmul %71, %73, %cst_93 {dimension_numbers = #tpu.dot_dimension_numbers<[1], [0], [0], [1], [0, 0, 1, 1], [], []>} : vector<256x4xf32>, vector<4x4xf32>, vector<256x4xf32> -> vector<256x4xf32>
    %75 = arith.addf %69, %74 : vector<256x4xf32>
    %76 = vector.shape_cast %75 : vector<256x4xf32> to vector<1x256x4xf32>
    %c0_94 = arith.constant 0 : index
    %c0_95 = arith.constant 0 : index
    %c0_96 = arith.constant 0 : index
    %77 = vector.load %arg5[%c0_94, %c0_95, %c0_96] : memref<1x256x4xf32, #tpu.memory_space<vmem>>, vector<1x256x4xf32>
    tpu.vector_store %arg5[%c0_94, %c0_95, %c0_96], %76 {strides = array<i32>} : memref<1x256x4xf32, #tpu.memory_space<vmem>>, vector<1x256x4xf32>,
    %cst_97 = arith.constant dense<0.000000e+00> : vector<4xf32>
    %78 = vector.multi_reduction <add>, %75, %cst_97 [0] : vector<256x4xf32> to vector<4xf32>
    %79 = vector.shape_cast %78 : vector<4xf32> to vector<1x4xf32>
    %c0_98 = arith.constant 0 : index
    %c0_99 = arith.constant 0 : index
    %c0_100 = arith.constant 0 : index
    %80 = vector.load %arg6[%c0_98, %c0_99, %c0_100] : memref<1x2x4xf32, #tpu.memory_space<vmem>>, vector<1x1x4xf32>
    %81 = vector.shape_cast %80 : vector<1x1x4xf32> to vector<1x4xf32>
    %82 = vector.shape_cast %79 : vector<1x4xf32> to vector<1x1x4xf32>
    tpu.vector_store %arg6[%c0_98, %c0_99, %c0_100], %82 {strides = array<i32>} : memref<1x2x4xf32, #tpu.memory_space<vmem>>, vector<1x1x4xf32>,
    %83 = arith.mulf %75, %75 : vector<256x4xf32>
    %cst_101 = arith.constant dense<0.000000e+00> : vector<4xf32>
    %84 = vector.multi_reduction <add>, %83, %cst_101 [0] : vector<256x4xf32> to vector<4xf32>
    %85 = vector.shape_cast %84 : vector<4xf32> to vector<1x4xf32>
    %c0_102 = arith.constant 0 : index
    %c1_103 = arith.constant 1 : index
    %c0_104 = arith.constant 0 : index
    %86 = vector.load %arg6[%c0_102, %c1_103, %c0_104] : memref<1x2x4xf32, #tpu.memory_space<vmem>>, vector<1x1x4xf32>
    %87 = vector.shape_cast %86 : vector<1x1x4xf32> to vector<1x4xf32>
    %88 = vector.shape_cast %85 : vector<1x4xf32> to vector<1x1x4xf32>
    tpu.vector_store %arg6[%c0_102, %c1_103, %c0_104], %88 {strides = array<i32>} : memref<1x2x4xf32, #tpu.memory_space<vmem>>, vector<1x1x4xf32>,
    return
  }
  func.func @transform_0(%arg0: i32) -> (i32, i32, i32) {
    %c0_i32 = arith.constant 0 : i32
    %c0_i32_0 = arith.constant 0 : i32
    %c0_i32_1 = arith.constant 0 : i32
    return %arg0, %c0_i32, %c0_i32_0 : i32, i32, i32
  }
  func.func @transform_1(%arg0: i32) -> (i32, i32) {
    %c0_i32 = arith.constant 0 : i32
    %c0_i32_0 = arith.constant 0 : i32
    %c0_i32_1 = arith.constant 0 : i32
    return %c0_i32, %c0_i32_0 : i32, i32
  }
  func.func @transform_2(%arg0: i32) -> (i32, i32) {
    %c0_i32 = arith.constant 0 : i32
    %c0_i32_0 = arith.constant 0 : i32
    %c0_i32_1 = arith.constant 0 : i32
    return %c0_i32, %c0_i32_0 : i32, i32
  }
  func.func @transform_3(%arg0: i32) -> (i32, i32, i32) {
    %c0_i32 = arith.constant 0 : i32
    %c0_i32_0 = arith.constant 0 : i32
    %c0_i32_1 = arith.constant 0 : i32
    %c0_i32_2 = arith.constant 0 : i32
    return %c0_i32, %c0_i32_0, %c0_i32_1 : i32, i32, i32
  }
  func.func @transform_4(%arg0: i32) -> (i32, i32, i32) {
    %c0_i32 = arith.constant 0 : i32
    %c0_i32_0 = arith.constant 0 : i32
    %c0_i32_1 = arith.constant 0 : i32
    return %arg0, %c0_i32, %c0_i32_0 : i32, i32, i32
  }
  func.func @transform_5(%arg0: i32) -> (i32, i32, i32) {
    %c0_i32 = arith.constant 0 : i32
    %c0_i32_0 = arith.constant 0 : i32
    %c0_i32_1 = arith.constant 0 : i32
    return %arg0, %c0_i32, %c0_i32_0 : i32, i32, i32
  }
}

module attributes {stable_mosaic.version = 11 : i64} {
  func.func @_bn_residual_relu_kernel(%arg0: i32, %arg1: memref<8x128xf32, #tpu.memory_space<vmem>>, %arg2: memref<8x128xf32, #tpu.memory_space<vmem>>, %arg3: memref<8x128xf32, #tpu.memory_space<vmem>>, %arg4: memref<8x128xf32, #tpu.memory_space<vmem>>, %arg5: memref<8x128xf32, #tpu.memory_space<vmem>>) attributes {dimension_semantics = [#tpu.dimension_semantics<parallel>], iteration_bounds = array<i64: 2>, scalar_prefetch = 0 : i64, scratch_operands = 0 : i64, tpu.core_type = #tpu.core_type<tc>, window_params = [{transform_indices = @transform_0, window_bounds = array<i64: 8, 128>}, {transform_indices = @transform_1, window_bounds = array<i64: 8, 128>}, {pipeline_mode = #tpu.pipeline_mode<synchronous>, transform_indices = @transform_2, window_bounds = array<i64: 8, 128>}, {pipeline_mode = #tpu.pipeline_mode<synchronous>, transform_indices = @transform_3, window_bounds = array<i64: 8, 128>}, {transform_indices = @transform_4, window_bounds = array<i64: 8, 128>}]} {
    %c0 = arith.constant 0 : index
    %c0_0 = arith.constant 0 : index
    %0 = vector.load %arg1[%c0, %c0_0] : memref<8x128xf32, #tpu.memory_space<vmem>>, vector<8x128xf32>
    %c0_1 = arith.constant 0 : index
    %c0_2 = arith.constant 0 : index
    %1 = vector.load %arg3[%c0_1, %c0_2] : memref<8x128xf32, #tpu.memory_space<vmem>>, vector<8x128xf32>
    %2 = arith.mulf %0, %1 : vector<8x128xf32>
    %c0_3 = arith.constant 0 : index
    %c0_4 = arith.constant 0 : index
    %3 = vector.load %arg4[%c0_3, %c0_4] : memref<8x128xf32, #tpu.memory_space<vmem>>, vector<8x128xf32>
    %4 = arith.addf %2, %3 : vector<8x128xf32>
    %c0_5 = arith.constant 0 : index
    %c0_6 = arith.constant 0 : index
    %5 = vector.load %arg2[%c0_5, %c0_6] : memref<8x128xf32, #tpu.memory_space<vmem>>, vector<8x128xf32>
    %6 = arith.addf %4, %5 : vector<8x128xf32>
    %cst = arith.constant 0.000000e+00 : f32
    %7 = vector.broadcast %cst : f32 to vector<8x128xf32>
    %8 = arith.maximumf %6, %7 : vector<8x128xf32>
    %c0_7 = arith.constant 0 : index
    %c0_8 = arith.constant 0 : index
    %9 = vector.load %arg5[%c0_7, %c0_8] : memref<8x128xf32, #tpu.memory_space<vmem>>, vector<8x128xf32>
    tpu.vector_store %arg5[%c0_7, %c0_8], %8 {strides = array<i32>} : memref<8x128xf32, #tpu.memory_space<vmem>>, vector<8x128xf32>,
    return
  }
  func.func @transform_0(%arg0: i32) -> (i32, i32) {
    %c0_i32 = arith.constant 0 : i32
    %c0_i32_0 = arith.constant 0 : i32
    return %arg0, %c0_i32 : i32, i32
  }
  func.func @transform_1(%arg0: i32) -> (i32, i32) {
    %c0_i32 = arith.constant 0 : i32
    %c0_i32_0 = arith.constant 0 : i32
    return %arg0, %c0_i32 : i32, i32
  }
  func.func @transform_2(%arg0: i32) -> (i32, i32) {
    %c0_i32 = arith.constant 0 : i32
    %c0_i32_0 = arith.constant 0 : i32
    %c0_i32_1 = arith.constant 0 : i32
    return %c0_i32, %c0_i32_0 : i32, i32
  }
  func.func @transform_3(%arg0: i32) -> (i32, i32) {
    %c0_i32 = arith.constant 0 : i32
    %c0_i32_0 = arith.constant 0 : i32
    %c0_i32_1 = arith.constant 0 : i32
    return %c0_i32, %c0_i32_0 : i32, i32
  }
  func.func @transform_4(%arg0: i32) -> (i32, i32) {
    %c0_i32 = arith.constant 0 : i32
    %c0_i32_0 = arith.constant 0 : i32
    return %arg0, %c0_i32 : i32, i32
  }
}

</mosaic_0001>

<llo_original>
// kernel: residual_block_nchw.5
$region0: #{residual_block_nchw.5}
  #allocation0 [shape = 'u32[]', space=smem, size = 0x4, offset = 0x4, fixed_abs, tag = 'smem constant byte address 0x4 - core index']
  #allocation1 [shape = 'u32[72,128]{1,0:T(1,128)}', space=vmem, size = 0x9000, scoped, tag = 'internal scratch']
  %s0 = inlined_call_operand.vmem [shape: f32[16,128], index: 0, kind: input, shape index: {}]
  %s1 = inlined_call_operand.vmem [shape: f32[16,128], index: 1, kind: input, shape index: {}]
  %s2 = inlined_call_operand.vmem [shape: f32[8,128], index: 2, kind: input, shape index: {}]
  %s3 = inlined_call_operand.vmem [shape: f32[8,128], index: 3, kind: input, shape index: {}]
  %s4 = inlined_call_operand.vmem [shape: f32[16,128], index: 4, kind: output, shape index: {}]
  %s5 = sld [smem:[#allocation0]]
  $region49: #{residual_block_nchw.5} parent=0
    _
  %s7 = ssub.s32 1, %s5
  %s8 = scalar_select 0, %s7, %s5
  loop: start=0, step=1, limit=4
  $region2: #{residual_block_nchw.5} parent=0 // loop_pre_header
    _
  $region3: #{residual_block_nchw.5} parent=0 // loop_header
    %s10 = sphi 0, %s14
    %p11 = scmp.ge.s32.totalorder %s10, 4
    %s20 = sphi 0, %s22
    %s23 = sphi 0, %s20
    %s24 = sphi 0, %s23
    %s40 = sphi 0, %s24
    %s46 = sphi 0, %s48
    %s49 = sphi 0, %s46
    %s50 = sphi 0, %s49
    %s66 = sphi 0, %s50
    %s70 = sphi 0, %s70
    %s72 = sphi 0, %s70
    %s73 = sphi 0, %s72
    %s87 = sphi 0, %s73
    %s91 = sphi 0, %s91
    %s93 = sphi 0, %s91
    %s94 = sphi 0, %s93
    %s108 = sphi 0, %s94
    %s114 = sphi 0, %s116
    %s117 = sphi 0, %s114
    %s118 = sphi 0, %s117
    %s134 = sphi 0, %s118
  $region4: #{residual_block_nchw.5} parent=0 // loop_header_branch
    %13 = sbr.rel (%p11) target = $region8
  $region5: #{residual_block_nchw.5} parent=0 // loop_body
    %s15 = ssub.s32 %s10, 1
    %s16 = ssub.s32 %s10, 2
    %s17 = sadd.s32 %s10, 1
    %s18 = ssub.s32 %s10, %s17
    %p19 = scmp.eq.s32.totalorder %s18, 0
    %s21 = sadd.s32 %s20, 1
    %s22 = scalar_select %p19, %s20, %s21
    %p25 = pneg %p19
    %p26 = scmp.eq.s32.totalorder %s10, 1
    %p27 = por %p25, %p26
    %p28 = scmp.ne.s32.totalorder %s20, %s23
    %p29 = scmp.eq.s32.totalorder %s10, 0
    %p30 = por %p28, %p29
    %p31 = scmp.ne.s32.totalorder %s20, %s23
    %p32 = scmp.eq.s32.totalorder %s15, 1
    %p33 = por %p31, %p32
    %p34 = scmp.ne.s32.totalorder %s23, %s24
    %p35 = scmp.eq.s32.totalorder %s15, 0
    %p36 = por %p34, %p35
    %p37 = scmp.ne.s32.totalorder %s23, %s24
    %p38 = scmp.eq.s32.totalorder %s16, 1
    %p39 = por %p37, %p38
    %p41 = scmp.ne.s32.totalorder %s24, %s40
    %p42 = scmp.eq.s32.totalorder %s16, 0
    %p43 = por %p41, %p42
    %s44 = ssub.s32 %s10, %s17
    %p45 = scmp.eq.s32.totalorder %s44, 0
    %s47 = sadd.s32 %s46, 1
    %s48 = scalar_select %p45, %s46, %s47
    %p51 = pneg %p45
    %p52 = scmp.eq.s32.totalorder %s10, 1
    %p53 = por %p51, %p52
    %p54 = scmp.ne.s32.totalorder %s46, %s49
    %p55 = scmp.eq.s32.totalorder %s10, 0
    %p56 = por %p54, %p55
    %p57 = scmp.ne.s32.totalorder %s46, %s49
    %p58 = scmp.eq.s32.totalorder %s15, 1
    %p59 = por %p57, %p58
    %p60 = scmp.ne.s32.totalorder %s49, %s50
    %p61 = scmp.eq.s32.totalorder %s15, 0
    %p62 = por %p60, %p61
    %p63 = scmp.ne.s32.totalorder %s49, %s50
    %p64 = scmp.eq.s32.totalorder %s16, 1
    %p65 = por %p63, %p64
    %p67 = scmp.ne.s32.totalorder %s50, %s66
    %p68 = scmp.eq.s32.totalorder %s16, 0
    %p69 = por %p67, %p68
    %s71 = sadd.s32 %s70, 1
    %p74 = scmp.eq.s32.totalorder %s10, 1
    %p75 = scmp.ne.s32.totalorder %s70, %s72
    %p76 = scmp.eq.s32.totalorder %s10, 0
    %p77 = por %p75, %p76
    %p78 = scmp.ne.s32.totalorder %s70, %s72
    %p79 = scmp.eq.s32.totalorder %s15, 1
    %p80 = por %p78, %p79
    %p81 = scmp.ne.s32.totalorder %s72, %s73
    %p82 = scmp.eq.s32.totalorder %s15, 0
    %p83 = por %p81, %p82
    %p84 = scmp.ne.s32.totalorder %s72, %s73
    %p85 = scmp.eq.s32.totalorder %s16, 1
    %p86 = por %p84, %p85
    %p88 = scmp.ne.s32.totalorder %s73, %s87
    %p89 = scmp.eq.s32.totalorder %s16, 0
    %p90 = por %p88, %p89
    %s92 = sadd.s32 %s91, 1
    %p95 = scmp.eq.s32.totalorder %s10, 1
    %p96 = scmp.ne.s32.totalorder %s91, %s93
    %p97 = scmp.eq.s32.totalorder %s10, 0
    %p98 = por %p96, %p97
    %p99 = scmp.ne.s32.totalorder %s91, %s93
    %p100 = scmp.eq.s32.totalorder %s15, 1
    %p101 = por %p99, %p100
    %p102 = scmp.ne.s32.totalorder %s93, %s94
    %p103 = scmp.eq.s32.totalorder %s15, 0
    %p104 = por %p102, %p103
    %p105 = scmp.ne.s32.totalorder %s93, %s94
    %p106 = scmp.eq.s32.totalorder %s16, 1
    %p107 = por %p105, %p106
    %p109 = scmp.ne.s32.totalorder %s94, %s108
    %p110 = scmp.eq.s32.totalorder %s16, 0
    %p111 = por %p109, %p110
    %s112 = ssub.s32 %s10, %s17
    %p113 = scmp.eq.s32.totalorder %s112, 0
    %s115 = sadd.s32 %s114, 1
    %s116 = scalar_select %p113, %s114, %s115
    %p119 = pneg %p113
    %p120 = scmp.eq.s32.totalorder %s10, 1
    %p121 = por %p119, %p120
    %p122 = scmp.ne.s32.totalorder %s114, %s117
    %p123 = scmp.eq.s32.totalorder %s10, 0
    %p124 = por %p122, %p123
    %p125 = scmp.ne.s32.totalorder %s114, %s117
    %p126 = scmp.eq.s32.totalorder %s15, 1
    %p127 = por %p125, %p126
    %p128 = scmp.ne.s32.totalorder %s117, %s118
    %p129 = scmp.eq.s32.totalorder %s15, 0
    %p130 = por %p128, %p129
    %p131 = scmp.ne.s32.totalorder %s117, %s118
    %p132 = scmp.eq.s32.totalorder %s16, 1
    %p133 = por %p131, %p132
    %p135 = scmp.ne.s32.totalorder %s118, %s134
    %p136 = scmp.eq.s32.totalorder %s16, 0
    %p137 = por %p135, %p136
    %p138 = scmp.le.s32.totalorder 1, %s10
    %p139 = scmp.lt.s32.totalorder %s10, 3
    %p140 = pnand %p138, %p139
    %p141 = pneg %p140
    // Predicated region
    $region9: #{residual_block_nchw.5} parent=5 // pred_check
      _
    $region10: #{residual_block_nchw.5} parent=5 // pred_check_branch
      %143 = sbr.rel (%p140) target = $region12
    $region11: #{residual_block_nchw.5} parent=5 // pred_region
      %s144 = ssub.s32 %s10, 1
      // Predicated region
      $region13: #{residual_block_nchw.5} parent=11 // pred_check
        %p145 = pneg %p83
      $region14: #{residual_block_nchw.5} parent=11 // pred_check_branch
        %147 = sbr.rel (%p145) target = $region16
      $region15: #{residual_block_nchw.5} parent=11 // pred_region
        _
      $region16: #{residual_block_nchw.5} parent=11 // pred_fallthru
        _
      // Predicated region
      $region17: #{residual_block_nchw.5} parent=11 // pred_check
        %p148 = pneg %p104
      $region18: #{residual_block_nchw.5} parent=11 // pred_check_branch
        %150 = sbr.rel (%p148) target = $region20
      $region19: #{residual_block_nchw.5} parent=11 // pred_region
        _
      $region20: #{residual_block_nchw.5} parent=11 // pred_fallthru
        _
    $region12: #{residual_block_nchw.5} parent=5 // pred_fallthru
      _
    %p151 = scmp.lt.s32.totalorder %s10, 2
    // Predicated region
    $region21: #{residual_block_nchw.5} parent=5 // pred_check
      %p152 = pneg %p151
    $region22: #{residual_block_nchw.5} parent=5 // pred_check_branch
      %154 = sbr.rel (%p152) target = $region24
    $region23: #{residual_block_nchw.5} parent=5 // pred_region
      // Predicated region
      $region25: #{residual_block_nchw.5} parent=23 // pred_check
        %p155 = pneg %p30
      $region26: #{residual_block_nchw.5} parent=23 // pred_check_branch
        %157 = sbr.rel (%p155) target = $region28
      $region27: #{residual_block_nchw.5} parent=23 // pred_region
        %p158 = scmp.lt.s32.totalorder %s10, 1
        %s159 = scalar_select %p158, %s10, 1
        %s160 = smul.addr %s159, 8
        %s161 = scalar_lea.vmem %s0, %s160
      $region28: #{residual_block_nchw.5} parent=23 // pred_fallthru
        _
      // Predicated region
      $region29: #{residual_block_nchw.5} parent=23 // pred_check
        %p162 = pneg %p56
      $region30: #{residual_block_nchw.5} parent=23 // pred_check_branch
        %164 = sbr.rel (%p162) target = $region32
      $region31: #{residual_block_nchw.5} parent=23 // pred_region
        %p165 = scmp.lt.s32.totalorder %s10, 1
        %s166 = scalar_select %p165, %s10, 1
        %s167 = smul.addr %s166, 8
        %s168 = scalar_lea.vmem %s1, %s167
      $region32: #{residual_block_nchw.5} parent=23 // pred_fallthru
        _
    $region24: #{residual_block_nchw.5} parent=5 // pred_fallthru
      _
    %p169 = scmp.le.s32.totalorder 1, %s10
    %p170 = scmp.lt.s32.totalorder %s10, 3
    %p171 = pnand %p169, %p170
    %p172 = pneg %p171
    // Predicated region
    $region33: #{residual_block_nchw.5} parent=5 // pred_check
      _
    $region34: #{residual_block_nchw.5} parent=5 // pred_check_branch
      %174 = sbr.rel (%p171) target = $region36
    $region35: #{residual_block_nchw.5} parent=5 // pred_region
      %s175 = ssub.s32 %s10, 1
      %p176 = scmp.lt.s32.totalorder %s15, 1
      %s177 = scalar_select %p176, %s15, 1
      %s178 = smul.addr %s177, 8
      %s179 = scalar_lea.vmem %s0, %s178
      %p180 = pneg %p36
      %p181 = pneg %p33
      %p182 = scmp.lt.s32.totalorder %s15, 1
      %s183 = scalar_select %p182, %s15, 1
      %s184 = smul.addr %s183, 8
      %s185 = scalar_lea.vmem %s1, %s184
      %p186 = pneg %p62
      %p187 = pneg %p59
      %p188 = pneg %p83
      %p189 = pneg %p80
      %p190 = pneg %p104
      %p191 = pneg %p101
      %p192 = pneg %p130
      %p193 = pneg %p127
      %p194 = scmp.lt.s32.totalorder %s15, 1
      %s195 = scalar_select %p194, %s15, 1
      %s196 = smul.addr %s195, 8
      %s197 = scalar_lea.vmem %s4, %s196
      %p198 = scmp.lt.s32.totalorder %s15, 1
      %s199 = scalar_select %p198, %s15, 1
      %s200 = smul.addr %s199, 8
      %s201 = scalar_lea.vmem %s0, %s200
      %p202 = scmp.lt.s32.totalorder %s15, 1
      %s203 = scalar_select %p202, %s15, 1
      %s204 = smul.addr %s203, 8
      %s205 = scalar_lea.vmem %s1, %s204
      %p206 = scmp.lt.s32.totalorder %s15, 1
      %s207 = scalar_select %p206, %s15, 1
      %s208 = smul.addr %s207, 8
      %s209 = scalar_lea.vmem %s4, %s208
      %v210 = vld [vmem:[%s201] sm:$0xff]
      %v211 = vld [vmem:[%s2] sm:$0xff]
      %v212 = vmul.f32 %v210, %v211
      %v213 = vld [vmem:[%s3] sm:$0xff]
      %v214 = vadd.f32 %v212, %v213
      %v215 = vld [vmem:[%s205] sm:$0xff]
      %v216 = vadd.f32 %v214, %v215
      %v217 = vmax.f32 %v216, 0.0
      %218 = vst [vmem:[%s209] sm:$0xff] %v217
      %p219 = scmp.lt.s32.totalorder %s15, 1
      %s220 = scalar_select %p219, %s15, 1
      %s221 = smul.addr %s220, 8
      %s222 = scalar_lea.vmem %s4, %s221
      // Predicated region
      $region37: #{residual_block_nchw.5} parent=35 // pred_check
        %p223 = pneg %p127
      $region38: #{residual_block_nchw.5} parent=35 // pred_check_branch
        %225 = sbr.rel (%p223) target = $region40
      $region39: #{residual_block_nchw.5} parent=35 // pred_region
        _
      $region40: #{residual_block_nchw.5} parent=35 // pred_fallthru
        _
    $region36: #{residual_block_nchw.5} parent=5 // pred_fallthru
      _
    %p226 = scmp.le.s32.totalorder 2, %s10
    // Predicated region
    $region41: #{residual_block_nchw.5} parent=5 // pred_check
      %p227 = pneg %p226
    $region42: #{residual_block_nchw.5} parent=5 // pred_check_branch
      %229 = sbr.rel (%p227) target = $region44
    $region43: #{residual_block_nchw.5} parent=5 // pred_region
      %s230 = ssub.s32 %s10, 2
      // Predicated region
      $region45: #{residual_block_nchw.5} parent=43 // pred_check
        %p231 = pneg %p133
      $region46: #{residual_block_nchw.5} parent=43 // pred_check_branch
        %233 = sbr.rel (%p231) target = $region48
      $region47: #{residual_block_nchw.5} parent=43 // pred_region
        %p234 = scmp.lt.s32.totalorder %s16, 1
        %s235 = scalar_select %p234, %s16, 1
        %s236 = smul.addr %s235, 8
        %s237 = scalar_lea.vmem %s4, %s236
      $region48: #{residual_block_nchw.5} parent=43 // pred_fallthru
        _
    $region44: #{residual_block_nchw.5} parent=5 // pred_fallthru
      _
  $region6: #{residual_block_nchw.5} parent=0 // loop_footer
    %s14 = sadd.s32 1, %s10
  $region7: #{residual_block_nchw.5} parent=0 // loop_footer_branch
    %9 = sbr.rel target = $region3
  $region8: #{residual_block_nchw.5} parent=0 // loop_exit
    _

// kernel: residual_block_nchw.3
$region0: #{residual_block_nchw.3}
  #allocation0 [shape = 'u32[]', space=smem, size = 0x4, offset = 0x4, fixed_abs, tag = 'smem constant byte address 0x4 - core index']
  #allocation1 [shape = 'u32[72,128]{1,0:T(1,128)}', space=vmem, size = 0x9000, scoped, tag = 'internal scratch']
  #allocation2 [shape = 'f32[1,18,18,4]{3,2,1,0:T(8,128)}', space=vmem, size = 0x36000, scoped, tag = 'scratch operand']
  %s0 = inlined_call_operand.vmem [shape: f32[2,16,16,4], index: 0, kind: input, shape index: {}]
  %s1 = inlined_call_operand.vmem [shape: f32[9,4,4], index: 1, kind: input, shape index: {}]
  %s2 = inlined_call_operand.vmem [shape: f32[2,256,4], index: 2, kind: output, shape index: {0}]
  %s3 = inlined_call_operand.vmem [shape: f32[2,2,4], index: 3, kind: output, shape index: {1}]
  %4 = xla_tuple %s2, %s3
  %s5 = sld [smem:[#allocation0]]
  $region49: #{residual_block_nchw.3} parent=0
    _
  %s7 = ssub.s32 1, %s5
  %s8 = scalar_select 0, %s7, %s5
  loop: start=0, step=1, limit=4
  $region2: #{residual_block_nchw.3} parent=0 // loop_pre_header
    _
  $region3: #{residual_block_nchw.3} parent=0 // loop_header
    %s10 = sphi 0, %s14
    %p11 = scmp.ge.s32.totalorder %s10, 4
    %s20 = sphi 0, %s22
    %s23 = sphi 0, %s20
    %s24 = sphi 0, %s23
    %s40 = sphi 0, %s24
    %s44 = sphi 0, %s44
    %s46 = sphi 0, %s44
    %s47 = sphi 0, %s46
    %s61 = sphi 0, %s47
    %s67 = sphi 0, %s69
    %s70 = sphi 0, %s67
    %s71 = sphi 0, %s70
    %s87 = sphi 0, %s71
    %s93 = sphi 0, %s95
    %s96 = sphi 0, %s93
    %s97 = sphi 0, %s96
    %s113 = sphi 0, %s97
  $region4: #{residual_block_nchw.3} parent=0 // loop_header_branch
    %13 = sbr.rel (%p11) target = $region8
  $region5: #{residual_block_nchw.3} parent=0 // loop_body
    %s15 = ssub.s32 %s10, 1
    %s16 = ssub.s32 %s10, 2
    %s17 = sadd.s32 %s10, 1
    %s18 = ssub.s32 %s10, %s17
    %p19 = scmp.eq.s32.totalorder %s18, 0
    %s21 = sadd.s32 %s20, 1
    %s22 = scalar_select %p19, %s20, %s21
    %p25 = pneg %p19
    %p26 = scmp.eq.s32.totalorder %s10, 1
    %p27 = por %p25, %p26
    %p28 = scmp.ne.s32.totalorder %s20, %s23
    %p29 = scmp.eq.s32.totalorder %s10, 0
    %p30 = por %p28, %p29
    %p31 = scmp.ne.s32.totalorder %s20, %s23
    %p32 = scmp.eq.s32.totalorder %s15, 1
    %p33 = por %p31, %p32
    %p34 = scmp.ne.s32.totalorder %s23, %s24
    %p35 = scmp.eq.s32.totalorder %s15, 0
    %p36 = por %p34, %p35
    %p37 = scmp.ne.s32.totalorder %s23, %s24
    %p38 = scmp.eq.s32.totalorder %s16, 1
    %p39 = por %p37, %p38
    %p41 = scmp.ne.s32.totalorder %s24, %s40
    %p42 = scmp.eq.s32.totalorder %s16, 0
    %p43 = por %p41, %p42
    %s45 = sadd.s32 %s44, 1
    %p48 = scmp.eq.s32.totalorder %s10, 1
    %p49 = scmp.ne.s32.totalorder %s44, %s46
    %p50 = scmp.eq.s32.totalorder %s10, 0
    %p51 = por %p49, %p50
    %p52 = scmp.ne.s32.totalorder %s44, %s46
    %p53 = scmp.eq.s32.totalorder %s15, 1
    %p54 = por %p52, %p53
    %p55 = scmp.ne.s32.totalorder %s46, %s47
    %p56 = scmp.eq.s32.totalorder %s15, 0
    %p57 = por %p55, %p56
    %p58 = scmp.ne.s32.totalorder %s46, %s47
    %p59 = scmp.eq.s32.totalorder %s16, 1
    %p60 = por %p58, %p59
    %p62 = scmp.ne.s32.totalorder %s47, %s61
    %p63 = scmp.eq.s32.totalorder %s16, 0
    %p64 = por %p62, %p63
    %s65 = ssub.s32 %s10, %s17
    %p66 = scmp.eq.s32.totalorder %s65, 0
    %s68 = sadd.s32 %s67, 1
    %s69 = scalar_select %p66, %s67, %s68
    %p72 = pneg %p66
    %p73 = scmp.eq.s32.totalorder %s10, 1
    %p74 = por %p72, %p73
    %p75 = scmp.ne.s32.totalorder %s67, %s70
    %p76 = scmp.eq.s32.totalorder %s10, 0
    %p77 = por %p75, %p76
    %p78 = scmp.ne.s32.totalorder %s67, %s70
    %p79 = scmp.eq.s32.totalorder %s15, 1
    %p80 = por %p78, %p79
    %p81 = scmp.ne.s32.totalorder %s70, %s71
    %p82 = scmp.eq.s32.totalorder %s15, 0
    %p83 = por %p81, %p82
    %p84 = scmp.ne.s32.totalorder %s70, %s71
    %p85 = scmp.eq.s32.totalorder %s16, 1
    %p86 = por %p84, %p85
    %p88 = scmp.ne.s32.totalorder %s71, %s87
    %p89 = scmp.eq.s32.totalorder %s16, 0
    %p90 = por %p88, %p89
    %s91 = ssub.s32 %s10, %s17
    %p92 = scmp.eq.s32.totalorder %s91, 0
    %s94 = sadd.s32 %s93, 1
    %s95 = scalar_select %p92, %s93, %s94
    %p98 = pneg %p92
    %p99 = scmp.eq.s32.totalorder %s10, 1
    %p100 = por %p98, %p99
    %p101 = scmp.ne.s32.totalorder %s93, %s96
    %p102 = scmp.eq.s32.totalorder %s10, 0
    %p103 = por %p101, %p102
    %p104 = scmp.ne.s32.totalorder %s93, %s96
    %p105 = scmp.eq.s32.totalorder %s15, 1
    %p106 = por %p104, %p105
    %p107 = scmp.ne.s32.totalorder %s96, %s97
    %p108 = scmp.eq.s32.totalorder %s15, 0
    %p109 = por %p107, %p108
    %p110 = scmp.ne.s32.totalorder %s96, %s97
    %p111 = scmp.eq.s32.totalorder %s16, 1
    %p112 = por %p110, %p111
    %p114 = scmp.ne.s32.totalorder %s97, %s113
    %p115 = scmp.eq.s32.totalorder %s16, 0
    %p116 = por %p114, %p115
    %p117 = scmp.le.s32.totalorder 1, %s10
    %p118 = scmp.lt.s32.totalorder %s10, 3
    %p119 = pnand %p117, %p118
    %p120 = pneg %p119
    // Predicated region
    $region9: #{residual_block_nchw.3} parent=5 // pred_check
      _
    $region10: #{residual_block_nchw.3} parent=5 // pred_check_branch
      %122 = sbr.rel (%p119) target = $region12
    $region11: #{residual_block_nchw.3} parent=5 // pred_region
      %s123 = ssub.s32 %s10, 1
      // Predicated region
      $region13: #{residual_block_nchw.3} parent=11 // pred_check
        %p124 = pneg %p57
      $region14: #{residual_block_nchw.3} parent=11 // pred_check_branch
        %126 = sbr.rel (%p124) target = $region16
      $region15: #{residual_block_nchw.3} parent=11 // pred_region
        _
      $region16: #{residual_block_nchw.3} parent=11 // pred_fallthru
        _
    $region12: #{residual_block_nchw.3} parent=5 // pred_fallthru
      _
    %p127 = scmp.lt.s32.totalorder %s10, 2
    // Predicated region
    $region17: #{residual_block_nchw.3} parent=5 // pred_check
      %p128 = pneg %p127
    $region18: #{residual_block_nchw.3} parent=5 // pred_check_branch
      %130 = sbr.rel (%p128) target = $region20
    $region19: #{residual_block_nchw.3} parent=5 // pred_region
      // Predicated region
      $region21: #{residual_block_nchw.3} parent=19 // pred_check
        %p131 = pneg %p30
      $region22: #{residual_block_nchw.3} parent=19 // pred_check_branch
        %133 = sbr.rel (%p131) target = $region24
      $region23: #{residual_block_nchw.3} parent=19 // pred_region
        %p134 = scmp.lt.s32.totalorder %s10, 1
        %s135 = scalar_select %p134, %s10, 1
        %s136 = smul.addr %s135, 32
        %s137 = smul.addr %s136, 8
        %s138 = scalar_lea.vmem %s0, %s137
      $region24: #{residual_block_nchw.3} parent=19 // pred_fallthru
        _
    $region20: #{residual_block_nchw.3} parent=5 // pred_fallthru
      _
    %p139 = scmp.le.s32.totalorder 1, %s10
    %p140 = scmp.lt.s32.totalorder %s10, 3
    %p141 = pnand %p139, %p140
    %p142 = pneg %p141
    // Predicated region
    $region25: #{residual_block_nchw.3} parent=5 // pred_check
      _
    $region26: #{residual_block_nchw.3} parent=5 // pred_check_branch
      %144 = sbr.rel (%p141) target = $region28
    $region27: #{residual_block_nchw.3} parent=5 // pred_region
      %s145 = ssub.s32 %s10, 1
      %p146 = scmp.lt.s32.totalorder %s15, 1
      %s147 = scalar_select %p146, %s15, 1
      %s148 = smul.addr %s147, 32
      %s149 = smul.addr %s148, 8
      %s150 = scalar_lea.vmem %s0, %s149
      %p151 = pneg %p36
      %p152 = pneg %p33
      %p153 = pneg %p57
      %p154 = pneg %p54
      %p155 = pneg %p83
      %p156 = pneg %p80
      %p157 = scmp.lt.s32.totalorder %s15, 1
      %s158 = scalar_select %p157, %s15, 1
      %s159 = smul.addr %s158, 32
      %s160 = smul.addr %s159, 8
      %s161 = scalar_lea.vmem %s2, %s160
      %p162 = pneg %p109
      %p163 = pneg %p106
      %p164 = scmp.lt.s32.totalorder %s15, 1
      %s165 = scalar_select %p164, %s15, 1
      %s166 = smul.addr %s165, 2
      %s167 = scalar_lea.vmem %s3, %s166
      %p168 = scmp.lt.s32.totalorder %s15, 1
      %s169 = scalar_select %p168, %s15, 1
      %s170 = smul.addr %s169, 32
      %s171 = smul.addr %s170, 8
      %s172 = scalar_lea.vmem %s0, %s171
      %p173 = scmp.lt.s32.totalorder %s15, 1
      %s174 = scalar_select %p173, %s15, 1
      %s175 = smul.addr %s174, 32
      %s176 = smul.addr %s175, 8
      %s177 = scalar_lea.vmem %s2, %s176
      %p178 = scmp.lt.s32.totalorder %s15, 1
      %s179 = scalar_select %p178, %s15, 1
      %s180 = smul.addr %s179, 2
      %s181 = scalar_lea.vmem %s3, %s180
      %vm182 = vcmask 31744
      %183 = vst.msk [vmem:[#allocation2] sm:$0xff] %vm182, 0.0
      %184 = vst.msk [vmem:[#allocation2 + $0x8] sm:$0xff] %vm182, 0.0
      %vm185 = vcmask 25600
      %186 = vst.msk [vmem:[#allocation2 + $0x10] sm:$0x3] %vm185, 0.0
      %s187 = scalar_lea.vmem [#allocation2], 408
      %188 = vst.msk [vmem:[%s187] sm:$0xff] %vm182, 0.0
      %189 = vst.msk [vmem:[%s187 + $0x8] sm:$0xff] %vm182, 0.0
      %190 = vst.msk [vmem:[%s187 + $0x10] sm:$0x3] %vm185, 0.0
      %vm191 = vcmask 24576
      %192 = vst.msk [vmem:[#allocation2] sm:$0x1] %vm191, 0.0
      %193 = vst.msk [vmem:[#allocation2 + $0x18] sm:$0x1] %vm191, 0.0
      %194 = vst.msk [vmem:[#allocation2 + $0x30] sm:$0x1] %vm191, 0.0
      %195 = vst.msk [vmem:[#allocation2 + $0x48] sm:$0x1] %vm191, 0.0
      %196 = vst.msk [vmem:[#allocation2 + $0x60] sm:$0x1] %vm191, 0.0
      %197 = vst.msk [vmem:[#allocation2 + $0x78] sm:$0x1] %vm191, 0.0
      %198 = vst.msk [vmem:[#allocation2 + $0x90] sm:$0x1] %vm191, 0.0
      %199 = vst.msk [vmem:[#allocation2 + $0xa8] sm:$0x1] %vm191, 0.0
      %200 = vst.msk [vmem:[#allocation2 + $0xc0] sm:$0x1] %vm191, 0.0
      %201 = vst.msk [vmem:[#allocation2 + $0xd8] sm:$0x1] %vm191, 0.0
      %202 = vst.msk [vmem:[#allocation2 + $0xf0] sm:$0x1] %vm191, 0.0
      %203 = vst.msk [vmem:[#allocation2 + $0x108] sm:$0x1] %vm191, 0.0
      %204 = vst.msk [vmem:[#allocation2 + $0x120] sm:$0x1] %vm191, 0.0
      %205 = vst.msk [vmem:[#allocation2 + $0x138] sm:$0x1] %vm191, 0.0
      %206 = vst.msk [vmem:[#allocation2 + $0x150] sm:$0x1] %vm191, 0.0
      %207 = vst.msk [vmem:[#allocation2 + $0x168] sm:$0x1] %vm191, 0.0
      %208 = vst.msk [vmem:[#allocation2 + $0x180] sm:$0x1] %vm191, 0.0
      %209 = vst.msk [vmem:[#allocation2 + $0x198] sm:$0x1] %vm191, 0.0
      %210 = vst.msk [vmem:[#allocation2 + $0x11] sm:$0x1] %vm191, 0.0
      %211 = vst.msk [vmem:[#allocation2 + $0x29] sm:$0x1] %vm191, 0.0
      %212 = vst.msk [vmem:[#allocation2 + $0x41] sm:$0x1] %vm191, 0.0
      %213 = vst.msk [vmem:[#allocation2 + $0x59] sm:$0x1] %vm191, 0.0
      %214 = vst.msk [vmem:[#allocation2 + $0x71] sm:$0x1] %vm191, 0.0
      %215 = vst.msk [vmem:[#allocation2 + $0x89] sm:$0x1] %vm191, 0.0
      %216 = vst.msk [vmem:[#allocation2 + $0xa1] sm:$0x1] %vm191, 0.0
      %217 = vst.msk [vmem:[#allocation2 + $0xb9] sm:$0x1] %vm191, 0.0
      %218 = vst.msk [vmem:[#allocation2 + $0xd1] sm:$0x1] %vm191, 0.0
      %219 = vst.msk [vmem:[#allocation2 + $0xe9] sm:$0x1] %vm191, 0.0
      %220 = vst.msk [vmem:[#allocation2 + $0x101] sm:$0x1] %vm191, 0.0
      %221 = vst.msk [vmem:[#allocation2 + $0x119] sm:$0x1] %vm191, 0.0
      %222 = vst.msk [vmem:[#allocation2 + $0x131] sm:$0x1] %vm191, 0.0
      %223 = vst.msk [vmem:[#allocation2 + $0x149] sm:$0x1] %vm191, 0.0
      %224 = vst.msk [vmem:[#allocation2 + $0x161] sm:$0x1] %vm191, 0.0
      %225 = vst.msk [vmem:[#allocation2 + $0x179] sm:$0x1] %vm191, 0.0
      %226 = vst.msk [vmem:[#allocation2 + $0x191] sm:$0x1] %vm191, 0.0
      %227 = vst.msk [vmem:[#allocation2 + $0x1a9] sm:$0x1] %vm191, 0.0
      %v228 = vld [vmem:[%s172] sm:$0xff]
      %v229 = vld [vmem:[%s172 + $0x8] sm:$0xff]
      %v230 = vld [vmem:[%s172 + $0x10] sm:$0xff]
      %v231 = vld [vmem:[%s172 + $0x18] sm:$0xff]
      %v232 = vld [vmem:[%s172 + $0x20] sm:$0xff]
      %v233 = vld [vmem:[%s172 + $0x28] sm:$0xff]
      %v234 = vld [vmem:[%s172 + $0x30] sm:$0xff]
      %v235 = vld [vmem:[%s172 + $0x38] sm:$0xff]
      %v236 = vld [vmem:[%s172 + $0x40] sm:$0xff]
      %v237 = vld [vmem:[%s172 + $0x48] sm:$0xff]
      %v238 = vld [vmem:[%s172 + $0x50] sm:$0xff]
      %v239 = vld [vmem:[%s172 + $0x58] sm:$0xff]
      %v240 = vld [vmem:[%s172 + $0x60] sm:$0xff]
      %v241 = vld [vmem:[%s172 + $0x68] sm:$0xff]
      %v242 = vld [vmem:[%s172 + $0x70] sm:$0xff]
      %v243 = vld [vmem:[%s172 + $0x78] sm:$0xff]
      %v244 = vld [vmem:[%s172 + $0x80] sm:$0xff]
      %v245 = vld [vmem:[%s172 + $0x88] sm:$0xff]
      %v246 = vld [vmem:[%s172 + $0x90] sm:$0xff]
      %v247 = vld [vmem:[%s172 + $0x98] sm:$0xff]
      %v248 = vld [vmem:[%s172 + $0xa0] sm:$0xff]
      %v249 = vld [vmem:[%s172 + $0xa8] sm:$0xff]
      %v250 = vld [vmem:[%s172 + $0xb0] sm:$0xff]
      %v251 = vld [vmem:[%s172 + $0xb8] sm:$0xff]
      %v252 = vld [vmem:[%s172 + $0xc0] sm:$0xff]
      %v253 = vld [vmem:[%s172 + $0xc8] sm:$0xff]
      %v254 = vld [vmem:[%s172 + $0xd0] sm:$0xff]
      %v255 = vld [vmem:[%s172 + $0xd8] sm:$0xff]
      %v256 = vld [vmem:[%s172 + $0xe0] sm:$0xff]
      %v257 = vld [vmem:[%s172 + $0xe8] sm:$0xff]
      %v258 = vld [vmem:[%s172 + $0xf0] sm:$0xff]
      %v259 = vld [vmem:[%s172 + $0xf8] sm:$0xff]
      %s260 = scalar_lea.vmem [#allocation2], 24
      %261 = vst.msk [vmem:[%s260 + $0x1] sm:$0xff] %vm182, %v228
      %262 = vst.msk [vmem:[%s260 + $0x9] sm:$0xff] %vm182, %v229
      %263 = vst.msk [vmem:[%s260 + $0x19] sm:$0xff] %vm182, %v230
      %264 = vst.msk [vmem:[%s260 + $0x21] sm:$0xff] %vm182, %v231
      %265 = vst.msk [vmem:[%s260 + $0x31] sm:$0xff] %vm182, %v232
      %266 = vst.msk [vmem:[%s260 + $0x39] sm:$0xff] %vm182, %v233
      %267 = vst.msk [vmem:[%s260 + $0x49] sm:$0xff] %vm182, %v234
      %268 = vst.msk [vmem:[%s260 + $0x51] sm:$0xff] %vm182, %v235
      %269 = vst.msk [vmem:[%s260 + $0x61] sm:$0xff] %vm182, %v236
      %270 = vst.msk [vmem:[%s260 + $0x69] sm:$0xff] %vm182, %v237
      %271 = vst.msk [vmem:[%s260 + $0x79] sm:$0xff] %vm182, %v238
      %272 = vst.msk [vmem:[%s260 + $0x81] sm:$0xff] %vm182, %v239
      %273 = vst.msk [vmem:[%s260 + $0x91] sm:$0xff] %vm182, %v240
      %274 = vst.msk [vmem:[%s260 + $0x99] sm:$0xff] %vm182, %v241
      %275 = vst.msk [vmem:[%s260 + $0xa9] sm:$0xff] %vm182, %v242
      %276 = vst.msk [vmem:[%s260 + $0xb1] sm:$0xff] %vm182, %v243
      %277 = vst.msk [vmem:[%s260 + $0xc1] sm:$0xff] %vm182, %v244
      %278 = vst.msk [vmem:[%s260 + $0xc9] sm:$0xff] %vm182, %v245
      %279 = vst.msk [vmem:[%s260 + $0xd9] sm:$0xff] %vm182, %v246
      %280 = vst.msk [vmem:[%s260 + $0xe1] sm:$0xff] %vm182, %v247
      %281 = vst.msk [vmem:[%s260 + $0xf1] sm:$0xff] %vm182, %v248
      %282 = vst.msk [vmem:[%s260 + $0xf9] sm:$0xff] %vm182, %v249
      %283 = vst.msk [vmem:[%s260 + $0x109] sm:$0xff] %vm182, %v250
      %284 = vst.msk [vmem:[%s260 + $0x111] sm:$0xff] %vm182, %v251
      %285 = vst.msk [vmem:[%s260 + $0x121] sm:$0xff] %vm182, %v252
      %286 = vst.msk [vmem:[%s260 + $0x129] sm:$0xff] %vm182, %v253
      %287 = vst.msk [vmem:[%s260 + $0x139] sm:$0xff] %vm182, %v254
      %288 = vst.msk [vmem:[%s260 + $0x141] sm:$0xff] %vm182, %v255
      %289 = vst.msk [vmem:[%s260 + $0x151] sm:$0xff] %vm182, %v256
      %290 = vst.msk [vmem:[%s260 + $0x159] sm:$0xff] %vm182, %v257
      %291 = vst.msk [vmem:[%s260 + $0x169] sm:$0xff] %vm182, %v258
      %292 = vst.msk [vmem:[%s260 + $0x171] sm:$0xff] %vm182, %v259
      %v293 = vld [vmem:[#allocation2] sm:$0xff]
      %v294 = vld [vmem:[#allocation2 + $0x8] sm:$0xff]
      %v295 = vld [vmem:[#allocation2 + $0x18] sm:$0xff]
      %v296 = vld [vmem:[#allocation2 + $0x20] sm:$0xff]
      %v297 = vld [vmem:[#allocation2 + $0x30] sm:$0xff]
      %v298 = vld [vmem:[#allocation2 + $0x38] sm:$0xff]
      %v299 = vld [vmem:[#allocation2 + $0x48] sm:$0xff]
      %v300 = vld [vmem:[#allocation2 + $0x50] sm:$0xff]
      %v301 = vld [vmem:[#allocation2 + $0x60] sm:$0xff]
      %v302 = vld [vmem:[#allocation2 + $0x68] sm:$0xff]
      %v303 = vld [vmem:[#allocation2 + $0x78] sm:$0xff]
      %v304 = vld [vmem:[#allocation2 + $0x80] sm:$0xff]
      %v305 = vld [vmem:[#allocation2 + $0x90] sm:$0xff]
      %v306 = vld [vmem:[#allocation2 + $0x98] sm:$0xff]
      %v307 = vld [vmem:[#allocation2 + $0xa8] sm:$0xff]
      %v308 = vld [vmem:[#allocation2 + $0xb0] sm:$0xff]
      %v309 = vld [vmem:[#allocation2 + $0xc0] sm:$0xff]
      %v310 = vld [vmem:[#allocation2 + $0xc8] sm:$0xff]
      %v311 = vld [vmem:[#allocation2 + $0xd8] sm:$0xff]
      %v312 = vld [vmem:[#allocation2 + $0xe0] sm:$0xff]
      %v313 = vld [vmem:[#allocation2 + $0xf0] sm:$0xff]
      %v314 = vld [vmem:[#allocation2 + $0xf8] sm:$0xff]
      %v315 = vld [vmem:[#allocation2 + $0x108] sm:$0xff]
      %v316 = vld [vmem:[#allocation2 + $0x110] sm:$0xff]
      %v317 = vld [vmem:[#allocation2 + $0x120] sm:$0xff]
      %v318 = vld [vmem:[#allocation2 + $0x128] sm:$0xff]
      %v319 = vld [vmem:[#allocation2 + $0x138] sm:$0xff]
      %v320 = vld [vmem:[#allocation2 + $0x140] sm:$0xff]
      %v321 = vld [vmem:[#allocation2 + $0x150] sm:$0xff]
      %v322 = vld [vmem:[#allocation2 + $0x158] sm:$0xff]
      %v323 = vld [vmem:[#allocation2 + $0x168] sm:$0xff]
      %v324 = vld [vmem:[#allocation2 + $0x170] sm:$0xff]
      %v325 = vld [vmem:[%s1] sm:$0xf]
      %v326 = vld [vmem:[#allocation2 + $0x1] sm:$0xff]
      %v327 = vld [vmem:[#allocation2 + $0x9] sm:$0xff]
      %v328 = vld [vmem:[#allocation2 + $0x19] sm:$0xff]
      %v329 = vld [vmem:[#allocation2 + $0x21] sm:$0xff]
      %v330 = vld [vmem:[#allocation2 + $0x31] sm:$0xff]
      %v331 = vld [vmem:[#allocation2 + $0x39] sm:$0xff]
      %v332 = vld [vmem:[#allocation2 + $0x49] sm:$0xff]
      %v333 = vld [vmem:[#allocation2 + $0x51] sm:$0xff]
      %v334 = vld [vmem:[#allocation2 + $0x61] sm:$0xff]
      %v335 = vld [vmem:[#allocation2 + $0x69] sm:$0xff]
      %v336 = vld [vmem:[#allocation2 + $0x79] sm:$0xff]
      %v337 = vld [vmem:[#allocation2 + $0x81] sm:$0xff]
      %v338 = vld [vmem:[#allocation2 + $0x91] sm:$0xff]
      %v339 = vld [vmem:[#allocation2 + $0x99] sm:$0xff]
      %v340 = vld [vmem:[#allocation2 + $0xa9] sm:$0xff]
      %v341 = vld [vmem:[#allocation2 + $0xb1] sm:$0xff]
      %v342 = vld [vmem:[#allocation2 + $0xc1] sm:$0xff]
      %v343 = vld [vmem:[#allocation2 + $0xc9] sm:$0xff]
      %v344 = vld [vmem:[#allocation2 + $0xd9] sm:$0xff]
      %v345 = vld [vmem:[#allocation2 + $0xe1] sm:$0xff]
      %v346 = vld [vmem:[#allocation2 + $0xf1] sm:$0xff]
      %v347 = vld [vmem:[#allocation2 + $0xf9] sm:$0xff]
      %v348 = vld [vmem:[#allocation2 + $0x109] sm:$0xff]
      %v349 = vld [vmem:[#allocation2 + $0x111] sm:$0xff]
      %v350 = vld [vmem:[#allocation2 + $0x121] sm:$0xff]
      %v351 = vld [vmem:[#allocation2 + $0x129] sm:$0xff]
      %v352 = vld [vmem:[#allocation2 + $0x139] sm:$0xff]
      %v353 = vld [vmem:[#allocation2 + $0x141] sm:$0xff]
      %v354 = vld [vmem:[#allocation2 + $0x151] sm:$0xff]
      %v355 = vld [vmem:[#allocation2 + $0x159] sm:$0xff]
      %v356 = vld [vmem:[#allocation2 + $0x169] sm:$0xff]
      %v357 = vld [vmem:[#allocation2 + $0x171] sm:$0xff]
      %s358 = scalar_lea.vmem %s1, 4
      %v359 = vld [vmem:[%s358] sm:$0xf]
      %v361 = vsel %vm182, %v326, 0
      %v364 = vsel %vm182, %v327, 0
      %v367 = vsel %vm182, %v328, 0
      %v370 = vsel %vm182, %v329, 0
      %v373 = vsel %vm182, %v330, 0
      %v376 = vsel %vm182, %v331, 0
      %v379 = vsel %vm182, %v332, 0
      %v382 = vsel %vm182, %v333, 0
      %v385 = vsel %vm182, %v334, 0
      %v388 = vsel %vm182, %v335, 0
      %v391 = vsel %vm182, %v336, 0
      %v394 = vsel %vm182, %v337, 0
      %v397 = vsel %vm182, %v338, 0
      %v400 = vsel %vm182, %v339, 0
      %v403 = vsel %vm182, %v340, 0
      %v406 = vsel %vm182, %v341, 0
      %v409 = vsel %vm182, %v342, 0
      %v412 = vsel %vm182, %v343, 0
      %v415 = vsel %vm182, %v344, 0
      %v418 = vsel %vm182, %v345, 0
      %v421 = vsel %vm182, %v346, 0
      %v424 = vsel %vm182, %v347, 0
      %v427 = vsel %vm182, %v348, 0
      %v430 = vsel %vm182, %v349, 0
      %v433 = vsel %vm182, %v350, 0
      %v436 = vsel %vm182, %v351, 0
      %v439 = vsel %vm182, %v352, 0
      %v442 = vsel %vm182, %v353, 0
      %v445 = vsel %vm182, %v354, 0
      %v448 = vsel %vm182, %v355, 0
      %v451 = vsel %vm182, %v356, 0
      %v454 = vsel %vm182, %v357, 0
      %vm456 = vcmask 1043456
      %v458 = vsel %vm456, %v359, 0
      %460 = vmatpush.msra.mxu0 0.0
      %461 = vmatpush.msra.mxu0 0.0
      %462 = vmatpush.msra.mxu0 0.0
      %463 = vmatpush.msra.mxu0 0.0
      %464 = vmatpush.msra.mxu0 0.0
      %465 = vmatpush.msra.mxu0 0.0
      %466 = vmatpush.msra.mxu0 0.0
      %467 = vmatpush.msra.mxu0 0.0
      %468 = vmatpush.msra.mxu0 0.0
      %469 = vmatpush.msra.mxu0 0.0
      %470 = vmatpush.msra.mxu0 0.0
      %471 = vmatpush.msra.mxu0 0.0
      %472 = vmatpush.msra.mxu0 0.0
      %473 = vmatpush.msra.mxu0 0.0
      %474 = vmatpush.msra.mxu0 0.0
      %475 = vmatpush.msra.mxu0 %v458
      %476 = vmatmul.f32.gmra.mxu0 %v361
      %v477 = vpop.f32.mrf.mxu0
      %v478 = vadd.f32 0.0, %v477
      %479 = vmatmul.f32.gmra.mxu0 %v364
      %v480 = vpop.f32.mrf.mxu0
      %v481 = vadd.f32 0.0, %v480
      %482 = vmatmul.f32.gmra.mxu0 %v367
      %v483 = vpop.f32.mrf.mxu0
      %v484 = vadd.f32 0.0, %v483
      %485 = vmatmul.f32.gmra.mxu0 %v370
      %v486 = vpop.f32.mrf.mxu0
      %v487 = vadd.f32 0.0, %v486
      %488 = vmatmul.f32.gmra.mxu0 %v373
      %v489 = vpop.f32.mrf.mxu0
      %v490 = vadd.f32 0.0, %v489
      %491 = vmatmul.f32.gmra.mxu0 %v376
      %v492 = vpop.f32.mrf.mxu0
      %v493 = vadd.f32 0.0, %v492
      %494 = vmatmul.f32.gmra.mxu0 %v379
      %v495 = vpop.f32.mrf.mxu0
      %v496 = vadd.f32 0.0, %v495
      %497 = vmatmul.f32.gmra.mxu0 %v382
      %v498 = vpop.f32.mrf.mxu0
      %v499 = vadd.f32 0.0, %v498
      %500 = vmatmul.f32.gmra.mxu0 %v385
      %v501 = vpop.f32.mrf.mxu0
      %v502 = vadd.f32 0.0, %v501
      %503 = vmatmul.f32.gmra.mxu0 %v388
      %v504 = vpop.f32.mrf.mxu0
      %v505 = vadd.f32 0.0, %v504
      %506 = vmatmul.f32.gmra.mxu0 %v391
      %v507 = vpop.f32.mrf.mxu0
      %v508 = vadd.f32 0.0, %v507
      %509 = vmatmul.f32.gmra.mxu0 %v394
      %v510 = vpop.f32.mrf.mxu0
      %v511 = vadd.f32 0.0, %v510
      %512 = vmatmul.f32.gmra.mxu0 %v397
      %v513 = vpop.f32.mrf.mxu0
      %v514 = vadd.f32 0.0, %v513
      %515 = vmatmul.f32.gmra.mxu0 %v400
      %v516 = vpop.f32.mrf.mxu0
      %v517 = vadd.f32 0.0, %v516
      %518 = vmatmul.f32.gmra.mxu0 %v403
      %v519 = vpop.f32.mrf.mxu0
      %v520 = vadd.f32 0.0, %v519
      %521 = vmatmul.f32.gmra.mxu0 %v406
      %v522 = vpop.f32.mrf.mxu0
      %v523 = vadd.f32 0.0, %v522
      %524 = vmatmul.f32.gmra.mxu0 %v409
      %v525 = vpop.f32.mrf.mxu0
      %v526 = vadd.f32 0.0, %v525
      %527 = vmatmul.f32.gmra.mxu0 %v412
      %v528 = vpop.f32.mrf.mxu0
      %v529 = vadd.f32 0.0, %v528
      %530 = vmatmul.f32.gmra.mxu0 %v415
      %v531 = vpop.f32.mrf.mxu0
      %v532 = vadd.f32 0.0, %v531
      %533 = vmatmul.f32.gmra.mxu0 %v418
      %v534 = vpop.f32.mrf.mxu0
      %v535 = vadd.f32 0.0, %v534
      %536 = vmatmul.f32.gmra.mxu0 %v421
      %v537 = vpop.f32.mrf.mxu0
      %v538 = vadd.f32 0.0, %v537
      %539 = vmatmul.f32.gmra.mxu0 %v424
      %v540 = vpop.f32.mrf.mxu0
      %v541 = vadd.f32 0.0, %v540
      %542 = vmatmul.f32.gmra.mxu0 %v427
      %v543 = vpop.f32.mrf.mxu0
      %v544 = vadd.f32 0.0, %v543
      %545 = vmatmul.f32.gmra.mxu0 %v430
      %v546 = vpop.f32.mrf.mxu0
      %v547 = vadd.f32 0.0, %v546
      %548 = vmatmul.f32.gmra.mxu0 %v433
      %v549 = vpop.f32.mrf.mxu0
      %v550 = vadd.f32 0.0, %v549
      %551 = vmatmul.f32.gmra.mxu0 %v436
      %v552 = vpop.f32.mrf.mxu0
      %v553 = vadd.f32 0.0, %v552
      %554 = vmatmul.f32.gmra.mxu0 %v439
      %v555 = vpop.f32.mrf.mxu0
      %v556 = vadd.f32 0.0, %v555
      %557 = vmatmul.f32.gmra.mxu0 %v442
      %v558 = vpop.f32.mrf.mxu0
      %v559 = vadd.f32 0.0, %v558
      %560 = vmatmul.f32.gmra.mxu0 %v445
      %v561 = vpop.f32.mrf.mxu0
      %v562 = vadd.f32 0.0, %v561
      %563 = vmatmul.f32.gmra.mxu0 %v448
      %v564 = vpop.f32.mrf.mxu0
      %v565 = vadd.f32 0.0, %v564
      %566 = vmatmul.f32.gmra.mxu0 %v451
      %v567 = vpop.f32.mrf.mxu0
      %v568 = vadd.f32 0.0, %v567
      %569 = vmatmul.f32.gmra.mxu0 %v454
      %v570 = vpop.f32.mrf.mxu0
      %v571 = vadd.f32 0.0, %v570
      %572 = vdwg.mxu0
      %v574 = vsel %vm182, %v293, 0
      %v577 = vsel %vm182, %v294, 0
      %v580 = vsel %vm182, %v295, 0
      %v583 = vsel %vm182, %v296, 0
      %v586 = vsel %vm182, %v297, 0
      %v589 = vsel %vm182, %v298, 0
      %v592 = vsel %vm182, %v299, 0
      %v595 = vsel %vm182, %v300, 0
      %v598 = vsel %vm182, %v301, 0
      %v601 = vsel %vm182, %v302, 0
      %v604 = vsel %vm182, %v303, 0
      %v607 = vsel %vm182, %v304, 0
      %v610 = vsel %vm182, %v305, 0
      %v613 = vsel %vm182, %v306, 0
      %v616 = vsel %vm182, %v307, 0
      %v619 = vsel %vm182, %v308, 0
      %v622 = vsel %vm182, %v309, 0
      %v625 = vsel %vm182, %v310, 0
      %v628 = vsel %vm182, %v311, 0
      %v631 = vsel %vm182, %v312, 0
      %v634 = vsel %vm182, %v313, 0
      %v637 = vsel %vm182, %v314, 0
      %v640 = vsel %vm182, %v315, 0
      %v643 = vsel %vm182, %v316, 0
      %v646 = vsel %vm182, %v317, 0
      %v649 = vsel %vm182, %v318, 0
      %v652 = vsel %vm182, %v319, 0
      %v655 = vsel %vm182, %v320, 0
      %v658 = vsel %vm182, %v321, 0
      %v661 = vsel %vm182, %v322, 0
      %v664 = vsel %vm182, %v323, 0
      %v667 = vsel %vm182, %v324, 0
      %v670 = vsel %vm456, %v325, 0
      %672 = vmatpush.msra.mxu0 0.0
      %673 = vmatpush.msra.mxu0 0.0
      %674 = vmatpush.msra.mxu0 0.0
      %675 = vmatpush.msra.mxu0 0.0
      %676 = vmatpush.msra.mxu0 0.0
      %677 = vmatpush.msra.mxu0 0.0
      %678 = vmatpush.msra.mxu0 0.0
      %679 = vmatpush.msra.mxu0 0.0
      %680 = vmatpush.msra.mxu0 0.0
      %681 = vmatpush.msra.mxu0 0.0
      %682 = vmatpush.msra.mxu0 0.0
      %683 = vmatpush.msra.mxu0 0.0
      %684 = vmatpush.msra.mxu0 0.0
      %685 = vmatpush.msra.mxu0 0.0
      %686 = vmatpush.msra.mxu0 0.0
      %687 = vmatpush.msra.mxu0 %v670
      %688 = vmatmul.f32.gmra.mxu0 %v574
      %v689 = vpop.f32.mrf.mxu0
      %v690 = vadd.f32 %v478, %v689
      %691 = vmatmul.f32.gmra.mxu0 %v577
      %v692 = vpop.f32.mrf.mxu0
      %v693 = vadd.f32 %v481, %v692
      %694 = vmatmul.f32.gmra.mxu0 %v580
      %v695 = vpop.f32.mrf.mxu0
      %v696 = vadd.f32 %v484, %v695
      %697 = vmatmul.f32.gmra.mxu0 %v583
      %v698 = vpop.f32.mrf.mxu0
      %v699 = vadd.f32 %v487, %v698
      %700 = vmatmul.f32.gmra.mxu0 %v586
      %v701 = vpop.f32.mrf.mxu0
      %v702 = vadd.f32 %v490, %v701
      %703 = vmatmul.f32.gmra.mxu0 %v589
      %v704 = vpop.f32.mrf.mxu0
      %v705 = vadd.f32 %v493, %v704
      %706 = vmatmul.f32.gmra.mxu0 %v592
      %v707 = vpop.f32.mrf.mxu0
      %v708 = vadd.f32 %v496, %v707
      %709 = vmatmul.f32.gmra.mxu0 %v595
      %v710 = vpop.f32.mrf.mxu0
      %v711 = vadd.f32 %v499, %v710
      %712 = vmatmul.f32.gmra.mxu0 %v598
      %v713 = vpop.f32.mrf.mxu0
      %v714 = vadd.f32 %v502, %v713
      %715 = vmatmul.f32.gmra.mxu0 %v601
      %v716 = vpop.f32.mrf.mxu0
      %v717 = vadd.f32 %v505, %v716
      %718 = vmatmul.f32.gmra.mxu0 %v604
      %v719 = vpop.f32.mrf.mxu0
      %v720 = vadd.f32 %v508, %v719
      %721 = vmatmul.f32.gmra.mxu0 %v607
      %v722 = vpop.f32.mrf.mxu0
      %v723 = vadd.f32 %v511, %v722
      %724 = vmatmul.f32.gmra.mxu0 %v610
      %v725 = vpop.f32.mrf.mxu0
      %v726 = vadd.f32 %v514, %v725
      %727 = vmatmul.f32.gmra.mxu0 %v613
      %v728 = vpop.f32.mrf.mxu0
      %v729 = vadd.f32 %v517, %v728
      %730 = vmatmul.f32.gmra.mxu0 %v616
      %v731 = vpop.f32.mrf.mxu0
      %v732 = vadd.f32 %v520, %v731
      %733 = vmatmul.f32.gmra.mxu0 %v619
      %v734 = vpop.f32.mrf.mxu0
      %v735 = vadd.f32 %v523, %v734
      %736 = vmatmul.f32.gmra.mxu0 %v622
      %v737 = vpop.f32.mrf.mxu0
      %v738 = vadd.f32 %v526, %v737
      %739 = vmatmul.f32.gmra.mxu0 %v625
      %v740 = vpop.f32.mrf.mxu0
      %v741 = vadd.f32 %v529, %v740
      %742 = vmatmul.f32.gmra.mxu0 %v628
      %v743 = vpop.f32.mrf.mxu0
      %v744 = vadd.f32 %v532, %v743
      %745 = vmatmul.f32.gmra.mxu0 %v631
      %v746 = vpop.f32.mrf.mxu0
      %v747 = vadd.f32 %v535, %v746
      %748 = vmatmul.f32.gmra.mxu0 %v634
      %v749 = vpop.f32.mrf.mxu0
      %v750 = vadd.f32 %v538, %v749
      %751 = vmatmul.f32.gmra.mxu0 %v637
      %v752 = vpop.f32.mrf.mxu0
      %v753 = vadd.f32 %v541, %v752
      %754 = vmatmul.f32.gmra.mxu0 %v640
      %v755 = vpop.f32.mrf.mxu0
      %v756 = vadd.f32 %v544, %v755
      %757 = vmatmul.f32.gmra.mxu0 %v643
      %v758 = vpop.f32.mrf.mxu0
      %v759 = vadd.f32 %v547, %v758
      %760 = vmatmul.f32.gmra.mxu0 %v646
      %v761 = vpop.f32.mrf.mxu0
      %v762 = vadd.f32 %v550, %v761
      %763 = vmatmul.f32.gmra.mxu0 %v649
      %v764 = vpop.f32.mrf.mxu0
      %v765 = vadd.f32 %v553, %v764
      %766 = vmatmul.f32.gmra.mxu0 %v652
      %v767 = vpop.f32.mrf.mxu0
      %v768 = vadd.f32 %v556, %v767
      %769 = vmatmul.f32.gmra.mxu0 %v655
      %v770 = vpop.f32.mrf.mxu0
      %v771 = vadd.f32 %v559, %v770
      %772 = vmatmul.f32.gmra.mxu0 %v658
      %v773 = vpop.f32.mrf.mxu0
      %v774 = vadd.f32 %v562, %v773
      %775 = vmatmul.f32.gmra.mxu0 %v661
      %v776 = vpop.f32.mrf.mxu0
      %v777 = vadd.f32 %v565, %v776
      %778 = vmatmul.f32.gmra.mxu0 %v664
      %v779 = vpop.f32.mrf.mxu0
      %v780 = vadd.f32 %v568, %v779
      %781 = vmatmul.f32.gmra.mxu0 %v667
      %v782 = vpop.f32.mrf.mxu0
      %v783 = vadd.f32 %v571, %v782
      %784 = vdwg.mxu0
      %v785 = vld [vmem:[#allocation2 + $0x2] sm:$0xff]
      %v786 = vld [vmem:[#allocation2 + $0xa] sm:$0xff]
      %v787 = vld [vmem:[#allocation2 + $0x1a] sm:$0xff]
      %v788 = vld [vmem:[#allocation2 + $0x22] sm:$0xff]
      %v789 = vld [vmem:[#allocation2 + $0x32] sm:$0xff]
      %v790 = vld [vmem:[#allocation2 + $0x3a] sm:$0xff]
      %v791 = vld [vmem:[#allocation2 + $0x4a] sm:$0xff]
      %v792 = vld [vmem:[#allocation2 + $0x52] sm:$0xff]
      %v793 = vld [vmem:[#allocation2 + $0x62] sm:$0xff]
      %v794 = vld [vmem:[#allocation2 + $0x6a] sm:$0xff]
      %v795 = vld [vmem:[#allocation2 + $0x7a] sm:$0xff]
      %v796 = vld [vmem:[#allocation2 + $0x82] sm:$0xff]
      %v797 = vld [vmem:[#allocation2 + $0x92] sm:$0xff]
      %v798 = vld [vmem:[#allocation2 + $0x9a] sm:$0xff]
      %v799 = vld [vmem:[#allocation2 + $0xaa] sm:$0xff]
      %v800 = vld [vmem:[#allocation2 + $0xb2] sm:$0xff]
      %v801 = vld [vmem:[#allocation2 + $0xc2] sm:$0xff]
      %v802 = vld [vmem:[#allocation2 + $0xca] sm:$0xff]
      %v803 = vld [vmem:[#allocation2 + $0xda] sm:$0xff]
      %v804 = vld [vmem:[#allocation2 + $0xe2] sm:$0xff]
      %v805 = vld [vmem:[#allocation2 + $0xf2] sm:$0xff]
      %v806 = vld [vmem:[#allocation2 + $0xfa] sm:$0xff]
      %v807 = vld [vmem:[#allocation2 + $0x10a] sm:$0xff]
      %v808 = vld [vmem:[#allocation2 + $0x112] sm:$0xff]
      %v809 = vld [vmem:[#allocation2 + $0x122] sm:$0xff]
      %v810 = vld [vmem:[#allocation2 + $0x12a] sm:$0xff]
      %v811 = vld [vmem:[#allocation2 + $0x13a] sm:$0xff]
      %v812 = vld [vmem:[#allocation2 + $0x142] sm:$0xff]
      %v813 = vld [vmem:[#allocation2 + $0x152] sm:$0xff]
      %v814 = vld [vmem:[#allocation2 + $0x15a] sm:$0xff]
      %v815 = vld [vmem:[#allocation2 + $0x16a] sm:$0xff]
      %v816 = vld [vmem:[#allocation2 + $0x172] sm:$0xff]
      %s817 = scalar_lea.vmem %s1, 8
      %v818 = vld [vmem:[%s817] sm:$0xf]
      %v820 = vsel %vm182, %v785, 0
      %v823 = vsel %vm182, %v786, 0
      %v826 = vsel %vm182, %v787, 0
      %v829 = vsel %vm182, %v788, 0
      %v832 = vsel %vm182, %v789, 0
      %v835 = vsel %vm182, %v790, 0
      %v838 = vsel %vm182, %v791, 0
      %v841 = vsel %vm182, %v792, 0
      %v844 = vsel %vm182, %v793, 0
      %v847 = vsel %vm182, %v794, 0
      %v850 = vsel %vm182, %v795, 0
      %v853 = vsel %vm182, %v796, 0
      %v856 = vsel %vm182, %v797, 0
      %v859 = vsel %vm182, %v798, 0
      %v862 = vsel %vm182, %v799, 0
      %v865 = vsel %vm182, %v800, 0
      %v868 = vsel %vm182, %v801, 0
      %v871 = vsel %vm182, %v802, 0
      %v874 = vsel %vm182, %v803, 0
      %v877 = vsel %vm182, %v804, 0
      %v880 = vsel %vm182, %v805, 0
      %v883 = vsel %vm182, %v806, 0
      %v886 = vsel %vm182, %v807, 0
      %v889 = vsel %vm182, %v808, 0
      %v892 = vsel %vm182, %v809, 0
      %v895 = vsel %vm182, %v810, 0
      %v898 = vsel %vm182, %v811, 0
      %v901 = vsel %vm182, %v812, 0
      %v904 = vsel %vm182, %v813, 0
      %v907 = vsel %vm182, %v814, 0
      %v910 = vsel %vm182, %v815, 0
      %v913 = vsel %vm182, %v816, 0
      %v916 = vsel %vm456, %v818, 0
      %918 = vmatpush.msra.mxu0 0.0
      %919 = vmatpush.msra.mxu0 0.0
      %920 = vmatpush.msra.mxu0 0.0
      %921 = vmatpush.msra.mxu0 0.0
      %922 = vmatpush.msra.mxu0 0.0
      %923 = vmatpush.msra.mxu0 0.0
      %924 = vmatpush.msra.mxu0 0.0
      %925 = vmatpush.msra.mxu0 0.0
      %926 = vmatpush.msra.mxu0 0.0
      %927 = vmatpush.msra.mxu0 0.0
      %928 = vmatpush.msra.mxu0 0.0
      %929 = vmatpush.msra.mxu0 0.0
      %930 = vmatpush.msra.mxu0 0.0
      %931 = vmatpush.msra.mxu0 0.0
      %932 = vmatpush.msra.mxu0 0.0
      %933 = vmatpush.msra.mxu0 %v916
      %934 = vmatmul.f32.gmra.mxu0 %v820
      %v935 = vpop.f32.mrf.mxu0
      %v936 = vadd.f32 0.0, %v935
      %937 = vmatmul.f32.gmra.mxu0 %v823
      %v938 = vpop.f32.mrf.mxu0
      %v939 = vadd.f32 0.0, %v938
      %940 = vmatmul.f32.gmra.mxu0 %v826
      %v941 = vpop.f32.mrf.mxu0
      %v942 = vadd.f32 0.0, %v941
      %943 = vmatmul.f32.gmra.mxu0 %v829
      %v944 = vpop.f32.mrf.mxu0
      %v945 = vadd.f32 0.0, %v944
      %946 = vmatmul.f32.gmra.mxu0 %v832
      %v947 = vpop.f32.mrf.mxu0
      %v948 = vadd.f32 0.0, %v947
      %949 = vmatmul.f32.gmra.mxu0 %v835
      %v950 = vpop.f32.mrf.mxu0
      %v951 = vadd.f32 0.0, %v950
      %952 = vmatmul.f32.gmra.mxu0 %v838
      %v953 = vpop.f32.mrf.mxu0
      %v954 = vadd.f32 0.0, %v953
      %955 = vmatmul.f32.gmra.mxu0 %v841
      %v956 = vpop.f32.mrf.mxu0
      %v957 = vadd.f32 0.0, %v956
      %958 = vmatmul.f32.gmra.mxu0 %v844
      %v959 = vpop.f32.mrf.mxu0
      %v960 = vadd.f32 0.0, %v959
      %961 = vmatmul.f32.gmra.mxu0 %v847
      %v962 = vpop.f32.mrf.mxu0
      %v963 = vadd.f32 0.0, %v962
      %964 = vmatmul.f32.gmra.mxu0 %v850
      %v965 = vpop.f32.mrf.mxu0
      %v966 = vadd.f32 0.0, %v965
      %967 = vmatmul.f32.gmra.mxu0 %v853
      %v968 = vpop.f32.mrf.mxu0
      %v969 = vadd.f32 0.0, %v968
      %970 = vmatmul.f32.gmra.mxu0 %v856
      %v971 = vpop.f32.mrf.mxu0
      %v972 = vadd.f32 0.0, %v971
      %973 = vmatmul.f32.gmra.mxu0 %v859
      %v974 = vpop.f32.mrf.mxu0
      %v975 = vadd.f32 0.0, %v974
      %976 = vmatmul.f32.gmra.mxu0 %v862
      %v977 = vpop.f32.mrf.mxu0
      %v978 = vadd.f32 0.0, %v977
      %979 = vmatmul.f32.gmra.mxu0 %v865
      %v980 = vpop.f32.mrf.mxu0
      %v981 = vadd.f32 0.0, %v980
      %982 = vmatmul.f32.gmra.mxu0 %v868
      %v983 = vpop.f32.mrf.mxu0
      %v984 = vadd.f32 0.0, %v983
      %985 = vmatmul.f32.gmra.mxu0 %v871
      %v986 = vpop.f32.mrf.mxu0
      %v987 = vadd.f32 0.0, %v986
      %988 = vmatmul.f32.gmra.mxu0 %v874
      %v989 = vpop.f32.mrf.mxu0
      %v990 = vadd.f32 0.0, %v989
      %991 = vmatmul.f32.gmra.mxu0 %v877
      %v992 = vpop.f32.mrf.mxu0
      %v993 = vadd.f32 0.0, %v992
      %994 = vmatmul.f32.gmra.mxu0 %v880
      %v995 = vpop.f32.mrf.mxu0
      %v996 = vadd.f32 0.0, %v995
      %997 = vmatmul.f32.gmra.mxu0 %v883
      %v998 = vpop.f32.mrf.mxu0
      %v999 = vadd.f32 0.0, %v998
      %1000 = vmatmul.f32.gmra.mxu0 %v886
      %v1001 = vpop.f32.mrf.mxu0
      %v1002 = vadd.f32 0.0, %v1001
      %1003 = vmatmul.f32.gmra.mxu0 %v889
      %v1004 = vpop.f32.mrf.mxu0
      %v1005 = vadd.f32 0.0, %v1004
      %1006 = vmatmul.f32.gmra.mxu0 %v892
      %v1007 = vpop.f32.mrf.mxu0
      %v1008 = vadd.f32 0.0, %v1007
      %1009 = vmatmul.f32.gmra.mxu0 %v895
      %v1010 = vpop.f32.mrf.mxu0
      %v1011 = vadd.f32 0.0, %v1010
      %1012 = vmatmul.f32.gmra.mxu0 %v898
      %v1013 = vpop.f32.mrf.mxu0
      %v1014 = vadd.f32 0.0, %v1013
      %1015 = vmatmul.f32.gmra.mxu0 %v901
      %v1016 = vpop.f32.mrf.mxu0
      %v1017 = vadd.f32 0.0, %v1016
      %1018 = vmatmul.f32.gmra.mxu0 %v904
      %v1019 = vpop.f32.mrf.mxu0
      %v1020 = vadd.f32 0.0, %v1019
      %1021 = vmatmul.f32.gmra.mxu0 %v907
      %v1022 = vpop.f32.mrf.mxu0
      %v1023 = vadd.f32 0.0, %v1022
      %1024 = vmatmul.f32.gmra.mxu0 %v910
      %v1025 = vpop.f32.mrf.mxu0
      %v1026 = vadd.f32 0.0, %v1025
      %1027 = vmatmul.f32.gmra.mxu0 %v913
      %v1028 = vpop.f32.mrf.mxu0
      %v1029 = vadd.f32 0.0, %v1028
      %1030 = vdwg.mxu0
      %v1031 = vadd.f32 %v690, %v936
      %v1032 = vadd.f32 %v693, %v939
      %v1033 = vadd.f32 %v696, %v942
      %v1034 = vadd.f32 %v699, %v945
      %v1035 = vadd.f32 %v702, %v948
      %v1036 = vadd.f32 %v705, %v951
      %v1037 = vadd.f32 %v708, %v954
      %v1038 = vadd.f32 %v711, %v957
      %v1039 = vadd.f32 %v714, %v960
      %v1040 = vadd.f32 %v717, %v963
      %v1041 = vadd.f32 %v720, %v966
      %v1042 = vadd.f32 %v723, %v969
      %v1043 = vadd.f32 %v726, %v972
      %v1044 = vadd.f32 %v729, %v975
      %v1045 = vadd.f32 %v732, %v978
      %v1046 = vadd.f32 %v735, %v981
      %v1047 = vadd.f32 %v738, %v984
      %v1048 = vadd.f32 %v741, %v987
      %v1049 = vadd.f32 %v744, %v990
      %v1050 = vadd.f32 %v747, %v993
      %v1051 = vadd.f32 %v750, %v996
      %v1052 = vadd.f32 %v753, %v999
      %v1053 = vadd.f32 %v756, %v1002
      %v1054 = vadd.f32 %v759, %v1005
      %v1055 = vadd.f32 %v762, %v1008
      %v1056 = vadd.f32 %v765, %v1011
      %v1057 = vadd.f32 %v768, %v1014
      %v1058 = vadd.f32 %v771, %v1017
      %v1059 = vadd.f32 %v774, %v1020
      %v1060 = vadd.f32 %v777, %v1023
      %v1061 = vadd.f32 %v780, %v1026
      %v1062 = vadd.f32 %v783, %v1029
      %v1063 = vld [vmem:[%s260] sm:$0xff]
      %v1064 = vld [vmem:[%s260 + $0x8] sm:$0xff]
      %v1065 = vld [vmem:[%s260 + $0x18] sm:$0xff]
      %v1066 = vld [vmem:[%s260 + $0x20] sm:$0xff]
      %v1067 = vld [vmem:[%s260 + $0x30] sm:$0xff]
      %v1068 = vld [vmem:[%s260 + $0x38] sm:$0xff]
      %v1069 = vld [vmem:[%s260 + $0x48] sm:$0xff]
      %v1070 = vld [vmem:[%s260 + $0x50] sm:$0xff]
      %v1071 = vld [vmem:[%s260 + $0x60] sm:$0xff]
      %v1072 = vld [vmem:[%s260 + $0x68] sm:$0xff]
      %v1073 = vld [vmem:[%s260 + $0x78] sm:$0xff]
      %v1074 = vld [vmem:[%s260 + $0x80] sm:$0xff]
      %v1075 = vld [vmem:[%s260 + $0x90] sm:$0xff]
      %v1076 = vld [vmem:[%s260 + $0x98] sm:$0xff]
      %v1077 = vld [vmem:[%s260 + $0xa8] sm:$0xff]
      %v1078 = vld [vmem:[%s260 + $0xb0] sm:$0xff]
      %v1079 = vld [vmem:[%s260 + $0xc0] sm:$0xff]
      %v1080 = vld [vmem:[%s260 + $0xc8] sm:$0xff]
      %v1081 = vld [vmem:[%s260 + $0xd8] sm:$0xff]
      %v1082 = vld [vmem:[%s260 + $0xe0] sm:$0xff]
      %v1083 = vld [vmem:[%s260 + $0xf0] sm:$0xff]
      %v1084 = vld [vmem:[%s260 + $0xf8] sm:$0xff]
      %v1085 = vld [vmem:[%s260 + $0x108] sm:$0xff]
      %v1086 = vld [vmem:[%s260 + $0x110] sm:$0xff]
      %v1087 = vld [vmem:[%s260 + $0x120] sm:$0xff]
      %v1088 = vld [vmem:[%s260 + $0x128] sm:$0xff]
      %v1089 = vld [vmem:[%s260 + $0x138] sm:$0xff]
      %v1090 = vld [vmem:[%s260 + $0x140] sm:$0xff]
      %v1091 = vld [vmem:[%s260 + $0x150] sm:$0xff]
      %v1092 = vld [vmem:[%s260 + $0x158] sm:$0xff]
      %v1093 = vld [vmem:[%s260 + $0x168] sm:$0xff]
      %v1094 = vld [vmem:[%s260 + $0x170] sm:$0xff]
      %s1095 = scalar_lea.vmem %s1, 12
      %v1096 = vld [vmem:[%s1095] sm:$0xf]
      %v1098 = vsel %vm182, %v1063, 0
      %v1101 = vsel %vm182, %v1064, 0
      %v1104 = vsel %vm182, %v1065, 0
      %v1107 = vsel %vm182, %v1066, 0
      %v1110 = vsel %vm182, %v1067, 0
      %v1113 = vsel %vm182, %v1068, 0
      %v1116 = vsel %vm182, %v1069, 0
      %v1119 = vsel %vm182, %v1070, 0
      %v1122 = vsel %vm182, %v1071, 0
      %v1125 = vsel %vm182, %v1072, 0
      %v1128 = vsel %vm182, %v1073, 0
      %v1131 = vsel %vm182, %v1074, 0
      %v1134 = vsel %vm182, %v1075, 0
      %v1137 = vsel %vm182, %v1076, 0
      %v1140 = vsel %vm182, %v1077, 0
      %v1143 = vsel %vm182, %v1078, 0
      %v1146 = vsel %vm182, %v1079, 0
      %v1149 = vsel %vm182, %v1080, 0
      %v1152 = vsel %vm182, %v1081, 0
      %v1155 = vsel %vm182, %v1082, 0
      %v1158 = vsel %vm182, %v1083, 0
      %v1161 = vsel %vm182, %v1084, 0
      %v1164 = vsel %vm182, %v1085, 0
      %v1167 = vsel %vm182, %v1086, 0
      %v1170 = vsel %vm182, %v1087, 0
      %v1173 = vsel %vm182, %v1088, 0
      %v1176 = vsel %vm182, %v1089, 0
      %v1179 = vsel %vm182, %v1090, 0
      %v1182 = vsel %vm182, %v1091, 0
      %v1185 = vsel %vm182, %v1092, 0
      %v1188 = vsel %vm182, %v1093, 0
      %v1191 = vsel %vm182, %v1094, 0
      %v1194 = vsel %vm456, %v1096, 0
      %1196 = vmatpush.msra.mxu0 0.0
      %1197 = vmatpush.msra.mxu0 0.0
      %1198 = vmatpush.msra.mxu0 0.0
      %1199 = vmatpush.msra.mxu0 0.0
      %1200 = vmatpush.msra.mxu0 0.0
      %1201 = vmatpush.msra.mxu0 0.0
      %1202 = vmatpush.msra.mxu0 0.0
      %1203 = vmatpush.msra.mxu0 0.0
      %1204 = vmatpush.msra.mxu0 0.0
      %1205 = vmatpush.msra.mxu0 0.0
      %1206 = vmatpush.msra.mxu0 0.0
      %1207 = vmatpush.msra.mxu0 0.0
      %1208 = vmatpush.msra.mxu0 0.0
      %1209 = vmatpush.msra.mxu0 0.0
      %1210 = vmatpush.msra.mxu0 0.0
      %1211 = vmatpush.msra.mxu0 %v1194
      %1212 = vmatmul.f32.gmra.mxu0 %v1098
      %v1213 = vpop.f32.mrf.mxu0
      %v1214 = vadd.f32 0.0, %v1213
      %1215 = vmatmul.f32.gmra.mxu0 %v1101
      %v1216 = vpop.f32.mrf.mxu0
      %v1217 = vadd.f32 0.0, %v1216
      %1218 = vmatmul.f32.gmra.mxu0 %v1104
      %v1219 = vpop.f32.mrf.mxu0
      %v1220 = vadd.f32 0.0, %v1219
      %1221 = vmatmul.f32.gmra.mxu0 %v1107
      %v1222 = vpop.f32.mrf.mxu0
      %v1223 = vadd.f32 0.0, %v1222
      %1224 = vmatmul.f32.gmra.mxu0 %v1110
      %v1225 = vpop.f32.mrf.mxu0
      %v1226 = vadd.f32 0.0, %v1225
      %1227 = vmatmul.f32.gmra.mxu0 %v1113
      %v1228 = vpop.f32.mrf.mxu0
      %v1229 = vadd.f32 0.0, %v1228
      %1230 = vmatmul.f32.gmra.mxu0 %v1116
      %v1231 = vpop.f32.mrf.mxu0
      %v1232 = vadd.f32 0.0, %v1231
      %1233 = vmatmul.f32.gmra.mxu0 %v1119
      %v1234 = vpop.f32.mrf.mxu0
      %v1235 = vadd.f32 0.0, %v1234
      %1236 = vmatmul.f32.gmra.mxu0 %v1122
      %v1237 = vpop.f32.mrf.mxu0
      %v1238 = vadd.f32 0.0, %v1237
      %1239 = vmatmul.f32.gmra.mxu0 %v1125
      %v1240 = vpop.f32.mrf.mxu0
      %v1241 = vadd.f32 0.0, %v1240
      %1242 = vmatmul.f32.gmra.mxu0 %v1128
      %v1243 = vpop.f32.mrf.mxu0
      %v1244 = vadd.f32 0.0, %v1243
      %1245 = vmatmul.f32.gmra.mxu0 %v1131
      %v1246 = vpop.f32.mrf.mxu0
      %v1247 = vadd.f32 0.0, %v1246
      %1248 = vmatmul.f32.gmra.mxu0 %v1134
      %v1249 = vpop.f32.mrf.mxu0
      %v1250 = vadd.f32 0.0, %v1249
      %1251 = vmatmul.f32.gmra.mxu0 %v1137
      %v1252 = vpop.f32.mrf.mxu0
      %v1253 = vadd.f32 0.0, %v1252
      %1254 = vmatmul.f32.gmra.mxu0 %v1140
      %v1255 = vpop.f32.mrf.mxu0
      %v1256 = vadd.f32 0.0, %v1255
      %1257 = vmatmul.f32.gmra.mxu0 %v1143
      %v1258 = vpop.f32.mrf.mxu0
      %v1259 = vadd.f32 0.0, %v1258
      %1260 = vmatmul.f32.gmra.mxu0 %v1146
      %v1261 = vpop.f32.mrf.mxu0
      %v1262 = vadd.f32 0.0, %v1261
      %1263 = vmatmul.f32.gmra.mxu0 %v1149
      %v1264 = vpop.f32.mrf.mxu0
      %v1265 = vadd.f32 0.0, %v1264
      %1266 = vmatmul.f32.gmra.mxu0 %v1152
      %v1267 = vpop.f32.mrf.mxu0
      %v1268 = vadd.f32 0.0, %v1267
      %1269 = vmatmul.f32.gmra.mxu0 %v1155
      %v1270 = vpop.f32.mrf.mxu0
      %v1271 = vadd.f32 0.0, %v1270
      %1272 = vmatmul.f32.gmra.mxu0 %v1158
      %v1273 = vpop.f32.mrf.mxu0
      %v1274 = vadd.f32 0.0, %v1273
      %1275 = vmatmul.f32.gmra.mxu0 %v1161
      %v1276 = vpop.f32.mrf.mxu0
      %v1277 = vadd.f32 0.0, %v1276
      %1278 = vmatmul.f32.gmra.mxu0 %v1164
      %v1279 = vpop.f32.mrf.mxu0
      %v1280 = vadd.f32 0.0, %v1279
      %1281 = vmatmul.f32.gmra.mxu0 %v1167
      %v1282 = vpop.f32.mrf.mxu0
      %v1283 = vadd.f32 0.0, %v1282
      %1284 = vmatmul.f32.gmra.mxu0 %v1170
      %v1285 = vpop.f32.mrf.mxu0
      %v1286 = vadd.f32 0.0, %v1285
      %1287 = vmatmul.f32.gmra.mxu0 %v1173
      %v1288 = vpop.f32.mrf.mxu0
      %v1289 = vadd.f32 0.0, %v1288
      %1290 = vmatmul.f32.gmra.mxu0 %v1176
      %v1291 = vpop.f32.mrf.mxu0
      %v1292 = vadd.f32 0.0, %v1291
      %1293 = vmatmul.f32.gmra.mxu0 %v1179
      %v1294 = vpop.f32.mrf.mxu0
      %v1295 = vadd.f32 0.0, %v1294
      %1296 = vmatmul.f32.gmra.mxu0 %v1182
      %v1297 = vpop.f32.mrf.mxu0
      %v1298 = vadd.f32 0.0, %v1297
      %1299 = vmatmul.f32.gmra.mxu0 %v1185
      %v1300 = vpop.f32.mrf.mxu0
      %v1301 = vadd.f32 0.0, %v1300
      %1302 = vmatmul.f32.gmra.mxu0 %v1188
      %v1303 = vpop.f32.mrf.mxu0
      %v1304 = vadd.f32 0.0, %v1303
      %1305 = vmatmul.f32.gmra.mxu0 %v1191
      %v1306 = vpop.f32.mrf.mxu0
      %v1307 = vadd.f32 0.0, %v1306
      %1308 = vdwg.mxu0
      %v1309 = vadd.f32 %v1031, %v1214
      %v1310 = vadd.f32 %v1032, %v1217
      %v1311 = vadd.f32 %v1033, %v1220
      %v1312 = vadd.f32 %v1034, %v1223
      %v1313 = vadd.f32 %v1035, %v1226
      %v1314 = vadd.f32 %v1036, %v1229
      %v1315 = vadd.f32 %v1037, %v1232
      %v1316 = vadd.f32 %v1038, %v1235
      %v1317 = vadd.f32 %v1039, %v1238
      %v1318 = vadd.f32 %v1040, %v1241
      %v1319 = vadd.f32 %v1041, %v1244
      %v1320 = vadd.f32 %v1042, %v1247
      %v1321 = vadd.f32 %v1043, %v1250
      %v1322 = vadd.f32 %v1044, %v1253
      %v1323 = vadd.f32 %v1045, %v1256
      %v1324 = vadd.f32 %v1046, %v1259
      %v1325 = vadd.f32 %v1047, %v1262
      %v1326 = vadd.f32 %v1048, %v1265
      %v1327 = vadd.f32 %v1049, %v1268
      %v1328 = vadd.f32 %v1050, %v1271
      %v1329 = vadd.f32 %v1051, %v1274
      %v1330 = vadd.f32 %v1052, %v1277
      %v1331 = vadd.f32 %v1053, %v1280
      %v1332 = vadd.f32 %v1054, %v1283
      %v1333 = vadd.f32 %v1055, %v1286
      %v1334 = vadd.f32 %v1056, %v1289
      %v1335 = vadd.f32 %v1057, %v1292
      %v1336 = vadd.f32 %v1058, %v1295
      %v1337 = vadd.f32 %v1059, %v1298
      %v1338 = vadd.f32 %v1060, %v1301
      %v1339 = vadd.f32 %v1061, %v1304
      %v1340 = vadd.f32 %v1062, %v1307
      %v1341 = vld [vmem:[%s260 + $0x1] sm:$0xff]
      %v1342 = vld [vmem:[%s260 + $0x9] sm:$0xff]
      %v1343 = vld [vmem:[%s260 + $0x19] sm:$0xff]
      %v1344 = vld [vmem:[%s260 + $0x21] sm:$0xff]
      %v1345 = vld [vmem:[%s260 + $0x31] sm:$0xff]
      %v1346 = vld [vmem:[%s260 + $0x39] sm:$0xff]
      %v1347 = vld [vmem:[%s260 + $0x49] sm:$0xff]
      %v1348 = vld [vmem:[%s260 + $0x51] sm:$0xff]
      %v1349 = vld [vmem:[%s260 + $0x61] sm:$0xff]
      %v1350 = vld [vmem:[%s260 + $0x69] sm:$0xff]
      %v1351 = vld [vmem:[%s260 + $0x79] sm:$0xff]
      %v1352 = vld [vmem:[%s260 + $0x81] sm:$0xff]
      %v1353 = vld [vmem:[%s260 + $0x91] sm:$0xff]
      %v1354 = vld [vmem:[%s260 + $0x99] sm:$0xff]
      %v1355 = vld [vmem:[%s260 + $0xa9] sm:$0xff]
      %v1356 = vld [vmem:[%s260 + $0xb1] sm:$0xff]
      %v1357 = vld [vmem:[%s260 + $0xc1] sm:$0xff]
      %v1358 = vld [vmem:[%s260 + $0xc9] sm:$0xff]
      %v1359 = vld [vmem:[%s260 + $0xd9] sm:$0xff]
      %v1360 = vld [vmem:[%s260 + $0xe1] sm:$0xff]
      %v1361 = vld [vmem:[%s260 + $0xf1] sm:$0xff]
      %v1362 = vld [vmem:[%s260 + $0xf9] sm:$0xff]
      %v1363 = vld [vmem:[%s260 + $0x109] sm:$0xff]
      %v1364 = vld [vmem:[%s260 + $0x111] sm:$0xff]
      %v1365 = vld [vmem:[%s260 + $0x121] sm:$0xff]
      %v1366 = vld [vmem:[%s260 + $0x129] sm:$0xff]
      %v1367 = vld [vmem:[%s260 + $0x139] sm:$0xff]
      %v1368 = vld [vmem:[%s260 + $0x141] sm:$0xff]
      %v1369 = vld [vmem:[%s260 + $0x151] sm:$0xff]
      %v1370 = vld [vmem:[%s260 + $0x159] sm:$0xff]
      %v1371 = vld [vmem:[%s260 + $0x169] sm:$0xff]
      %v1372 = vld [vmem:[%s260 + $0x171] sm:$0xff]
      %s1373 = scalar_lea.vmem %s1, 16
      %v1374 = vld [vmem:[%s1373] sm:$0xf]
      %v1376 = vsel %vm182, %v1341, 0
      %v1379 = vsel %vm182, %v1342, 0
      %v1382 = vsel %vm182, %v1343, 0
      %v1385 = vsel %vm182, %v1344, 0
      %v1388 = vsel %vm182, %v1345, 0
      %v1391 = vsel %vm182, %v1346, 0
      %v1394 = vsel %vm182, %v1347, 0
      %v1397 = vsel %vm182, %v1348, 0
      %v1400 = vsel %vm182, %v1349, 0
      %v1403 = vsel %vm182, %v1350, 0
      %v1406 = vsel %vm182, %v1351, 0
      %v1409 = vsel %vm182, %v1352, 0
      %v1412 = vsel %vm182, %v1353, 0
      %v1415 = vsel %vm182, %v1354, 0
      %v1418 = vsel %vm182, %v1355, 0
      %v1421 = vsel %vm182, %v1356, 0
      %v1424 = vsel %vm182, %v1357, 0
      %v1427 = vsel %vm182, %v1358, 0
      %v1430 = vsel %vm182, %v1359, 0
      %v1433 = vsel %vm182, %v1360, 0
      %v1436 = vsel %vm182, %v1361, 0
      %v1439 = vsel %vm182, %v1362, 0
      %v1442 = vsel %vm182, %v1363, 0
      %v1445 = vsel %vm182, %v1364, 0
      %v1448 = vsel %vm182, %v1365, 0
      %v1451 = vsel %vm182, %v1366, 0
      %v1454 = vsel %vm182, %v1367, 0
      %v1457 = vsel %vm182, %v1368, 0
      %v1460 = vsel %vm182, %v1369, 0
      %v1463 = vsel %vm182, %v1370, 0
      %v1466 = vsel %vm182, %v1371, 0
      %v1469 = vsel %vm182, %v1372, 0
      %v1472 = vsel %vm456, %v1374, 0
      %1474 = vmatpush.msra.mxu0 0.0
      %1475 = vmatpush.msra.mxu0 0.0
      %1476 = vmatpush.msra.mxu0 0.0
      %1477 = vmatpush.msra.mxu0 0.0
      %1478 = vmatpush.msra.mxu0 0.0
      %1479 = vmatpush.msra.mxu0 0.0
      %1480 = vmatpush.msra.mxu0 0.0
      %1481 = vmatpush.msra.mxu0 0.0
      %1482 = vmatpush.msra.mxu0 0.0
      %1483 = vmatpush.msra.mxu0 0.0
      %1484 = vmatpush.msra.mxu0 0.0
      %1485 = vmatpush.msra.mxu0 0.0
      %1486 = vmatpush.msra.mxu0 0.0
      %1487 = vmatpush.msra.mxu0 0.0
      %1488 = vmatpush.msra.mxu0 0.0
      %1489 = vmatpush.msra.mxu0 %v1472
      %1490 = vmatmul.f32.gmra.mxu0 %v1376
      %v1491 = vpop.f32.mrf.mxu0
      %v1492 = vadd.f32 0.0, %v1491
      %1493 = vmatmul.f32.gmra.mxu0 %v1379
      %v1494 = vpop.f32.mrf.mxu0
      %v1495 = vadd.f32 0.0, %v1494
      %1496 = vmatmul.f32.gmra.mxu0 %v1382
      %v1497 = vpop.f32.mrf.mxu0
      %v1498 = vadd.f32 0.0, %v1497
      %1499 = vmatmul.f32.gmra.mxu0 %v1385
      %v1500 = vpop.f32.mrf.mxu0
      %v1501 = vadd.f32 0.0, %v1500
      %1502 = vmatmul.f32.gmra.mxu0 %v1388
      %v1503 = vpop.f32.mrf.mxu0
      %v1504 = vadd.f32 0.0, %v1503
      %1505 = vmatmul.f32.gmra.mxu0 %v1391
      %v1506 = vpop.f32.mrf.mxu0
      %v1507 = vadd.f32 0.0, %v1506
      %1508 = vmatmul.f32.gmra.mxu0 %v1394
      %v1509 = vpop.f32.mrf.mxu0
      %v1510 = vadd.f32 0.0, %v1509
      %1511 = vmatmul.f32.gmra.mxu0 %v1397
      %v1512 = vpop.f32.mrf.mxu0
      %v1513 = vadd.f32 0.0, %v1512
      %1514 = vmatmul.f32.gmra.mxu0 %v1400
      %v1515 = vpop.f32.mrf.mxu0
      %v1516 = vadd.f32 0.0, %v1515
      %1517 = vmatmul.f32.gmra.mxu0 %v1403
      %v1518 = vpop.f32.mrf.mxu0
      %v1519 = vadd.f32 0.0, %v1518
      %1520 = vmatmul.f32.gmra.mxu0 %v1406
      %v1521 = vpop.f32.mrf.mxu0
      %v1522 = vadd.f32 0.0, %v1521
      %1523 = vmatmul.f32.gmra.mxu0 %v1409
      %v1524 = vpop.f32.mrf.mxu0
      %v1525 = vadd.f32 0.0, %v1524
      %1526 = vmatmul.f32.gmra.mxu0 %v1412
      %v1527 = vpop.f32.mrf.mxu0
      %v1528 = vadd.f32 0.0, %v1527
      %1529 = vmatmul.f32.gmra.mxu0 %v1415
      %v1530 = vpop.f32.mrf.mxu0
      %v1531 = vadd.f32 0.0, %v1530
      %1532 = vmatmul.f32.gmra.mxu0 %v1418
      %v1533 = vpop.f32.mrf.mxu0
      %v1534 = vadd.f32 0.0, %v1533
      %1535 = vmatmul.f32.gmra.mxu0 %v1421
      %v1536 = vpop.f32.mrf.mxu0
      %v1537 = vadd.f32 0.0, %v1536
      %1538 = vmatmul.f32.gmra.mxu0 %v1424
      %v1539 = vpop.f32.mrf.mxu0
      %v1540 = vadd.f32 0.0, %v1539
      %1541 = vmatmul.f32.gmra.mxu0 %v1427
      %v1542 = vpop.f32.mrf.mxu0
      %v1543 = vadd.f32 0.0, %v1542
      %1544 = vmatmul.f32.gmra.mxu0 %v1430
      %v1545 = vpop.f32.mrf.mxu0
      %v1546 = vadd.f32 0.0, %v1545
      %1547 = vmatmul.f32.gmra.mxu0 %v1433
      %v1548 = vpop.f32.mrf.mxu0
      %v1549 = vadd.f32 0.0, %v1548
      %1550 = vmatmul.f32.gmra.mxu0 %v1436
      %v1551 = vpop.f32.mrf.mxu0
      %v1552 = vadd.f32 0.0, %v1551
      %1553 = vmatmul.f32.gmra.mxu0 %v1439
      %v1554 = vpop.f32.mrf.mxu0
      %v1555 = vadd.f32 0.0, %v1554
      %1556 = vmatmul.f32.gmra.mxu0 %v1442
      %v1557 = vpop.f32.mrf.mxu0
      %v1558 = vadd.f32 0.0, %v1557
      %1559 = vmatmul.f32.gmra.mxu0 %v1445
      %v1560 = vpop.f32.mrf.mxu0
      %v1561 = vadd.f32 0.0, %v1560
      %1562 = vmatmul.f32.gmra.mxu0 %v1448
      %v1563 = vpop.f32.mrf.mxu0
      %v1564 = vadd.f32 0.0, %v1563
      %1565 = vmatmul.f32.gmra.mxu0 %v1451
      %v1566 = vpop.f32.mrf.mxu0
      %v1567 = vadd.f32 0.0, %v1566
      %1568 = vmatmul.f32.gmra.mxu0 %v1454
      %v1569 = vpop.f32.mrf.mxu0
      %v1570 = vadd.f32 0.0, %v1569
      %1571 = vmatmul.f32.gmra.mxu0 %v1457
      %v1572 = vpop.f32.mrf.mxu0
      %v1573 = vadd.f32 0.0, %v1572
      %1574 = vmatmul.f32.gmra.mxu0 %v1460
      %v1575 = vpop.f32.mrf.mxu0
      %v1576 = vadd.f32 0.0, %v1575
      %1577 = vmatmul.f32.gmra.mxu0 %v1463
      %v1578 = vpop.f32.mrf.mxu0
      %v1579 = vadd.f32 0.0, %v1578
      %1580 = vmatmul.f32.gmra.mxu0 %v1466
      %v1581 = vpop.f32.mrf.mxu0
      %v1582 = vadd.f32 0.0, %v1581
      %1583 = vmatmul.f32.gmra.mxu0 %v1469
      %v1584 = vpop.f32.mrf.mxu0
      %v1585 = vadd.f32 0.0, %v1584
      %1586 = vdwg.mxu0
      %v1587 = vadd.f32 %v1309, %v1492
      %v1588 = vadd.f32 %v1310, %v1495
      %v1589 = vadd.f32 %v1311, %v1498
      %v1590 = vadd.f32 %v1312, %v1501
      %v1591 = vadd.f32 %v1313, %v1504
      %v1592 = vadd.f32 %v1314, %v1507
      %v1593 = vadd.f32 %v1315, %v1510
      %v1594 = vadd.f32 %v1316, %v1513
      %v1595 = vadd.f32 %v1317, %v1516
      %v1596 = vadd.f32 %v1318, %v1519
      %v1597 = vadd.f32 %v1319, %v1522
      %v1598 = vadd.f32 %v1320, %v1525
      %v1599 = vadd.f32 %v1321, %v1528
      %v1600 = vadd.f32 %v1322, %v1531
      %v1601 = vadd.f32 %v1323, %v1534
      %v1602 = vadd.f32 %v1324, %v1537
      %v1603 = vadd.f32 %v1325, %v1540
      %v1604 = vadd.f32 %v1326, %v1543
      %v1605 = vadd.f32 %v1327, %v1546
      %v1606 = vadd.f32 %v1328, %v1549
      %v1607 = vadd.f32 %v1329, %v1552
      %v1608 = vadd.f32 %v1330, %v1555
      %v1609 = vadd.f32 %v1331, %v1558
      %v1610 = vadd.f32 %v1332, %v1561
      %v1611 = vadd.f32 %v1333, %v1564
      %v1612 = vadd.f32 %v1334, %v1567
      %v1613 = vadd.f32 %v1335, %v1570
      %v1614 = vadd.f32 %v1336, %v1573
      %v1615 = vadd.f32 %v1337, %v1576
      %v1616 = vadd.f32 %v1338, %v1579
      %v1617 = vadd.f32 %v1339, %v1582
      %v1618 = vadd.f32 %v1340, %v1585
      %v1619 = vld [vmem:[%s260 + $0x2] sm:$0xff]
      %v1620 = vld [vmem:[%s260 + $0xa] sm:$0xff]
      %v1621 = vld [vmem:[%s260 + $0x1a] sm:$0xff]
      %v1622 = vld [vmem:[%s260 + $0x22] sm:$0xff]
      %v1623 = vld [vmem:[%s260 + $0x32] sm:$0xff]
      %v1624 = vld [vmem:[%s260 + $0x3a] sm:$0xff]
      %v1625 = vld [vmem:[%s260 + $0x4a] sm:$0xff]
      %v1626 = vld [vmem:[%s260 + $0x52] sm:$0xff]
      %v1627 = vld [vmem:[%s260 + $0x62] sm:$0xff]
      %v1628 = vld [vmem:[%s260 + $0x6a] sm:$0xff]
      %v1629 = vld [vmem:[%s260 + $0x7a] sm:$0xff]
      %v1630 = vld [vmem:[%s260 + $0x82] sm:$0xff]
      %v1631 = vld [vmem:[%s260 + $0x92] sm:$0xff]
      %v1632 = vld [vmem:[%s260 + $0x9a] sm:$0xff]
      %v1633 = vld [vmem:[%s260 + $0xaa] sm:$0xff]
      %v1634 = vld [vmem:[%s260 + $0xb2] sm:$0xff]
      %v1635 = vld [vmem:[%s260 + $0xc2] sm:$0xff]
      %v1636 = vld [vmem:[%s260 + $0xca] sm:$0xff]
      %v1637 = vld [vmem:[%s260 + $0xda] sm:$0xff]
      %v1638 = vld [vmem:[%s260 + $0xe2] sm:$0xff]
      %v1639 = vld [vmem:[%s260 + $0xf2] sm:$0xff]
      %v1640 = vld [vmem:[%s260 + $0xfa] sm:$0xff]
      %v1641 = vld [vmem:[%s260 + $0x10a] sm:$0xff]
      %v1642 = vld [vmem:[%s260 + $0x112] sm:$0xff]
      %v1643 = vld [vmem:[%s260 + $0x122] sm:$0xff]
      %v1644 = vld [vmem:[%s260 + $0x12a] sm:$0xff]
      %v1645 = vld [vmem:[%s260 + $0x13a] sm:$0xff]
      %v1646 = vld [vmem:[%s260 + $0x142] sm:$0xff]
      %v1647 = vld [vmem:[%s260 + $0x152] sm:$0xff]
      %v1648 = vld [vmem:[%s260 + $0x15a] sm:$0xff]
      %v1649 = vld [vmem:[%s260 + $0x16a] sm:$0xff]
      %v1650 = vld [vmem:[%s260 + $0x172] sm:$0xff]
      %s1651 = scalar_lea.vmem %s1, 20
      %v1652 = vld [vmem:[%s1651] sm:$0xf]
      %v1654 = vsel %vm182, %v1619, 0
      %v1657 = vsel %vm182, %v1620, 0
      %v1660 = vsel %vm182, %v1621, 0
      %v1663 = vsel %vm182, %v1622, 0
      %v1666 = vsel %vm182, %v1623, 0
      %v1669 = vsel %vm182, %v1624, 0
      %v1672 = vsel %vm182, %v1625, 0
      %v1675 = vsel %vm182, %v1626, 0
      %v1678 = vsel %vm182, %v1627, 0
      %v1681 = vsel %vm182, %v1628, 0
      %v1684 = vsel %vm182, %v1629, 0
      %v1687 = vsel %vm182, %v1630, 0
      %v1690 = vsel %vm182, %v1631, 0
      %v1693 = vsel %vm182, %v1632, 0
      %v1696 = vsel %vm182, %v1633, 0
      %v1699 = vsel %vm182, %v1634, 0
      %v1702 = vsel %vm182, %v1635, 0
      %v1705 = vsel %vm182, %v1636, 0
      %v1708 = vsel %vm182, %v1637, 0
      %v1711 = vsel %vm182, %v1638, 0
      %v1714 = vsel %vm182, %v1639, 0
      %v1717 = vsel %vm182, %v1640, 0
      %v1720 = vsel %vm182, %v1641, 0
      %v1723 = vsel %vm182, %v1642, 0
      %v1726 = vsel %vm182, %v1643, 0
      %v1729 = vsel %vm182, %v1644, 0
      %v1732 = vsel %vm182, %v1645, 0
      %v1735 = vsel %vm182, %v1646, 0
      %v1738 = vsel %vm182, %v1647, 0
      %v1741 = vsel %vm182, %v1648, 0
      %v1744 = vsel %vm182, %v1649, 0
      %v1747 = vsel %vm182, %v1650, 0
      %v1750 = vsel %vm456, %v1652, 0
      %1752 = vmatpush.msra.mxu0 0.0
      %1753 = vmatpush.msra.mxu0 0.0
      %1754 = vmatpush.msra.mxu0 0.0
      %1755 = vmatpush.msra.mxu0 0.0
      %1756 = vmatpush.msra.mxu0 0.0
      %1757 = vmatpush.msra.mxu0 0.0
      %1758 = vmatpush.msra.mxu0 0.0
      %1759 = vmatpush.msra.mxu0 0.0
      %1760 = vmatpush.msra.mxu0 0.0
      %1761 = vmatpush.msra.mxu0 0.0
      %1762 = vmatpush.msra.mxu0 0.0
      %1763 = vmatpush.msra.mxu0 0.0
      %1764 = vmatpush.msra.mxu0 0.0
      %1765 = vmatpush.msra.mxu0 0.0
      %1766 = vmatpush.msra.mxu0 0.0
      %1767 = vmatpush.msra.mxu0 %v1750
      %1768 = vmatmul.f32.gmra.mxu0 %v1654
      %v1769 = vpop.f32.mrf.mxu0
      %v1770 = vadd.f32 0.0, %v1769
      %1771 = vmatmul.f32.gmra.mxu0 %v1657
      %v1772 = vpop.f32.mrf.mxu0
      %v1773 = vadd.f32 0.0, %v1772
      %1774 = vmatmul.f32.gmra.mxu0 %v1660
      %v1775 = vpop.f32.mrf.mxu0
      %v1776 = vadd.f32 0.0, %v1775
      %1777 = vmatmul.f32.gmra.mxu0 %v1663
      %v1778 = vpop.f32.mrf.mxu0
      %v1779 = vadd.f32 0.0, %v1778
      %1780 = vmatmul.f32.gmra.mxu0 %v1666
      %v1781 = vpop.f32.mrf.mxu0
      %v1782 = vadd.f32 0.0, %v1781
      %1783 = vmatmul.f32.gmra.mxu0 %v1669
      %v1784 = vpop.f32.mrf.mxu0
      %v1785 = vadd.f32 0.0, %v1784
      %1786 = vmatmul.f32.gmra.mxu0 %v1672
      %v1787 = vpop.f32.mrf.mxu0
      %v1788 = vadd.f32 0.0, %v1787
      %1789 = vmatmul.f32.gmra.mxu0 %v1675
      %v1790 = vpop.f32.mrf.mxu0
      %v1791 = vadd.f32 0.0, %v1790
      %1792 = vmatmul.f32.gmra.mxu0 %v1678
      %v1793 = vpop.f32.mrf.mxu0
      %v1794 = vadd.f32 0.0, %v1793
      %1795 = vmatmul.f32.gmra.mxu0 %v1681
      %v1796 = vpop.f32.mrf.mxu0
      %v1797 = vadd.f32 0.0, %v1796
      %1798 = vmatmul.f32.gmra.mxu0 %v1684
      %v1799 = vpop.f32.mrf.mxu0
      %v1800 = vadd.f32 0.0, %v1799
      %1801 = vmatmul.f32.gmra.mxu0 %v1687
      %v1802 = vpop.f32.mrf.mxu0
      %v1803 = vadd.f32 0.0, %v1802
      %1804 = vmatmul.f32.gmra.mxu0 %v1690
      %v1805 = vpop.f32.mrf.mxu0
      %v1806 = vadd.f32 0.0, %v1805
      %1807 = vmatmul.f32.gmra.mxu0 %v1693
      %v1808 = vpop.f32.mrf.mxu0
      %v1809 = vadd.f32 0.0, %v1808
      %1810 = vmatmul.f32.gmra.mxu0 %v1696
      %v1811 = vpop.f32.mrf.mxu0
      %v1812 = vadd.f32 0.0, %v1811
      %1813 = vmatmul.f32.gmra.mxu0 %v1699
      %v1814 = vpop.f32.mrf.mxu0
      %v1815 = vadd.f32 0.0, %v1814
      %1816 = vmatmul.f32.gmra.mxu0 %v1702
      %v1817 = vpop.f32.mrf.mxu0
      %v1818 = vadd.f32 0.0, %v1817
      %1819 = vmatmul.f32.gmra.mxu0 %v1705
      %v1820 = vpop.f32.mrf.mxu0
      %v1821 = vadd.f32 0.0, %v1820
      %1822 = vmatmul.f32.gmra.mxu0 %v1708
      %v1823 = vpop.f32.mrf.mxu0
      %v1824 = vadd.f32 0.0, %v1823
      %1825 = vmatmul.f32.gmra.mxu0 %v1711
      %v1826 = vpop.f32.mrf.mxu0
      %v1827 = vadd.f32 0.0, %v1826
      %1828 = vmatmul.f32.gmra.mxu0 %v1714
      %v1829 = vpop.f32.mrf.mxu0
      %v1830 = vadd.f32 0.0, %v1829
      %1831 = vmatmul.f32.gmra.mxu0 %v1717
      %v1832 = vpop.f32.mrf.mxu0
      %v1833 = vadd.f32 0.0, %v1832
      %1834 = vmatmul.f32.gmra.mxu0 %v1720
      %v1835 = vpop.f32.mrf.mxu0
      %v1836 = vadd.f32 0.0, %v1835
      %1837 = vmatmul.f32.gmra.mxu0 %v1723
      %v1838 = vpop.f32.mrf.mxu0
      %v1839 = vadd.f32 0.0, %v1838
      %1840 = vmatmul.f32.gmra.mxu0 %v1726
      %v1841 = vpop.f32.mrf.mxu0
      %v1842 = vadd.f32 0.0, %v1841
      %1843 = vmatmul.f32.gmra.mxu0 %v1729
      %v1844 = vpop.f32.mrf.mxu0
      %v1845 = vadd.f32 0.0, %v1844
      %1846 = vmatmul.f32.gmra.mxu0 %v1732
      %v1847 = vpop.f32.mrf.mxu0
      %v1848 = vadd.f32 0.0, %v1847
      %1849 = vmatmul.f32.gmra.mxu0 %v1735
      %v1850 = vpop.f32.mrf.mxu0
      %v1851 = vadd.f32 0.0, %v1850
      %1852 = vmatmul.f32.gmra.mxu0 %v1738
      %v1853 = vpop.f32.mrf.mxu0
      %v1854 = vadd.f32 0.0, %v1853
      %1855 = vmatmul.f32.gmra.mxu0 %v1741
      %v1856 = vpop.f32.mrf.mxu0
      %v1857 = vadd.f32 0.0, %v1856
      %1858 = vmatmul.f32.gmra.mxu0 %v1744
      %v1859 = vpop.f32.mrf.mxu0
      %v1860 = vadd.f32 0.0, %v1859
      %1861 = vmatmul.f32.gmra.mxu0 %v1747
      %v1862 = vpop.f32.mrf.mxu0
      %v1863 = vadd.f32 0.0, %v1862
      %1864 = vdwg.mxu0
      %v1865 = vadd.f32 %v1587, %v1770
      %v1866 = vadd.f32 %v1588, %v1773
      %v1867 = vadd.f32 %v1589, %v1776
      %v1868 = vadd.f32 %v1590, %v1779
      %v1869 = vadd.f32 %v1591, %v1782
      %v1870 = vadd.f32 %v1592, %v1785
      %v1871 = vadd.f32 %v1593, %v1788
      %v1872 = vadd.f32 %v1594, %v1791
      %v1873 = vadd.f32 %v1595, %v1794
      %v1874 = vadd.f32 %v1596, %v1797
      %v1875 = vadd.f32 %v1597, %v1800
      %v1876 = vadd.f32 %v1598, %v1803
      %v1877 = vadd.f32 %v1599, %v1806
      %v1878 = vadd.f32 %v1600, %v1809
      %v1879 = vadd.f32 %v1601, %v1812
      %v1880 = vadd.f32 %v1602, %v1815
      %v1881 = vadd.f32 %v1603, %v1818
      %v1882 = vadd.f32 %v1604, %v1821
      %v1883 = vadd.f32 %v1605, %v1824
      %v1884 = vadd.f32 %v1606, %v1827
      %v1885 = vadd.f32 %v1607, %v1830
      %v1886 = vadd.f32 %v1608, %v1833
      %v1887 = vadd.f32 %v1609, %v1836
      %v1888 = vadd.f32 %v1610, %v1839
      %v1889 = vadd.f32 %v1611, %v1842
      %v1890 = vadd.f32 %v1612, %v1845
      %v1891 = vadd.f32 %v1613, %v1848
      %v1892 = vadd.f32 %v1614, %v1851
      %v1893 = vadd.f32 %v1615, %v1854
      %v1894 = vadd.f32 %v1616, %v1857
      %v1895 = vadd.f32 %v1617, %v1860
      %v1896 = vadd.f32 %v1618, %v1863
      %s1897 = scalar_lea.vmem [#allocation2], 48
      %v1898 = vld [vmem:[%s1897] sm:$0xff]
      %v1899 = vld [vmem:[%s1897 + $0x8] sm:$0xff]
      %v1900 = vld [vmem:[%s1897 + $0x18] sm:$0xff]
      %v1901 = vld [vmem:[%s1897 + $0x20] sm:$0xff]
      %v1902 = vld [vmem:[%s1897 + $0x30] sm:$0xff]
      %v1903 = vld [vmem:[%s1897 + $0x38] sm:$0xff]
      %v1904 = vld [vmem:[%s1897 + $0x48] sm:$0xff]
      %v1905 = vld [vmem:[%s1897 + $0x50] sm:$0xff]
      %v1906 = vld [vmem:[%s1897 + $0x60] sm:$0xff]
      %v1907 = vld [vmem:[%s1897 + $0x68] sm:$0xff]
      %v1908 = vld [vmem:[%s1897 + $0x78] sm:$0xff]
      %v1909 = vld [vmem:[%s1897 + $0x80] sm:$0xff]
      %v1910 = vld [vmem:[%s1897 + $0x90] sm:$0xff]
      %v1911 = vld [vmem:[%s1897 + $0x98] sm:$0xff]
      %v1912 = vld [vmem:[%s1897 + $0xa8] sm:$0xff]
      %v1913 = vld [vmem:[%s1897 + $0xb0] sm:$0xff]
      %v1914 = vld [vmem:[%s1897 + $0xc0] sm:$0xff]
      %v1915 = vld [vmem:[%s1897 + $0xc8] sm:$0xff]
      %v1916 = vld [vmem:[%s1897 + $0xd8] sm:$0xff]
      %v1917 = vld [vmem:[%s1897 + $0xe0] sm:$0xff]
      %v1918 = vld [vmem:[%s1897 + $0xf0] sm:$0xff]
      %v1919 = vld [vmem:[%s1897 + $0xf8] sm:$0xff]
      %v1920 = vld [vmem:[%s1897 + $0x108] sm:$0xff]
      %v1921 = vld [vmem:[%s1897 + $0x110] sm:$0xff]
      %v1922 = vld [vmem:[%s1897 + $0x120] sm:$0xff]
      %v1923 = vld [vmem:[%s1897 + $0x128] sm:$0xff]
      %v1924 = vld [vmem:[%s1897 + $0x138] sm:$0xff]
      %v1925 = vld [vmem:[%s1897 + $0x140] sm:$0xff]
      %v1926 = vld [vmem:[%s1897 + $0x150] sm:$0xff]
      %v1927 = vld [vmem:[%s1897 + $0x158] sm:$0xff]
      %v1928 = vld [vmem:[%s1897 + $0x168] sm:$0xff]
      %v1929 = vld [vmem:[%s1897 + $0x170] sm:$0xff]
      %s1930 = scalar_lea.vmem %s1, 24
      %v1931 = vld [vmem:[%s1930] sm:$0xf]
      %v1933 = vsel %vm182, %v1898, 0
      %v1936 = vsel %vm182, %v1899, 0
      %v1939 = vsel %vm182, %v1900, 0
      %v1942 = vsel %vm182, %v1901, 0
      %v1945 = vsel %vm182, %v1902, 0
      %v1948 = vsel %vm182, %v1903, 0
      %v1951 = vsel %vm182, %v1904, 0
      %v1954 = vsel %vm182, %v1905, 0
      %v1957 = vsel %vm182, %v1906, 0
      %v1960 = vsel %vm182, %v1907, 0
      %v1963 = vsel %vm182, %v1908, 0
      %v1966 = vsel %vm182, %v1909, 0
      %v1969 = vsel %vm182, %v1910, 0
      %v1972 = vsel %vm182, %v1911, 0
      %v1975 = vsel %vm182, %v1912, 0
      %v1978 = vsel %vm182, %v1913, 0
      %v1981 = vsel %vm182, %v1914, 0
      %v1984 = vsel %vm182, %v1915, 0
      %v1987 = vsel %vm182, %v1916, 0
      %v1990 = vsel %vm182, %v1917, 0
      %v1993 = vsel %vm182, %v1918, 0
      %v1996 = vsel %vm182, %v1919, 0
      %v1999 = vsel %vm182, %v1920, 0
      %v2002 = vsel %vm182, %v1921, 0
      %v2005 = vsel %vm182, %v1922, 0
      %v2008 = vsel %vm182, %v1923, 0
      %v2011 = vsel %vm182, %v1924, 0
      %v2014 = vsel %vm182, %v1925, 0
      %v2017 = vsel %vm182, %v1926, 0
      %v2020 = vsel %vm182, %v1927, 0
      %v2023 = vsel %vm182, %v1928, 0
      %v2026 = vsel %vm182, %v1929, 0
      %v2029 = vsel %vm456, %v1931, 0
      %2031 = vmatpush.msra.mxu0 0.0
      %2032 = vmatpush.msra.mxu0 0.0
      %2033 = vmatpush.msra.mxu0 0.0
      %2034 = vmatpush.msra.mxu0 0.0
      %2035 = vmatpush.msra.mxu0 0.0
      %2036 = vmatpush.msra.mxu0 0.0
      %2037 = vmatpush.msra.mxu0 0.0
      %2038 = vmatpush.msra.mxu0 0.0
      %2039 = vmatpush.msra.mxu0 0.0
      %2040 = vmatpush.msra.mxu0 0.0
      %2041 = vmatpush.msra.mxu0 0.0
      %2042 = vmatpush.msra.mxu0 0.0
      %2043 = vmatpush.msra.mxu0 0.0
      %2044 = vmatpush.msra.mxu0 0.0
      %2045 = vmatpush.msra.mxu0 0.0
      %2046 = vmatpush.msra.mxu0 %v2029
      %2047 = vmatmul.f32.gmra.mxu0 %v1933
      %v2048 = vpop.f32.mrf.mxu0
      %v2049 = vadd.f32 0.0, %v2048
      %2050 = vmatmul.f32.gmra.mxu0 %v1936
      %v2051 = vpop.f32.mrf.mxu0
      %v2052 = vadd.f32 0.0, %v2051
      %2053 = vmatmul.f32.gmra.mxu0 %v1939
      %v2054 = vpop.f32.mrf.mxu0
      %v2055 = vadd.f32 0.0, %v2054
      %2056 = vmatmul.f32.gmra.mxu0 %v1942
      %v2057 = vpop.f32.mrf.mxu0
      %v2058 = vadd.f32 0.0, %v2057
      %2059 = vmatmul.f32.gmra.mxu0 %v1945
      %v2060 = vpop.f32.mrf.mxu0
      %v2061 = vadd.f32 0.0, %v2060
      %2062 = vmatmul.f32.gmra.mxu0 %v1948
      %v2063 = vpop.f32.mrf.mxu0
      %v2064 = vadd.f32 0.0, %v2063
      %2065 = vmatmul.f32.gmra.mxu0 %v1951
      %v2066 = vpop.f32.mrf.mxu0
      %v2067 = vadd.f32 0.0, %v2066
      %2068 = vmatmul.f32.gmra.mxu0 %v1954
      %v2069 = vpop.f32.mrf.mxu0
      %v2070 = vadd.f32 0.0, %v2069
      %2071 = vmatmul.f32.gmra.mxu0 %v1957
      %v2072 = vpop.f32.mrf.mxu0
      %v2073 = vadd.f32 0.0, %v2072
      %2074 = vmatmul.f32.gmra.mxu0 %v1960
      %v2075 = vpop.f32.mrf.mxu0
      %v2076 = vadd.f32 0.0, %v2075
      %2077 = vmatmul.f32.gmra.mxu0 %v1963
      %v2078 = vpop.f32.mrf.mxu0
      %v2079 = vadd.f32 0.0, %v2078
      %2080 = vmatmul.f32.gmra.mxu0 %v1966
      %v2081 = vpop.f32.mrf.mxu0
      %v2082 = vadd.f32 0.0, %v2081
      %2083 = vmatmul.f32.gmra.mxu0 %v1969
      %v2084 = vpop.f32.mrf.mxu0
      %v2085 = vadd.f32 0.0, %v2084
      %2086 = vmatmul.f32.gmra.mxu0 %v1972
      %v2087 = vpop.f32.mrf.mxu0
      %v2088 = vadd.f32 0.0, %v2087
      %2089 = vmatmul.f32.gmra.mxu0 %v1975
      %v2090 = vpop.f32.mrf.mxu0
      %v2091 = vadd.f32 0.0, %v2090
      %2092 = vmatmul.f32.gmra.mxu0 %v1978
      %v2093 = vpop.f32.mrf.mxu0
      %v2094 = vadd.f32 0.0, %v2093
      %2095 = vmatmul.f32.gmra.mxu0 %v1981
      %v2096 = vpop.f32.mrf.mxu0
      %v2097 = vadd.f32 0.0, %v2096
      %2098 = vmatmul.f32.gmra.mxu0 %v1984
      %v2099 = vpop.f32.mrf.mxu0
      %v2100 = vadd.f32 0.0, %v2099
      %2101 = vmatmul.f32.gmra.mxu0 %v1987
      %v2102 = vpop.f32.mrf.mxu0
      %v2103 = vadd.f32 0.0, %v2102
      %2104 = vmatmul.f32.gmra.mxu0 %v1990
      %v2105 = vpop.f32.mrf.mxu0
      %v2106 = vadd.f32 0.0, %v2105
      %2107 = vmatmul.f32.gmra.mxu0 %v1993
      %v2108 = vpop.f32.mrf.mxu0
      %v2109 = vadd.f32 0.0, %v2108
      %2110 = vmatmul.f32.gmra.mxu0 %v1996
      %v2111 = vpop.f32.mrf.mxu0
      %v2112 = vadd.f32 0.0, %v2111
      %2113 = vmatmul.f32.gmra.mxu0 %v1999
      %v2114 = vpop.f32.mrf.mxu0
      %v2115 = vadd.f32 0.0, %v2114
      %2116 = vmatmul.f32.gmra.mxu0 %v2002
      %v2117 = vpop.f32.mrf.mxu0
      %v2118 = vadd.f32 0.0, %v2117
      %2119 = vmatmul.f32.gmra.mxu0 %v2005
      %v2120 = vpop.f32.mrf.mxu0
      %v2121 = vadd.f32 0.0, %v2120
      %2122 = vmatmul.f32.gmra.mxu0 %v2008
      %v2123 = vpop.f32.mrf.mxu0
      %v2124 = vadd.f32 0.0, %v2123
      %2125 = vmatmul.f32.gmra.mxu0 %v2011
      %v2126 = vpop.f32.mrf.mxu0
      %v2127 = vadd.f32 0.0, %v2126
      %2128 = vmatmul.f32.gmra.mxu0 %v2014
      %v2129 = vpop.f32.mrf.mxu0
      %v2130 = vadd.f32 0.0, %v2129
      %2131 = vmatmul.f32.gmra.mxu0 %v2017
      %v2132 = vpop.f32.mrf.mxu0
      %v2133 = vadd.f32 0.0, %v2132
      %2134 = vmatmul.f32.gmra.mxu0 %v2020
      %v2135 = vpop.f32.mrf.mxu0
      %v2136 = vadd.f32 0.0, %v2135
      %2137 = vmatmul.f32.gmra.mxu0 %v2023
      %v2138 = vpop.f32.mrf.mxu0
      %v2139 = vadd.f32 0.0, %v2138
      %2140 = vmatmul.f32.gmra.mxu0 %v2026
      %v2141 = vpop.f32.mrf.mxu0
      %v2142 = vadd.f32 0.0, %v2141
      %2143 = vdwg.mxu0
      %v2144 = vadd.f32 %v1865, %v2049
      %v2145 = vadd.f32 %v1866, %v2052
      %v2146 = vadd.f32 %v1867, %v2055
      %v2147 = vadd.f32 %v1868, %v2058
      %v2148 = vadd.f32 %v1869, %v2061
      %v2149 = vadd.f32 %v1870, %v2064
      %v2150 = vadd.f32 %v1871, %v2067
      %v2151 = vadd.f32 %v1872, %v2070
      %v2152 = vadd.f32 %v1873, %v2073
      %v2153 = vadd.f32 %v1874, %v2076
      %v2154 = vadd.f32 %v1875, %v2079
      %v2155 = vadd.f32 %v1876, %v2082
      %v2156 = vadd.f32 %v1877, %v2085
      %v2157 = vadd.f32 %v1878, %v2088
      %v2158 = vadd.f32 %v1879, %v2091
      %v2159 = vadd.f32 %v1880, %v2094
      %v2160 = vadd.f32 %v1881, %v2097
      %v2161 = vadd.f32 %v1882, %v2100
      %v2162 = vadd.f32 %v1883, %v2103
      %v2163 = vadd.f32 %v1884, %v2106
      %v2164 = vadd.f32 %v1885, %v2109
      %v2165 = vadd.f32 %v1886, %v2112
      %v2166 = vadd.f32 %v1887, %v2115
      %v2167 = vadd.f32 %v1888, %v2118
      %v2168 = vadd.f32 %v1889, %v2121
      %v2169 = vadd.f32 %v1890, %v2124
      %v2170 = vadd.f32 %v1891, %v2127
      %v2171 = vadd.f32 %v1892, %v2130
      %v2172 = vadd.f32 %v1893, %v2133
      %v2173 = vadd.f32 %v1894, %v2136
      %v2174 = vadd.f32 %v1895, %v2139
      %v2175 = vadd.f32 %v1896, %v2142
      %v2176 = vld [vmem:[%s1897 + $0x1] sm:$0xff]
      %v2177 = vld [vmem:[%s1897 + $0x9] sm:$0xff]
      %v2178 = vld [vmem:[%s1897 + $0x19] sm:$0xff]
      %v2179 = vld [vmem:[%s1897 + $0x21] sm:$0xff]
      %v2180 = vld [vmem:[%s1897 + $0x31] sm:$0xff]
      %v2181 = vld [vmem:[%s1897 + $0x39] sm:$0xff]
      %v2182 = vld [vmem:[%s1897 + $0x49] sm:$0xff]
      %v2183 = vld [vmem:[%s1897 + $0x51] sm:$0xff]
      %v2184 = vld [vmem:[%s1897 + $0x61] sm:$0xff]
      %v2185 = vld [vmem:[%s1897 + $0x69] sm:$0xff]
      %v2186 = vld [vmem:[%s1897 + $0x79] sm:$0xff]
      %v2187 = vld [vmem:[%s1897 + $0x81] sm:$0xff]
      %v2188 = vld [vmem:[%s1897 + $0x91] sm:$0xff]
      %v2189 = vld [vmem:[%s1897 + $0x99] sm:$0xff]
      %v2190 = vld [vmem:[%s1897 + $0xa9] sm:$0xff]
      %v2191 = vld [vmem:[%s1897 + $0xb1] sm:$0xff]
      %v2192 = vld [vmem:[%s1897 + $0xc1] sm:$0xff]
      %v2193 = vld [vmem:[%s1897 + $0xc9] sm:$0xff]
      %v2194 = vld [vmem:[%s1897 + $0xd9] sm:$0xff]
      %v2195 = vld [vmem:[%s1897 + $0xe1] sm:$0xff]
      %v2196 = vld [vmem:[%s1897 + $0xf1] sm:$0xff]
      %v2197 = vld [vmem:[%s1897 + $0xf9] sm:$0xff]
      %v2198 = vld [vmem:[%s1897 + $0x109] sm:$0xff]
      %v2199 = vld [vmem:[%s1897 + $0x111] sm:$0xff]
      %v2200 = vld [vmem:[%s1897 + $0x121] sm:$0xff]
      %v2201 = vld [vmem:[%s1897 + $0x129] sm:$0xff]
      %v2202 = vld [vmem:[%s1897 + $0x139] sm:$0xff]
      %v2203 = vld [vmem:[%s1897 + $0x141] sm:$0xff]
      %v2204 = vld [vmem:[%s1897 + $0x151] sm:$0xff]
      %v2205 = vld [vmem:[%s1897 + $0x159] sm:$0xff]
      %v2206 = vld [vmem:[%s1897 + $0x169] sm:$0xff]
      %v2207 = vld [vmem:[%s1897 + $0x171] sm:$0xff]
      %s2208 = scalar_lea.vmem %s1, 28
      %v2209 = vld [vmem:[%s2208] sm:$0xf]
      %v2211 = vsel %vm182, %v2176, 0
      %v2214 = vsel %vm182, %v2177, 0
      %v2217 = vsel %vm182, %v2178, 0
      %v2220 = vsel %vm182, %v2179, 0
      %v2223 = vsel %vm182, %v2180, 0
      %v2226 = vsel %vm182, %v2181, 0
      %v2229 = vsel %vm182, %v2182, 0
      %v2232 = vsel %vm182, %v2183, 0
      %v2235 = vsel %vm182, %v2184, 0
      %v2238 = vsel %vm182, %v2185, 0
      %v2241 = vsel %vm182, %v2186, 0
      %v2244 = vsel %vm182, %v2187, 0
      %v2247 = vsel %vm182, %v2188, 0
      %v2250 = vsel %vm182, %v2189, 0
      %v2253 = vsel %vm182, %v2190, 0
      %v2256 = vsel %vm182, %v2191, 0
      %v2259 = vsel %vm182, %v2192, 0
      %v2262 = vsel %vm182, %v2193, 0
      %v2265 = vsel %vm182, %v2194, 0
      %v2268 = vsel %vm182, %v2195, 0
      %v2271 = vsel %vm182, %v2196, 0
      %v2274 = vsel %vm182, %v2197, 0
      %v2277 = vsel %vm182, %v2198, 0
      %v2280 = vsel %vm182, %v2199, 0
      %v2283 = vsel %vm182, %v2200, 0
      %v2286 = vsel %vm182, %v2201, 0
      %v2289 = vsel %vm182, %v2202, 0
      %v2292 = vsel %vm182, %v2203, 0
      %v2295 = vsel %vm182, %v2204, 0
      %v2298 = vsel %vm182, %v2205, 0
      %v2301 = vsel %vm182, %v2206, 0
      %v2304 = vsel %vm182, %v2207, 0
      %v2307 = vsel %vm456, %v2209, 0
      %2309 = vmatpush.msra.mxu0 0.0
      %2310 = vmatpush.msra.mxu0 0.0
      %2311 = vmatpush.msra.mxu0 0.0
      %2312 = vmatpush.msra.mxu0 0.0
      %2313 = vmatpush.msra.mxu0 0.0
      %2314 = vmatpush.msra.mxu0 0.0
      %2315 = vmatpush.msra.mxu0 0.0
      %2316 = vmatpush.msra.mxu0 0.0
      %2317 = vmatpush.msra.mxu0 0.0
      %2318 = vmatpush.msra.mxu0 0.0
      %2319 = vmatpush.msra.mxu0 0.0
      %2320 = vmatpush.msra.mxu0 0.0
      %2321 = vmatpush.msra.mxu0 0.0
      %2322 = vmatpush.msra.mxu0 0.0
      %2323 = vmatpush.msra.mxu0 0.0
      %2324 = vmatpush.msra.mxu0 %v2307
      %2325 = vmatmul.f32.gmra.mxu0 %v2211
      %v2326 = vpop.f32.mrf.mxu0
      %v2327 = vadd.f32 0.0, %v2326
      %2328 = vmatmul.f32.gmra.mxu0 %v2214
      %v2329 = vpop.f32.mrf.mxu0
      %v2330 = vadd.f32 0.0, %v2329
      %2331 = vmatmul.f32.gmra.mxu0 %v2217
      %v2332 = vpop.f32.mrf.mxu0
      %v2333 = vadd.f32 0.0, %v2332
      %2334 = vmatmul.f32.gmra.mxu0 %v2220
      %v2335 = vpop.f32.mrf.mxu0
      %v2336 = vadd.f32 0.0, %v2335
      %2337 = vmatmul.f32.gmra.mxu0 %v2223
      %v2338 = vpop.f32.mrf.mxu0
      %v2339 = vadd.f32 0.0, %v2338
      %2340 = vmatmul.f32.gmra.mxu0 %v2226
      %v2341 = vpop.f32.mrf.mxu0
      %v2342 = vadd.f32 0.0, %v2341
      %2343 = vmatmul.f32.gmra.mxu0 %v2229
      %v2344 = vpop.f32.mrf.mxu0
      %v2345 = vadd.f32 0.0, %v2344
      %2346 = vmatmul.f32.gmra.mxu0 %v2232
      %v2347 = vpop.f32.mrf.mxu0
      %v2348 = vadd.f32 0.0, %v2347
      %2349 = vmatmul.f32.gmra.mxu0 %v2235
      %v2350 = vpop.f32.mrf.mxu0
      %v2351 = vadd.f32 0.0, %v2350
      %2352 = vmatmul.f32.gmra.mxu0 %v2238
      %v2353 = vpop.f32.mrf.mxu0
      %v2354 = vadd.f32 0.0, %v2353
      %2355 = vmatmul.f32.gmra.mxu0 %v2241
      %v2356 = vpop.f32.mrf.mxu0
      %v2357 = vadd.f32 0.0, %v2356
      %2358 = vmatmul.f32.gmra.mxu0 %v2244
      %v2359 = vpop.f32.mrf.mxu0
      %v2360 = vadd.f32 0.0, %v2359
      %2361 = vmatmul.f32.gmra.mxu0 %v2247
      %v2362 = vpop.f32.mrf.mxu0
      %v2363 = vadd.f32 0.0, %v2362
      %2364 = vmatmul.f32.gmra.mxu0 %v2250
      %v2365 = vpop.f32.mrf.mxu0
      %v2366 = vadd.f32 0.0, %v2365
      %2367 = vmatmul.f32.gmra.mxu0 %v2253
      %v2368 = vpop.f32.mrf.mxu0
      %v2369 = vadd.f32 0.0, %v2368
      %2370 = vmatmul.f32.gmra.mxu0 %v2256
      %v2371 = vpop.f32.mrf.mxu0
      %v2372 = vadd.f32 0.0, %v2371
      %2373 = vmatmul.f32.gmra.mxu0 %v2259
      %v2374 = vpop.f32.mrf.mxu0
      %v2375 = vadd.f32 0.0, %v2374
      %2376 = vmatmul.f32.gmra.mxu0 %v2262
      %v2377 = vpop.f32.mrf.mxu0
      %v2378 = vadd.f32 0.0, %v2377
      %2379 = vmatmul.f32.gmra.mxu0 %v2265
      %v2380 = vpop.f32.mrf.mxu0
      %v2381 = vadd.f32 0.0, %v2380
      %2382 = vmatmul.f32.gmra.mxu0 %v2268
      %v2383 = vpop.f32.mrf.mxu0
      %v2384 = vadd.f32 0.0, %v2383
      %2385 = vmatmul.f32.gmra.mxu0 %v2271
      %v2386 = vpop.f32.mrf.mxu0
      %v2387 = vadd.f32 0.0, %v2386
      %2388 = vmatmul.f32.gmra.mxu0 %v2274
      %v2389 = vpop.f32.mrf.mxu0
      %v2390 = vadd.f32 0.0, %v2389
      %2391 = vmatmul.f32.gmra.mxu0 %v2277
      %v2392 = vpop.f32.mrf.mxu0
      %v2393 = vadd.f32 0.0, %v2392
      %2394 = vmatmul.f32.gmra.mxu0 %v2280
      %v2395 = vpop.f32.mrf.mxu0
      %v2396 = vadd.f32 0.0, %v2395
      %2397 = vmatmul.f32.gmra.mxu0 %v2283
      %v2398 = vpop.f32.mrf.mxu0
      %v2399 = vadd.f32 0.0, %v2398
      %2400 = vmatmul.f32.gmra.mxu0 %v2286
      %v2401 = vpop.f32.mrf.mxu0
      %v2402 = vadd.f32 0.0, %v2401
      %2403 = vmatmul.f32.gmra.mxu0 %v2289
      %v2404 = vpop.f32.mrf.mxu0
      %v2405 = vadd.f32 0.0, %v2404
      %2406 = vmatmul.f32.gmra.mxu0 %v2292
      %v2407 = vpop.f32.mrf.mxu0
      %v2408 = vadd.f32 0.0, %v2407
      %2409 = vmatmul.f32.gmra.mxu0 %v2295
      %v2410 = vpop.f32.mrf.mxu0
      %v2411 = vadd.f32 0.0, %v2410
      %2412 = vmatmul.f32.gmra.mxu0 %v2298
      %v2413 = vpop.f32.mrf.mxu0
      %v2414 = vadd.f32 0.0, %v2413
      %2415 = vmatmul.f32.gmra.mxu0 %v2301
      %v2416 = vpop.f32.mrf.mxu0
      %v2417 = vadd.f32 0.0, %v2416
      %2418 = vmatmul.f32.gmra.mxu0 %v2304
      %v2419 = vpop.f32.mrf.mxu0
      %v2420 = vadd.f32 0.0, %v2419
      %2421 = vdwg.mxu0
      %v2422 = vadd.f32 %v2144, %v2327
      %v2423 = vadd.f32 %v2145, %v2330
      %v2424 = vadd.f32 %v2146, %v2333
      %v2425 = vadd.f32 %v2147, %v2336
      %v2426 = vadd.f32 %v2148, %v2339
      %v2427 = vadd.f32 %v2149, %v2342
      %v2428 = vadd.f32 %v2150, %v2345
      %v2429 = vadd.f32 %v2151, %v2348
      %v2430 = vadd.f32 %v2152, %v2351
      %v2431 = vadd.f32 %v2153, %v2354
      %v2432 = vadd.f32 %v2154, %v2357
      %v2433 = vadd.f32 %v2155, %v2360
      %v2434 = vadd.f32 %v2156, %v2363
      %v2435 = vadd.f32 %v2157, %v2366
      %v2436 = vadd.f32 %v2158, %v2369
      %v2437 = vadd.f32 %v2159, %v2372
      %v2438 = vadd.f32 %v2160, %v2375
      %v2439 = vadd.f32 %v2161, %v2378
      %v2440 = vadd.f32 %v2162, %v2381
      %v2441 = vadd.f32 %v2163, %v2384
      %v2442 = vadd.f32 %v2164, %v2387
      %v2443 = vadd.f32 %v2165, %v2390
      %v2444 = vadd.f32 %v2166, %v2393
      %v2445 = vadd.f32 %v2167, %v2396
      %v2446 = vadd.f32 %v2168, %v2399
      %v2447 = vadd.f32 %v2169, %v2402
      %v2448 = vadd.f32 %v2170, %v2405
      %v2449 = vadd.f32 %v2171, %v2408
      %v2450 = vadd.f32 %v2172, %v2411
      %v2451 = vadd.f32 %v2173, %v2414
      %v2452 = vadd.f32 %v2174, %v2417
      %v2453 = vadd.f32 %v2175, %v2420
      %v2454 = vld [vmem:[%s1897 + $0x2] sm:$0xff]
      %v2455 = vld [vmem:[%s1897 + $0xa] sm:$0xff]
      %v2456 = vld [vmem:[%s1897 + $0x1a] sm:$0xff]
      %v2457 = vld [vmem:[%s1897 + $0x22] sm:$0xff]
      %v2458 = vld [vmem:[%s1897 + $0x32] sm:$0xff]
      %v2459 = vld [vmem:[%s1897 + $0x3a] sm:$0xff]
      %v2460 = vld [vmem:[%s1897 + $0x4a] sm:$0xff]
      %v2461 = vld [vmem:[%s1897 + $0x52] sm:$0xff]
      %v2462 = vld [vmem:[%s1897 + $0x62] sm:$0xff]
      %v2463 = vld [vmem:[%s1897 + $0x6a] sm:$0xff]
      %v2464 = vld [vmem:[%s1897 + $0x7a] sm:$0xff]
      %v2465 = vld [vmem:[%s1897 + $0x82] sm:$0xff]
      %v2466 = vld [vmem:[%s1897 + $0x92] sm:$0xff]
      %v2467 = vld [vmem:[%s1897 + $0x9a] sm:$0xff]
      %v2468 = vld [vmem:[%s1897 + $0xaa] sm:$0xff]
      %v2469 = vld [vmem:[%s1897 + $0xb2] sm:$0xff]
      %v2470 = vld [vmem:[%s1897 + $0xc2] sm:$0xff]
      %v2471 = vld [vmem:[%s1897 + $0xca] sm:$0xff]
      %v2472 = vld [vmem:[%s1897 + $0xda] sm:$0xff]
      %v2473 = vld [vmem:[%s1897 + $0xe2] sm:$0xff]
      %v2474 = vld [vmem:[%s1897 + $0xf2] sm:$0xff]
      %v2475 = vld [vmem:[%s1897 + $0xfa] sm:$0xff]
      %v2476 = vld [vmem:[%s1897 + $0x10a] sm:$0xff]
      %v2477 = vld [vmem:[%s1897 + $0x112] sm:$0xff]
      %v2478 = vld [vmem:[%s1897 + $0x122] sm:$0xff]
      %v2479 = vld [vmem:[%s1897 + $0x12a] sm:$0xff]
      %v2480 = vld [vmem:[%s1897 + $0x13a] sm:$0xff]
      %v2481 = vld [vmem:[%s1897 + $0x142] sm:$0xff]
      %v2482 = vld [vmem:[%s1897 + $0x152] sm:$0xff]
      %v2483 = vld [vmem:[%s1897 + $0x15a] sm:$0xff]
      %v2484 = vld [vmem:[%s1897 + $0x16a] sm:$0xff]
      %v2485 = vld [vmem:[%s1897 + $0x172] sm:$0xff]
      %s2486 = scalar_lea.vmem %s1, 32
      %v2487 = vld [vmem:[%s2486] sm:$0xf]
      %v2489 = vsel %vm182, %v2454, 0
      %v2492 = vsel %vm182, %v2455, 0
      %v2495 = vsel %vm182, %v2456, 0
      %v2498 = vsel %vm182, %v2457, 0
      %v2501 = vsel %vm182, %v2458, 0
      %v2504 = vsel %vm182, %v2459, 0
      %v2507 = vsel %vm182, %v2460, 0
      %v2510 = vsel %vm182, %v2461, 0
      %v2513 = vsel %vm182, %v2462, 0
      %v2516 = vsel %vm182, %v2463, 0
      %v2519 = vsel %vm182, %v2464, 0
      %v2522 = vsel %vm182, %v2465, 0
      %v2525 = vsel %vm182, %v2466, 0
      %v2528 = vsel %vm182, %v2467, 0
      %v2531 = vsel %vm182, %v2468, 0
      %v2534 = vsel %vm182, %v2469, 0
      %v2537 = vsel %vm182, %v2470, 0
      %v2540 = vsel %vm182, %v2471, 0
      %v2543 = vsel %vm182, %v2472, 0
      %v2546 = vsel %vm182, %v2473, 0
      %v2549 = vsel %vm182, %v2474, 0
      %v2552 = vsel %vm182, %v2475, 0
      %v2555 = vsel %vm182, %v2476, 0
      %v2558 = vsel %vm182, %v2477, 0
      %v2561 = vsel %vm182, %v2478, 0
      %v2564 = vsel %vm182, %v2479, 0
      %v2567 = vsel %vm182, %v2480, 0
      %v2570 = vsel %vm182, %v2481, 0
      %v2573 = vsel %vm182, %v2482, 0
      %v2576 = vsel %vm182, %v2483, 0
      %v2579 = vsel %vm182, %v2484, 0
      %v2582 = vsel %vm182, %v2485, 0
      %v2585 = vsel %vm456, %v2487, 0
      %2587 = vmatpush.msra.mxu0 0.0
      %2588 = vmatpush.msra.mxu0 0.0
      %2589 = vmatpush.msra.mxu0 0.0
      %2590 = vmatpush.msra.mxu0 0.0
      %2591 = vmatpush.msra.mxu0 0.0
      %2592 = vmatpush.msra.mxu0 0.0
      %2593 = vmatpush.msra.mxu0 0.0
      %2594 = vmatpush.msra.mxu0 0.0
      %2595 = vmatpush.msra.mxu0 0.0
      %2596 = vmatpush.msra.mxu0 0.0
      %2597 = vmatpush.msra.mxu0 0.0
      %2598 = vmatpush.msra.mxu0 0.0
      %2599 = vmatpush.msra.mxu0 0.0
      %2600 = vmatpush.msra.mxu0 0.0
      %2601 = vmatpush.msra.mxu0 0.0
      %2602 = vmatpush.msra.mxu0 %v2585
      %2603 = vmatmul.f32.gmra.mxu0 %v2489
      %v2604 = vpop.f32.mrf.mxu0
      %v2605 = vadd.f32 0.0, %v2604
      %2606 = vmatmul.f32.gmra.mxu0 %v2492
      %v2607 = vpop.f32.mrf.mxu0
      %v2608 = vadd.f32 0.0, %v2607
      %2609 = vmatmul.f32.gmra.mxu0 %v2495
      %v2610 = vpop.f32.mrf.mxu0
      %v2611 = vadd.f32 0.0, %v2610
      %2612 = vmatmul.f32.gmra.mxu0 %v2498
      %v2613 = vpop.f32.mrf.mxu0
      %v2614 = vadd.f32 0.0, %v2613
      %2615 = vmatmul.f32.gmra.mxu0 %v2501
      %v2616 = vpop.f32.mrf.mxu0
      %v2617 = vadd.f32 0.0, %v2616
      %2618 = vmatmul.f32.gmra.mxu0 %v2504
      %v2619 = vpop.f32.mrf.mxu0
      %v2620 = vadd.f32 0.0, %v2619
      %2621 = vmatmul.f32.gmra.mxu0 %v2507
      %v2622 = vpop.f32.mrf.mxu0
      %v2623 = vadd.f32 0.0, %v2622
      %2624 = vmatmul.f32.gmra.mxu0 %v2510
      %v2625 = vpop.f32.mrf.mxu0
      %v2626 = vadd.f32 0.0, %v2625
      %2627 = vmatmul.f32.gmra.mxu0 %v2513
      %v2628 = vpop.f32.mrf.mxu0
      %v2629 = vadd.f32 0.0, %v2628
      %2630 = vmatmul.f32.gmra.mxu0 %v2516
      %v2631 = vpop.f32.mrf.mxu0
      %v2632 = vadd.f32 0.0, %v2631
      %2633 = vmatmul.f32.gmra.mxu0 %v2519
      %v2634 = vpop.f32.mrf.mxu0
      %v2635 = vadd.f32 0.0, %v2634
      %2636 = vmatmul.f32.gmra.mxu0 %v2522
      %v2637 = vpop.f32.mrf.mxu0
      %v2638 = vadd.f32 0.0, %v2637
      %2639 = vmatmul.f32.gmra.mxu0 %v2525
      %v2640 = vpop.f32.mrf.mxu0
      %v2641 = vadd.f32 0.0, %v2640
      %2642 = vmatmul.f32.gmra.mxu0 %v2528
      %v2643 = vpop.f32.mrf.mxu0
      %v2644 = vadd.f32 0.0, %v2643
      %2645 = vmatmul.f32.gmra.mxu0 %v2531
      %v2646 = vpop.f32.mrf.mxu0
      %v2647 = vadd.f32 0.0, %v2646
      %2648 = vmatmul.f32.gmra.mxu0 %v2534
      %v2649 = vpop.f32.mrf.mxu0
      %v2650 = vadd.f32 0.0, %v2649
      %2651 = vmatmul.f32.gmra.mxu0 %v2537
      %v2652 = vpop.f32.mrf.mxu0
      %v2653 = vadd.f32 0.0, %v2652
      %2654 = vmatmul.f32.gmra.mxu0 %v2540
      %v2655 = vpop.f32.mrf.mxu0
      %v2656 = vadd.f32 0.0, %v2655
      %2657 = vmatmul.f32.gmra.mxu0 %v2543
      %v2658 = vpop.f32.mrf.mxu0
      %v2659 = vadd.f32 0.0, %v2658
      %2660 = vmatmul.f32.gmra.mxu0 %v2546
      %v2661 = vpop.f32.mrf.mxu0
      %v2662 = vadd.f32 0.0, %v2661
      %2663 = vmatmul.f32.gmra.mxu0 %v2549
      %v2664 = vpop.f32.mrf.mxu0
      %v2665 = vadd.f32 0.0, %v2664
      %2666 = vmatmul.f32.gmra.mxu0 %v2552
      %v2667 = vpop.f32.mrf.mxu0
      %v2668 = vadd.f32 0.0, %v2667
      %2669 = vmatmul.f32.gmra.mxu0 %v2555
      %v2670 = vpop.f32.mrf.mxu0
      %v2671 = vadd.f32 0.0, %v2670
      %2672 = vmatmul.f32.gmra.mxu0 %v2558
      %v2673 = vpop.f32.mrf.mxu0
      %v2674 = vadd.f32 0.0, %v2673
      %2675 = vmatmul.f32.gmra.mxu0 %v2561
      %v2676 = vpop.f32.mrf.mxu0
      %v2677 = vadd.f32 0.0, %v2676
      %2678 = vmatmul.f32.gmra.mxu0 %v2564
      %v2679 = vpop.f32.mrf.mxu0
      %v2680 = vadd.f32 0.0, %v2679
      %2681 = vmatmul.f32.gmra.mxu0 %v2567
      %v2682 = vpop.f32.mrf.mxu0
      %v2683 = vadd.f32 0.0, %v2682
      %2684 = vmatmul.f32.gmra.mxu0 %v2570
      %v2685 = vpop.f32.mrf.mxu0
      %v2686 = vadd.f32 0.0, %v2685
      %2687 = vmatmul.f32.gmra.mxu0 %v2573
      %v2688 = vpop.f32.mrf.mxu0
      %v2689 = vadd.f32 0.0, %v2688
      %2690 = vmatmul.f32.gmra.mxu0 %v2576
      %v2691 = vpop.f32.mrf.mxu0
      %v2692 = vadd.f32 0.0, %v2691
      %2693 = vmatmul.f32.gmra.mxu0 %v2579
      %v2694 = vpop.f32.mrf.mxu0
      %v2695 = vadd.f32 0.0, %v2694
      %2696 = vmatmul.f32.gmra.mxu0 %v2582
      %v2697 = vpop.f32.mrf.mxu0
      %v2698 = vadd.f32 0.0, %v2697
      %2699 = vdwg.mxu0
      %v2700 = vadd.f32 %v2422, %v2605
      %v2701 = vadd.f32 %v2423, %v2608
      %v2702 = vadd.f32 %v2424, %v2611
      %v2703 = vadd.f32 %v2425, %v2614
      %v2704 = vadd.f32 %v2426, %v2617
      %v2705 = vadd.f32 %v2427, %v2620
      %v2706 = vadd.f32 %v2428, %v2623
      %v2707 = vadd.f32 %v2429, %v2626
      %v2708 = vadd.f32 %v2430, %v2629
      %v2709 = vadd.f32 %v2431, %v2632
      %v2710 = vadd.f32 %v2432, %v2635
      %v2711 = vadd.f32 %v2433, %v2638
      %v2712 = vadd.f32 %v2434, %v2641
      %v2713 = vadd.f32 %v2435, %v2644
      %v2714 = vadd.f32 %v2436, %v2647
      %v2715 = vadd.f32 %v2437, %v2650
      %v2716 = vadd.f32 %v2438, %v2653
      %v2717 = vadd.f32 %v2439, %v2656
      %v2718 = vadd.f32 %v2440, %v2659
      %v2719 = vadd.f32 %v2441, %v2662
      %v2720 = vadd.f32 %v2442, %v2665
      %v2721 = vadd.f32 %v2443, %v2668
      %v2722 = vadd.f32 %v2444, %v2671
      %v2723 = vadd.f32 %v2445, %v2674
      %v2724 = vadd.f32 %v2446, %v2677
      %v2725 = vadd.f32 %v2447, %v2680
      %v2726 = vadd.f32 %v2448, %v2683
      %v2727 = vadd.f32 %v2449, %v2686
      %v2728 = vadd.f32 %v2450, %v2689
      %v2729 = vadd.f32 %v2451, %v2692
      %v2730 = vadd.f32 %v2452, %v2695
      %v2731 = vadd.f32 %v2453, %v2698
      %2732 = vst.msk [vmem:[%s177] sm:$0xff] %vm182, %v2700
      %2733 = vst.msk [vmem:[%s177 + $0x8] sm:$0xff] %vm182, %v2701
      %2734 = vst.msk [vmem:[%s177 + $0x10] sm:$0xff] %vm182, %v2702
      %2735 = vst.msk [vmem:[%s177 + $0x18] sm:$0xff] %vm182, %v2703
      %2736 = vst.msk [vmem:[%s177 + $0x20] sm:$0xff] %vm182, %v2704
      %2737 = vst.msk [vmem:[%s177 + $0x28] sm:$0xff] %vm182, %v2705
      %2738 = vst.msk [vmem:[%s177 + $0x30] sm:$0xff] %vm182, %v2706
      %2739 = vst.msk [vmem:[%s177 + $0x38] sm:$0xff] %vm182, %v2707
      %2740 = vst.msk [vmem:[%s177 + $0x40] sm:$0xff] %vm182, %v2708
      %2741 = vst.msk [vmem:[%s177 + $0x48] sm:$0xff] %vm182, %v2709
      %2742 = vst.msk [vmem:[%s177 + $0x50] sm:$0xff] %vm182, %v2710
      %2743 = vst.msk [vmem:[%s177 + $0x58] sm:$0xff] %vm182, %v2711
      %2744 = vst.msk [vmem:[%s177 + $0x60] sm:$0xff] %vm182, %v2712
      %2745 = vst.msk [vmem:[%s177 + $0x68] sm:$0xff] %vm182, %v2713
      %2746 = vst.msk [vmem:[%s177 + $0x70] sm:$0xff] %vm182, %v2714
      %2747 = vst.msk [vmem:[%s177 + $0x78] sm:$0xff] %vm182, %v2715
      %2748 = vst.msk [vmem:[%s177 + $0x80] sm:$0xff] %vm182, %v2716
      %2749 = vst.msk [vmem:[%s177 + $0x88] sm:$0xff] %vm182, %v2717
      %2750 = vst.msk [vmem:[%s177 + $0x90] sm:$0xff] %vm182, %v2718
      %2751 = vst.msk [vmem:[%s177 + $0x98] sm:$0xff] %vm182, %v2719
      %2752 = vst.msk [vmem:[%s177 + $0xa0] sm:$0xff] %vm182, %v2720
      %2753 = vst.msk [vmem:[%s177 + $0xa8] sm:$0xff] %vm182, %v2721
      %2754 = vst.msk [vmem:[%s177 + $0xb0] sm:$0xff] %vm182, %v2722
      %2755 = vst.msk [vmem:[%s177 + $0xb8] sm:$0xff] %vm182, %v2723
      %2756 = vst.msk [vmem:[%s177 + $0xc0] sm:$0xff] %vm182, %v2724
      %2757 = vst.msk [vmem:[%s177 + $0xc8] sm:$0xff] %vm182, %v2725
      %2758 = vst.msk [vmem:[%s177 + $0xd0] sm:$0xff] %vm182, %v2726
      %2759 = vst.msk [vmem:[%s177 + $0xd8] sm:$0xff] %vm182, %v2727
      %2760 = vst.msk [vmem:[%s177 + $0xe0] sm:$0xff] %vm182, %v2728
      %2761 = vst.msk [vmem:[%s177 + $0xe8] sm:$0xff] %vm182, %v2729
      %2762 = vst.msk [vmem:[%s177 + $0xf0] sm:$0xff] %vm182, %v2730
      %2763 = vst.msk [vmem:[%s177 + $0xf8] sm:$0xff] %vm182, %v2731
      %v2764 = vsel %vm182, %v2700, 0.0
      %v2765 = vsel %vm182, %v2701, 0.0
      %v2766 = vadd.f32 %v2764, %v2765
      %v2767 = vsel %vm182, %v2702, 0.0
      %v2768 = vadd.f32 %v2766, %v2767
      %v2769 = vsel %vm182, %v2703, 0.0
      %v2770 = vadd.f32 %v2768, %v2769
      %v2771 = vsel %vm182, %v2704, 0.0
      %v2772 = vadd.f32 %v2770, %v2771
      %v2773 = vsel %vm182, %v2705, 0.0
      %v2774 = vadd.f32 %v2772, %v2773
      %v2775 = vsel %vm182, %v2706, 0.0
      %v2776 = vadd.f32 %v2774, %v2775
      %v2777 = vsel %vm182, %v2707, 0.0
      %v2778 = vadd.f32 %v2776, %v2777
      %v2779 = vsel %vm182, %v2708, 0.0
      %v2780 = vadd.f32 %v2778, %v2779
      %v2781 = vsel %vm182, %v2709, 0.0
      %v2782 = vadd.f32 %v2780, %v2781
      %v2783 = vsel %vm182, %v2710, 0.0
      %v2784 = vadd.f32 %v2782, %v2783
      %v2785 = vsel %vm182, %v2711, 0.0
      %v2786 = vadd.f32 %v2784, %v2785
      %v2787 = vsel %vm182, %v2712, 0.0
      %v2788 = vadd.f32 %v2786, %v2787
      %v2789 = vsel %vm182, %v2713, 0.0
      %v2790 = vadd.f32 %v2788, %v2789
      %v2791 = vsel %vm182, %v2714, 0.0
      %v2792 = vadd.f32 %v2790, %v2791
      %v2793 = vsel %vm182, %v2715, 0.0
      %v2794 = vadd.f32 %v2792, %v2793
      %v2795 = vsel %vm182, %v2716, 0.0
      %v2796 = vadd.f32 %v2794, %v2795
      %v2797 = vsel %vm182, %v2717, 0.0
      %v2798 = vadd.f32 %v2796, %v2797
      %v2799 = vsel %vm182, %v2718, 0.0
      %v2800 = vadd.f32 %v2798, %v2799
      %v2801 = vsel %vm182, %v2719, 0.0
      %v2802 = vadd.f32 %v2800, %v2801
      %v2803 = vsel %vm182, %v2720, 0.0
      %v2804 = vadd.f32 %v2802, %v2803
      %v2805 = vsel %vm182, %v2721, 0.0
      %v2806 = vadd.f32 %v2804, %v2805
      %v2807 = vsel %vm182, %v2722, 0.0
      %v2808 = vadd.f32 %v2806, %v2807
      %v2809 = vsel %vm182, %v2723, 0.0
      %v2810 = vadd.f32 %v2808, %v2809
      %v2811 = vsel %vm182, %v2724, 0.0
      %v2812 = vadd.f32 %v2810, %v2811
      %v2813 = vsel %vm182, %v2725, 0.0
      %v2814 = vadd.f32 %v2812, %v2813
      %v2815 = vsel %vm182, %v2726, 0.0
      %v2816 = vadd.f32 %v2814, %v2815
      %v2817 = vsel %vm182, %v2727, 0.0
      %v2818 = vadd.f32 %v2816, %v2817
      %v2819 = vsel %vm182, %v2728, 0.0
      %v2820 = vadd.f32 %v2818, %v2819
      %v2821 = vsel %vm182, %v2729, 0.0
      %v2822 = vadd.f32 %v2820, %v2821
      %v2823 = vsel %vm182, %v2730, 0.0
      %v2824 = vadd.f32 %v2822, %v2823
      %v2825 = vsel %vm182, %v2731, 0.0
      %v2826 = vadd.f32 %v2824, %v2825
      %v2827 = vrot.slane %v2826, 4
      %v2828 = vadd.f32 %v2826, %v2827
      %v2829 = vrot.slane %v2828, 2
      %v2830 = vadd.f32 %v2828, %v2829
      %v2831 = vrot.slane %v2830, 1
      %v2832 = vadd.f32 %v2830, %v2831
      %2833 = vst.msk [vmem:[%s181] sm:$0x1] %vm191, %v2832
      %v2834 = vmul.f32 %v2700, %v2700
      %v2835 = vmul.f32 %v2701, %v2701
      %v2836 = vmul.f32 %v2702, %v2702
      %v2837 = vmul.f32 %v2703, %v2703
      %v2838 = vmul.f32 %v2704, %v2704
      %v2839 = vmul.f32 %v2705, %v2705
      %v2840 = vmul.f32 %v2706, %v2706
      %v2841 = vmul.f32 %v2707, %v2707
      %v2842 = vmul.f32 %v2708, %v2708
      %v2843 = vmul.f32 %v2709, %v2709
      %v2844 = vmul.f32 %v2710, %v2710
      %v2845 = vmul.f32 %v2711, %v2711
      %v2846 = vmul.f32 %v2712, %v2712
      %v2847 = vmul.f32 %v2713, %v2713
      %v2848 = vmul.f32 %v2714, %v2714
      %v2849 = vmul.f32 %v2715, %v2715
      %v2850 = vmul.f32 %v2716, %v2716
      %v2851 = vmul.f32 %v2717, %v2717
      %v2852 = vmul.f32 %v2718, %v2718
      %v2853 = vmul.f32 %v2719, %v2719
      %v2854 = vmul.f32 %v2720, %v2720
      %v2855 = vmul.f32 %v2721, %v2721
      %v2856 = vmul.f32 %v2722, %v2722
      %v2857 = vmul.f32 %v2723, %v2723
      %v2858 = vmul.f32 %v2724, %v2724
      %v2859 = vmul.f32 %v2725, %v2725
      %v2860 = vmul.f32 %v2726, %v2726
      %v2861 = vmul.f32 %v2727, %v2727
      %v2862 = vmul.f32 %v2728, %v2728
      %v2863 = vmul.f32 %v2729, %v2729
      %v2864 = vmul.f32 %v2730, %v2730
      %v2865 = vmul.f32 %v2731, %v2731
      %v2866 = vsel %vm182, %v2834, 0.0
      %v2867 = vsel %vm182, %v2835, 0.0
      %v2868 = vadd.f32 %v2866, %v2867
      %v2869 = vsel %vm182, %v2836, 0.0
      %v2870 = vadd.f32 %v2868, %v2869
      %v2871 = vsel %vm182, %v2837, 0.0
      %v2872 = vadd.f32 %v2870, %v2871
      %v2873 = vsel %vm182, %v2838, 0.0
      %v2874 = vadd.f32 %v2872, %v2873
      %v2875 = vsel %vm182, %v2839, 0.0
      %v2876 = vadd.f32 %v2874, %v2875
      %v2877 = vsel %vm182, %v2840, 0.0
      %v2878 = vadd.f32 %v2876, %v2877
      %v2879 = vsel %vm182, %v2841, 0.0
      %v2880 = vadd.f32 %v2878, %v2879
      %v2881 = vsel %vm182, %v2842, 0.0
      %v2882 = vadd.f32 %v2880, %v2881
      %v2883 = vsel %vm182, %v2843, 0.0
      %v2884 = vadd.f32 %v2882, %v2883
      %v2885 = vsel %vm182, %v2844, 0.0
      %v2886 = vadd.f32 %v2884, %v2885
      %v2887 = vsel %vm182, %v2845, 0.0
      %v2888 = vadd.f32 %v2886, %v2887
      %v2889 = vsel %vm182, %v2846, 0.0
      %v2890 = vadd.f32 %v2888, %v2889
      %v2891 = vsel %vm182, %v2847, 0.0
      %v2892 = vadd.f32 %v2890, %v2891
      %v2893 = vsel %vm182, %v2848, 0.0
      %v2894 = vadd.f32 %v2892, %v2893
      %v2895 = vsel %vm182, %v2849, 0.0
      %v2896 = vadd.f32 %v2894, %v2895
      %v2897 = vsel %vm182, %v2850, 0.0
      %v2898 = vadd.f32 %v2896, %v2897
      %v2899 = vsel %vm182, %v2851, 0.0
      %v2900 = vadd.f32 %v2898, %v2899
      %v2901 = vsel %vm182, %v2852, 0.0
      %v2902 = vadd.f32 %v2900, %v2901
      %v2903 = vsel %vm182, %v2853, 0.0
      %v2904 = vadd.f32 %v2902, %v2903
      %v2905 = vsel %vm182, %v2854, 0.0
      %v2906 = vadd.f32 %v2904, %v2905
      %v2907 = vsel %vm182, %v2855, 0.0
      %v2908 = vadd.f32 %v2906, %v2907
      %v2909 = vsel %vm182, %v2856, 0.0
      %v2910 = vadd.f32 %v2908, %v2909
      %v2911 = vsel %vm182, %v2857, 0.0
      %v2912 = vadd.f32 %v2910, %v2911
      %v2913 = vsel %vm182, %v2858, 0.0
      %v2914 = vadd.f32 %v2912, %v2913
      %v2915 = vsel %vm182, %v2859, 0.0
      %v2916 = vadd.f32 %v2914, %v2915
      %v2917 = vsel %vm182, %v2860, 0.0
      %v2918 = vadd.f32 %v2916, %v2917
      %v2919 = vsel %vm182, %v2861, 0.0
      %v2920 = vadd.f32 %v2918, %v2919
      %v2921 = vsel %vm182, %v2862, 0.0
      %v2922 = vadd.f32 %v2920, %v2921
      %v2923 = vsel %vm182, %v2863, 0.0
      %v2924 = vadd.f32 %v2922, %v2923
      %v2925 = vsel %vm182, %v2864, 0.0
      %v2926 = vadd.f32 %v2924, %v2925
      %v2927 = vsel %vm182, %v2865, 0.0
      %v2928 = vadd.f32 %v2926, %v2927
      %v2929 = vrot.slane %v2928, 4
      %v2930 = vadd.f32 %v2928, %v2929
      %v2931 = vrot.slane %v2930, 2
      %v2932 = vadd.f32 %v2930, %v2931
      %v2933 = vrot.slane %v2932, 1
      %v2934 = vadd.f32 %v2932, %v2933
      %2935 = vst.msk [vmem:[%s181 + $0x1] sm:$0x1] %vm191, %v2934
      %p2936 = scmp.lt.s32.totalorder %s15, 1
      %s2937 = scalar_select %p2936, %s15, 1
      %s2938 = smul.addr %s2937, 32
      %s2939 = smul.addr %s2938, 8
      %s2940 = scalar_lea.vmem %s2, %s2939
      %p2941 = scmp.lt.s32.totalorder %s15, 1
      %s2942 = scalar_select %p2941, %s15, 1
      %s2943 = smul.addr %s2942, 2
      %s2944 = scalar_lea.vmem %s3, %s2943
      // Predicated region
      $region29: #{residual_block_nchw.3} parent=27 // pred_check
        %p2945 = pneg %p80
      $region30: #{residual_block_nchw.3} parent=27 // pred_check_branch
        %2947 = sbr.rel (%p2945) target = $region32
      $region31: #{residual_block_nchw.3} parent=27 // pred_region
        _
      $region32: #{residual_block_nchw.3} parent=27 // pred_fallthru
        _
      // Predicated region
      $region33: #{residual_block_nchw.3} parent=27 // pred_check
        %p2948 = pneg %p106
      $region34: #{residual_block_nchw.3} parent=27 // pred_check_branch
        %2950 = sbr.rel (%p2948) target = $region36
      $region35: #{residual_block_nchw.3} parent=27 // pred_region
        _
      $region36: #{residual_block_nchw.3} parent=27 // pred_fallthru
        _
    $region28: #{residual_block_nchw.3} parent=5 // pred_fallthru
      _
    %p2951 = scmp.le.s32.totalorder 2, %s10
    // Predicated region
    $region37: #{residual_block_nchw.3} parent=5 // pred_check
      %p2952 = pneg %p2951
    $region38: #{residual_block_nchw.3} parent=5 // pred_check_branch
      %2954 = sbr.rel (%p2952) target = $region40
    $region39: #{residual_block_nchw.3} parent=5 // pred_region
      %s2955 = ssub.s32 %s10, 2
      // Predicated region
      $region41: #{residual_block_nchw.3} parent=39 // pred_check
        %p2956 = pneg %p86
      $region42: #{residual_block_nchw.3} parent=39 // pred_check_branch
        %2958 = sbr.rel (%p2956) target = $region44
      $region43: #{residual_block_nchw.3} parent=39 // pred_region
        %p2959 = scmp.lt.s32.totalorder %s16, 1
        %s2960 = scalar_select %p2959, %s16, 1
        %s2961 = smul.addr %s2960, 32
        %s2962 = smul.addr %s2961, 8
        %s2963 = scalar_lea.vmem %s2, %s2962
      $region44: #{residual_block_nchw.3} parent=39 // pred_fallthru
        _
      // Predicated region
      $region45: #{residual_block_nchw.3} parent=39 // pred_check
        %p2964 = pneg %p112
      $region46: #{residual_block_nchw.3} parent=39 // pred_check_branch
        %2966 = sbr.rel (%p2964) target = $region48
      $region47: #{residual_block_nchw.3} parent=39 // pred_region
        %p2967 = scmp.lt.s32.totalorder %s16, 1
        %s2968 = scalar_select %p2967, %s16, 1
        %s2969 = smul.addr %s2968, 2
        %s2970 = scalar_lea.vmem %s3, %s2969
      $region48: #{residual_block_nchw.3} parent=39 // pred_fallthru
        _
    $region40: #{residual_block_nchw.3} parent=5 // pred_fallthru
      _
  $region6: #{residual_block_nchw.3} parent=0 // loop_footer
    %s14 = sadd.s32 1, %s10
  $region7: #{residual_block_nchw.3} parent=0 // loop_footer_branch
    %9 = sbr.rel target = $region3
  $region8: #{residual_block_nchw.3} parent=0 // loop_exit
    _

// kernel: residual_block_nchw.4
$region0: #{residual_block_nchw.4}
  #allocation0 [shape = 'u32[]', space=smem, size = 0x4, offset = 0x4, fixed_abs, tag = 'smem constant byte address 0x4 - core index']
  #allocation1 [shape = 'u32[72,128]{1,0:T(1,128)}', space=vmem, size = 0x9000, scoped, tag = 'internal scratch']
  #allocation2 [shape = 'f32[1,18,18,4]{3,2,1,0:T(8,128)}', space=vmem, size = 0x36000, scoped, tag = 'scratch operand']
  %s0 = inlined_call_operand.vmem [shape: f32[2,256,4], index: 0, kind: input, shape index: {}]
  %s1 = inlined_call_operand.vmem [shape: f32[1,4], index: 1, kind: input, shape index: {}]
  %s2 = inlined_call_operand.vmem [shape: f32[1,4], index: 2, kind: input, shape index: {}]
  %s3 = inlined_call_operand.vmem [shape: f32[9,4,4], index: 3, kind: input, shape index: {}]
  %s4 = inlined_call_operand.vmem [shape: f32[2,256,4], index: 4, kind: output, shape index: {0}]
  %s5 = inlined_call_operand.vmem [shape: f32[2,2,4], index: 5, kind: output, shape index: {1}]
  %6 = xla_tuple %s4, %s5
  %s7 = sld [smem:[#allocation0]]
  $region57: #{residual_block_nchw.4} parent=0
    _
  %s9 = ssub.s32 1, %s7
  %s10 = scalar_select 0, %s9, %s7
  loop: start=0, step=1, limit=4
  $region2: #{residual_block_nchw.4} parent=0 // loop_pre_header
    _
  $region3: #{residual_block_nchw.4} parent=0 // loop_header
    %s12 = sphi 0, %s16
    %p13 = scmp.ge.s32.totalorder %s12, 4
    %s22 = sphi 0, %s24
    %s25 = sphi 0, %s22
    %s26 = sphi 0, %s25
    %s42 = sphi 0, %s26
    %s46 = sphi 0, %s46
    %s48 = sphi 0, %s46
    %s49 = sphi 0, %s48
    %s63 = sphi 0, %s49
    %s67 = sphi 0, %s67
    %s69 = sphi 0, %s67
    %s70 = sphi 0, %s69
    %s84 = sphi 0, %s70
    %s88 = sphi 0, %s88
    %s90 = sphi 0, %s88
    %s91 = sphi 0, %s90
    %s105 = sphi 0, %s91
    %s111 = sphi 0, %s113
    %s114 = sphi 0, %s111
    %s115 = sphi 0, %s114
    %s131 = sphi 0, %s115
    %s137 = sphi 0, %s139
    %s140 = sphi 0, %s137
    %s141 = sphi 0, %s140
    %s157 = sphi 0, %s141
  $region4: #{residual_block_nchw.4} parent=0 // loop_header_branch
    %15 = sbr.rel (%p13) target = $region8
  $region5: #{residual_block_nchw.4} parent=0 // loop_body
    %s17 = ssub.s32 %s12, 1
    %s18 = ssub.s32 %s12, 2
    %s19 = sadd.s32 %s12, 1
    %s20 = ssub.s32 %s12, %s19
    %p21 = scmp.eq.s32.totalorder %s20, 0
    %s23 = sadd.s32 %s22, 1
    %s24 = scalar_select %p21, %s22, %s23
    %p27 = pneg %p21
    %p28 = scmp.eq.s32.totalorder %s12, 1
    %p29 = por %p27, %p28
    %p30 = scmp.ne.s32.totalorder %s22, %s25
    %p31 = scmp.eq.s32.totalorder %s12, 0
    %p32 = por %p30, %p31
    %p33 = scmp.ne.s32.totalorder %s22, %s25
    %p34 = scmp.eq.s32.totalorder %s17, 1
    %p35 = por %p33, %p34
    %p36 = scmp.ne.s32.totalorder %s25, %s26
    %p37 = scmp.eq.s32.totalorder %s17, 0
    %p38 = por %p36, %p37
    %p39 = scmp.ne.s32.totalorder %s25, %s26
    %p40 = scmp.eq.s32.totalorder %s18, 1
    %p41 = por %p39, %p40
    %p43 = scmp.ne.s32.totalorder %s26, %s42
    %p44 = scmp.eq.s32.totalorder %s18, 0
    %p45 = por %p43, %p44
    %s47 = sadd.s32 %s46, 1
    %p50 = scmp.eq.s32.totalorder %s12, 1
    %p51 = scmp.ne.s32.totalorder %s46, %s48
    %p52 = scmp.eq.s32.totalorder %s12, 0
    %p53 = por %p51, %p52
    %p54 = scmp.ne.s32.totalorder %s46, %s48
    %p55 = scmp.eq.s32.totalorder %s17, 1
    %p56 = por %p54, %p55
    %p57 = scmp.ne.s32.totalorder %s48, %s49
    %p58 = scmp.eq.s32.totalorder %s17, 0
    %p59 = por %p57, %p58
    %p60 = scmp.ne.s32.totalorder %s48, %s49
    %p61 = scmp.eq.s32.totalorder %s18, 1
    %p62 = por %p60, %p61
    %p64 = scmp.ne.s32.totalorder %s49, %s63
    %p65 = scmp.eq.s32.totalorder %s18, 0
    %p66 = por %p64, %p65
    %s68 = sadd.s32 %s67, 1
    %p71 = scmp.eq.s32.totalorder %s12, 1
    %p72 = scmp.ne.s32.totalorder %s67, %s69
    %p73 = scmp.eq.s32.totalorder %s12, 0
    %p74 = por %p72, %p73
    %p75 = scmp.ne.s32.totalorder %s67, %s69
    %p76 = scmp.eq.s32.totalorder %s17, 1
    %p77 = por %p75, %p76
    %p78 = scmp.ne.s32.totalorder %s69, %s70
    %p79 = scmp.eq.s32.totalorder %s17, 0
    %p80 = por %p78, %p79
    %p81 = scmp.ne.s32.totalorder %s69, %s70
    %p82 = scmp.eq.s32.totalorder %s18, 1
    %p83 = por %p81, %p82
    %p85 = scmp.ne.s32.totalorder %s70, %s84
    %p86 = scmp.eq.s32.totalorder %s18, 0
    %p87 = por %p85, %p86
    %s89 = sadd.s32 %s88, 1
    %p92 = scmp.eq.s32.totalorder %s12, 1
    %p93 = scmp.ne.s32.totalorder %s88, %s90
    %p94 = scmp.eq.s32.totalorder %s12, 0
    %p95 = por %p93, %p94
    %p96 = scmp.ne.s32.totalorder %s88, %s90
    %p97 = scmp.eq.s32.totalorder %s17, 1
    %p98 = por %p96, %p97
    %p99 = scmp.ne.s32.totalorder %s90, %s91
    %p100 = scmp.eq.s32.totalorder %s17, 0
    %p101 = por %p99, %p100
    %p102 = scmp.ne.s32.totalorder %s90, %s91
    %p103 = scmp.eq.s32.totalorder %s18, 1
    %p104 = por %p102, %p103
    %p106 = scmp.ne.s32.totalorder %s91, %s105
    %p107 = scmp.eq.s32.totalorder %s18, 0
    %p108 = por %p106, %p107
    %s109 = ssub.s32 %s12, %s19
    %p110 = scmp.eq.s32.totalorder %s109, 0
    %s112 = sadd.s32 %s111, 1
    %s113 = scalar_select %p110, %s111, %s112
    %p116 = pneg %p110
    %p117 = scmp.eq.s32.totalorder %s12, 1
    %p118 = por %p116, %p117
    %p119 = scmp.ne.s32.totalorder %s111, %s114
    %p120 = scmp.eq.s32.totalorder %s12, 0
    %p121 = por %p119, %p120
    %p122 = scmp.ne.s32.totalorder %s111, %s114
    %p123 = scmp.eq.s32.totalorder %s17, 1
    %p124 = por %p122, %p123
    %p125 = scmp.ne.s32.totalorder %s114, %s115
    %p126 = scmp.eq.s32.totalorder %s17, 0
    %p127 = por %p125, %p126
    %p128 = scmp.ne.s32.totalorder %s114, %s115
    %p129 = scmp.eq.s32.totalorder %s18, 1
    %p130 = por %p128, %p129
    %p132 = scmp.ne.s32.totalorder %s115, %s131
    %p133 = scmp.eq.s32.totalorder %s18, 0
    %p134 = por %p132, %p133
    %s135 = ssub.s32 %s12, %s19
    %p136 = scmp.eq.s32.totalorder %s135, 0
    %s138 = sadd.s32 %s137, 1
    %s139 = scalar_select %p136, %s137, %s138
    %p142 = pneg %p136
    %p143 = scmp.eq.s32.totalorder %s12, 1
    %p144 = por %p142, %p143
    %p145 = scmp.ne.s32.totalorder %s137, %s140
    %p146 = scmp.eq.s32.totalorder %s12, 0
    %p147 = por %p145, %p146
    %p148 = scmp.ne.s32.totalorder %s137, %s140
    %p149 = scmp.eq.s32.totalorder %s17, 1
    %p150 = por %p148, %p149
    %p151 = scmp.ne.s32.totalorder %s140, %s141
    %p152 = scmp.eq.s32.totalorder %s17, 0
    %p153 = por %p151, %p152
    %p154 = scmp.ne.s32.totalorder %s140, %s141
    %p155 = scmp.eq.s32.totalorder %s18, 1
    %p156 = por %p154, %p155
    %p158 = scmp.ne.s32.totalorder %s141, %s157
    %p159 = scmp.eq.s32.totalorder %s18, 0
    %p160 = por %p158, %p159
    %p161 = scmp.le.s32.totalorder 1, %s12
    %p162 = scmp.lt.s32.totalorder %s12, 3
    %p163 = pnand %p161, %p162
    %p164 = pneg %p163
    // Predicated region
    $region9: #{residual_block_nchw.4} parent=5 // pred_check
      _
    $region10: #{residual_block_nchw.4} parent=5 // pred_check_branch
      %166 = sbr.rel (%p163) target = $region12
    $region11: #{residual_block_nchw.4} parent=5 // pred_region
      %s167 = ssub.s32 %s12, 1
      // Predicated region
      $region13: #{residual_block_nchw.4} parent=11 // pred_check
        %p168 = pneg %p59
      $region14: #{residual_block_nchw.4} parent=11 // pred_check_branch
        %170 = sbr.rel (%p168) target = $region16
      $region15: #{residual_block_nchw.4} parent=11 // pred_region
        _
      $region16: #{residual_block_nchw.4} parent=11 // pred_fallthru
        _
      // Predicated region
      $region17: #{residual_block_nchw.4} parent=11 // pred_check
        %p171 = pneg %p80
      $region18: #{residual_block_nchw.4} parent=11 // pred_check_branch
        %173 = sbr.rel (%p171) target = $region20
      $region19: #{residual_block_nchw.4} parent=11 // pred_region
        _
      $region20: #{residual_block_nchw.4} parent=11 // pred_fallthru
        _
      // Predicated region
      $region21: #{residual_block_nchw.4} parent=11 // pred_check
        %p174 = pneg %p101
      $region22: #{residual_block_nchw.4} parent=11 // pred_check_branch
        %176 = sbr.rel (%p174) target = $region24
      $region23: #{residual_block_nchw.4} parent=11 // pred_region
        _
      $region24: #{residual_block_nchw.4} parent=11 // pred_fallthru
        _
    $region12: #{residual_block_nchw.4} parent=5 // pred_fallthru
      _
    %p177 = scmp.lt.s32.totalorder %s12, 2
    // Predicated region
    $region25: #{residual_block_nchw.4} parent=5 // pred_check
      %p178 = pneg %p177
    $region26: #{residual_block_nchw.4} parent=5 // pred_check_branch
      %180 = sbr.rel (%p178) target = $region28
    $region27: #{residual_block_nchw.4} parent=5 // pred_region
      // Predicated region
      $region29: #{residual_block_nchw.4} parent=27 // pred_check
        %p181 = pneg %p32
      $region30: #{residual_block_nchw.4} parent=27 // pred_check_branch
        %183 = sbr.rel (%p181) target = $region32
      $region31: #{residual_block_nchw.4} parent=27 // pred_region
        %p184 = scmp.lt.s32.totalorder %s12, 1
        %s185 = scalar_select %p184, %s12, 1
        %s186 = smul.addr %s185, 32
        %s187 = smul.addr %s186, 8
        %s188 = scalar_lea.vmem %s0, %s187
      $region32: #{residual_block_nchw.4} parent=27 // pred_fallthru
        _
    $region28: #{residual_block_nchw.4} parent=5 // pred_fallthru
      _
    %p189 = scmp.le.s32.totalorder 1, %s12
    %p190 = scmp.lt.s32.totalorder %s12, 3
    %p191 = pnand %p189, %p190
    %p192 = pneg %p191
    // Predicated region
    $region33: #{residual_block_nchw.4} parent=5 // pred_check
      _
    $region34: #{residual_block_nchw.4} parent=5 // pred_check_branch
      %194 = sbr.rel (%p191) target = $region36
    $region35: #{residual_block_nchw.4} parent=5 // pred_region
      %s195 = ssub.s32 %s12, 1
      %p196 = scmp.lt.s32.totalorder %s17, 1
      %s197 = scalar_select %p196, %s17, 1
      %s198 = smul.addr %s197, 32
      %s199 = smul.addr %s198, 8
      %s200 = scalar_lea.vmem %s0, %s199
      %p201 = pneg %p38
      %p202 = pneg %p35
      %p203 = pneg %p59
      %p204 = pneg %p56
      %p205 = pneg %p80
      %p206 = pneg %p77
      %p207 = pneg %p101
      %p208 = pneg %p98
      %p209 = pneg %p127
      %p210 = pneg %p124
      %p211 = scmp.lt.s32.totalorder %s17, 1
      %s212 = scalar_select %p211, %s17, 1
      %s213 = smul.addr %s212, 32
      %s214 = smul.addr %s213, 8
      %s215 = scalar_lea.vmem %s4, %s214
      %p216 = pneg %p153
      %p217 = pneg %p150
      %p218 = scmp.lt.s32.totalorder %s17, 1
      %s219 = scalar_select %p218, %s17, 1
      %s220 = smul.addr %s219, 2
      %s221 = scalar_lea.vmem %s5, %s220
      %p222 = scmp.lt.s32.totalorder %s17, 1
      %s223 = scalar_select %p222, %s17, 1
      %s224 = smul.addr %s223, 32
      %s225 = smul.addr %s224, 8
      %s226 = scalar_lea.vmem %s0, %s225
      %p227 = scmp.lt.s32.totalorder %s17, 1
      %s228 = scalar_select %p227, %s17, 1
      %s229 = smul.addr %s228, 32
      %s230 = smul.addr %s229, 8
      %s231 = scalar_lea.vmem %s4, %s230
      %p232 = scmp.lt.s32.totalorder %s17, 1
      %s233 = scalar_select %p232, %s17, 1
      %s234 = smul.addr %s233, 2
      %s235 = scalar_lea.vmem %s5, %s234
      %v236 = vld [vmem:[%s226] sm:$0xff]
      %v237 = vld [vmem:[%s226 + $0x8] sm:$0xff]
      %v238 = vld [vmem:[%s226 + $0x10] sm:$0xff]
      %v239 = vld [vmem:[%s226 + $0x18] sm:$0xff]
      %v240 = vld [vmem:[%s226 + $0x20] sm:$0xff]
      %v241 = vld [vmem:[%s226 + $0x28] sm:$0xff]
      %v242 = vld [vmem:[%s226 + $0x30] sm:$0xff]
      %v243 = vld [vmem:[%s226 + $0x38] sm:$0xff]
      %v244 = vld [vmem:[%s226 + $0x40] sm:$0xff]
      %v245 = vld [vmem:[%s226 + $0x48] sm:$0xff]
      %v246 = vld [vmem:[%s226 + $0x50] sm:$0xff]
      %v247 = vld [vmem:[%s226 + $0x58] sm:$0xff]
      %v248 = vld [vmem:[%s226 + $0x60] sm:$0xff]
      %v249 = vld [vmem:[%s226 + $0x68] sm:$0xff]
      %v250 = vld [vmem:[%s226 + $0x70] sm:$0xff]
      %v251 = vld [vmem:[%s226 + $0x78] sm:$0xff]
      %v252 = vld [vmem:[%s226 + $0x80] sm:$0xff]
      %v253 = vld [vmem:[%s226 + $0x88] sm:$0xff]
      %v254 = vld [vmem:[%s226 + $0x90] sm:$0xff]
      %v255 = vld [vmem:[%s226 + $0x98] sm:$0xff]
      %v256 = vld [vmem:[%s226 + $0xa0] sm:$0xff]
      %v257 = vld [vmem:[%s226 + $0xa8] sm:$0xff]
      %v258 = vld [vmem:[%s226 + $0xb0] sm:$0xff]
      %v259 = vld [vmem:[%s226 + $0xb8] sm:$0xff]
      %v260 = vld [vmem:[%s226 + $0xc0] sm:$0xff]
      %v261 = vld [vmem:[%s226 + $0xc8] sm:$0xff]
      %v262 = vld [vmem:[%s226 + $0xd0] sm:$0xff]
      %v263 = vld [vmem:[%s226 + $0xd8] sm:$0xff]
      %v264 = vld [vmem:[%s226 + $0xe0] sm:$0xff]
      %v265 = vld [vmem:[%s226 + $0xe8] sm:$0xff]
      %v266 = vld [vmem:[%s226 + $0xf0] sm:$0xff]
      %v267 = vld [vmem:[%s226 + $0xf8] sm:$0xff]
      %v268 = vld [vmem:[%s1] sm:$0x1]
      %v270 = vperm.slane %v268, 0
      %v272 = vmul.f32 %v236, %v270
      %v273 = vmul.f32 %v237, %v270
      %v274 = vmul.f32 %v238, %v270
      %v275 = vmul.f32 %v239, %v270
      %v276 = vmul.f32 %v240, %v270
      %v277 = vmul.f32 %v241, %v270
      %v278 = vmul.f32 %v242, %v270
      %v279 = vmul.f32 %v243, %v270
      %v280 = vmul.f32 %v244, %v270
      %v281 = vmul.f32 %v245, %v270
      %v282 = vmul.f32 %v246, %v270
      %v283 = vmul.f32 %v247, %v270
      %v284 = vmul.f32 %v248, %v270
      %v285 = vmul.f32 %v249, %v270
      %v286 = vmul.f32 %v250, %v270
      %v287 = vmul.f32 %v251, %v270
      %v288 = vmul.f32 %v252, %v270
      %v289 = vmul.f32 %v253, %v270
      %v290 = vmul.f32 %v254, %v270
      %v291 = vmul.f32 %v255, %v270
      %v292 = vmul.f32 %v256, %v270
      %v293 = vmul.f32 %v257, %v270
      %v294 = vmul.f32 %v258, %v270
      %v295 = vmul.f32 %v259, %v270
      %v296 = vmul.f32 %v260, %v270
      %v297 = vmul.f32 %v261, %v270
      %v298 = vmul.f32 %v262, %v270
      %v299 = vmul.f32 %v263, %v270
      %v300 = vmul.f32 %v264, %v270
      %v301 = vmul.f32 %v265, %v270
      %v302 = vmul.f32 %v266, %v270
      %v303 = vmul.f32 %v267, %v270
      %v304 = vld [vmem:[%s2] sm:$0x1]
      %v306 = vperm.slane %v304, 0
      %v308 = vadd.f32 %v272, %v306
      %v309 = vadd.f32 %v273, %v306
      %v310 = vadd.f32 %v274, %v306
      %v311 = vadd.f32 %v275, %v306
      %v312 = vadd.f32 %v276, %v306
      %v313 = vadd.f32 %v277, %v306
      %v314 = vadd.f32 %v278, %v306
      %v315 = vadd.f32 %v279, %v306
      %v316 = vadd.f32 %v280, %v306
      %v317 = vadd.f32 %v281, %v306
      %v318 = vadd.f32 %v282, %v306
      %v319 = vadd.f32 %v283, %v306
      %v320 = vadd.f32 %v284, %v306
      %v321 = vadd.f32 %v285, %v306
      %v322 = vadd.f32 %v286, %v306
      %v323 = vadd.f32 %v287, %v306
      %v324 = vadd.f32 %v288, %v306
      %v325 = vadd.f32 %v289, %v306
      %v326 = vadd.f32 %v290, %v306
      %v327 = vadd.f32 %v291, %v306
      %v328 = vadd.f32 %v292, %v306
      %v329 = vadd.f32 %v293, %v306
      %v330 = vadd.f32 %v294, %v306
      %v331 = vadd.f32 %v295, %v306
      %v332 = vadd.f32 %v296, %v306
      %v333 = vadd.f32 %v297, %v306
      %v334 = vadd.f32 %v298, %v306
      %v335 = vadd.f32 %v299, %v306
      %v336 = vadd.f32 %v300, %v306
      %v337 = vadd.f32 %v301, %v306
      %v338 = vadd.f32 %v302, %v306
      %v339 = vadd.f32 %v303, %v306
      %v340 = vmax.f32 %v308, 0.0
      %v341 = vmax.f32 %v309, 0.0
      %v342 = vmax.f32 %v310, 0.0
      %v343 = vmax.f32 %v311, 0.0
      %v344 = vmax.f32 %v312, 0.0
      %v345 = vmax.f32 %v313, 0.0
      %v346 = vmax.f32 %v314, 0.0
      %v347 = vmax.f32 %v315, 0.0
      %v348 = vmax.f32 %v316, 0.0
      %v349 = vmax.f32 %v317, 0.0
      %v350 = vmax.f32 %v318, 0.0
      %v351 = vmax.f32 %v319, 0.0
      %v352 = vmax.f32 %v320, 0.0
      %v353 = vmax.f32 %v321, 0.0
      %v354 = vmax.f32 %v322, 0.0
      %v355 = vmax.f32 %v323, 0.0
      %v356 = vmax.f32 %v324, 0.0
      %v357 = vmax.f32 %v325, 0.0
      %v358 = vmax.f32 %v326, 0.0
      %v359 = vmax.f32 %v327, 0.0
      %v360 = vmax.f32 %v328, 0.0
      %v361 = vmax.f32 %v329, 0.0
      %v362 = vmax.f32 %v330, 0.0
      %v363 = vmax.f32 %v331, 0.0
      %v364 = vmax.f32 %v332, 0.0
      %v365 = vmax.f32 %v333, 0.0
      %v366 = vmax.f32 %v334, 0.0
      %v367 = vmax.f32 %v335, 0.0
      %v368 = vmax.f32 %v336, 0.0
      %v369 = vmax.f32 %v337, 0.0
      %v370 = vmax.f32 %v338, 0.0
      %v371 = vmax.f32 %v339, 0.0
      %vm372 = vcmask 31744
      %373 = vst.msk [vmem:[#allocation2] sm:$0xff] %vm372, 0.0
      %374 = vst.msk [vmem:[#allocation2 + $0x8] sm:$0xff] %vm372, 0.0
      %vm375 = vcmask 25600
      %376 = vst.msk [vmem:[#allocation2 + $0x10] sm:$0x3] %vm375, 0.0
      %s377 = scalar_lea.vmem [#allocation2], 408
      %378 = vst.msk [vmem:[%s377] sm:$0xff] %vm372, 0.0
      %379 = vst.msk [vmem:[%s377 + $0x8] sm:$0xff] %vm372, 0.0
      %380 = vst.msk [vmem:[%s377 + $0x10] sm:$0x3] %vm375, 0.0
      %vm381 = vcmask 24576
      %382 = vst.msk [vmem:[#allocation2] sm:$0x1] %vm381, 0.0
      %383 = vst.msk [vmem:[#allocation2 + $0x18] sm:$0x1] %vm381, 0.0
      %384 = vst.msk [vmem:[#allocation2 + $0x30] sm:$0x1] %vm381, 0.0
      %385 = vst.msk [vmem:[#allocation2 + $0x48] sm:$0x1] %vm381, 0.0
      %386 = vst.msk [vmem:[#allocation2 + $0x60] sm:$0x1] %vm381, 0.0
      %387 = vst.msk [vmem:[#allocation2 + $0x78] sm:$0x1] %vm381, 0.0
      %388 = vst.msk [vmem:[#allocation2 + $0x90] sm:$0x1] %vm381, 0.0
      %389 = vst.msk [vmem:[#allocation2 + $0xa8] sm:$0x1] %vm381, 0.0
      %390 = vst.msk [vmem:[#allocation2 + $0xc0] sm:$0x1] %vm381, 0.0
      %391 = vst.msk [vmem:[#allocation2 + $0xd8] sm:$0x1] %vm381, 0.0
      %392 = vst.msk [vmem:[#allocation2 + $0xf0] sm:$0x1] %vm381, 0.0
      %393 = vst.msk [vmem:[#allocation2 + $0x108] sm:$0x1] %vm381, 0.0
      %394 = vst.msk [vmem:[#allocation2 + $0x120] sm:$0x1] %vm381, 0.0
      %395 = vst.msk [vmem:[#allocation2 + $0x138] sm:$0x1] %vm381, 0.0
      %396 = vst.msk [vmem:[#allocation2 + $0x150] sm:$0x1] %vm381, 0.0
      %397 = vst.msk [vmem:[#allocation2 + $0x168] sm:$0x1] %vm381, 0.0
      %398 = vst.msk [vmem:[#allocation2 + $0x180] sm:$0x1] %vm381, 0.0
      %399 = vst.msk [vmem:[#allocation2 + $0x198] sm:$0x1] %vm381, 0.0
      %400 = vst.msk [vmem:[#allocation2 + $0x11] sm:$0x1] %vm381, 0.0
      %401 = vst.msk [vmem:[#allocation2 + $0x29] sm:$0x1] %vm381, 0.0
      %402 = vst.msk [vmem:[#allocation2 + $0x41] sm:$0x1] %vm381, 0.0
      %403 = vst.msk [vmem:[#allocation2 + $0x59] sm:$0x1] %vm381, 0.0
      %404 = vst.msk [vmem:[#allocation2 + $0x71] sm:$0x1] %vm381, 0.0
      %405 = vst.msk [vmem:[#allocation2 + $0x89] sm:$0x1] %vm381, 0.0
      %406 = vst.msk [vmem:[#allocation2 + $0xa1] sm:$0x1] %vm381, 0.0
      %407 = vst.msk [vmem:[#allocation2 + $0xb9] sm:$0x1] %vm381, 0.0
      %408 = vst.msk [vmem:[#allocation2 + $0xd1] sm:$0x1] %vm381, 0.0
      %409 = vst.msk [vmem:[#allocation2 + $0xe9] sm:$0x1] %vm381, 0.0
      %410 = vst.msk [vmem:[#allocation2 + $0x101] sm:$0x1] %vm381, 0.0
      %411 = vst.msk [vmem:[#allocation2 + $0x119] sm:$0x1] %vm381, 0.0
      %412 = vst.msk [vmem:[#allocation2 + $0x131] sm:$0x1] %vm381, 0.0
      %413 = vst.msk [vmem:[#allocation2 + $0x149] sm:$0x1] %vm381, 0.0
      %414 = vst.msk [vmem:[#allocation2 + $0x161] sm:$0x1] %vm381, 0.0
      %415 = vst.msk [vmem:[#allocation2 + $0x179] sm:$0x1] %vm381, 0.0
      %416 = vst.msk [vmem:[#allocation2 + $0x191] sm:$0x1] %vm381, 0.0
      %417 = vst.msk [vmem:[#allocation2 + $0x1a9] sm:$0x1] %vm381, 0.0
      %s418 = scalar_lea.vmem [#allocation2], 24
      %419 = vst.msk [vmem:[%s418 + $0x1] sm:$0xff] %vm372, %v340
      %420 = vst.msk [vmem:[%s418 + $0x9] sm:$0xff] %vm372, %v341
      %421 = vst.msk [vmem:[%s418 + $0x19] sm:$0xff] %vm372, %v342
      %422 = vst.msk [vmem:[%s418 + $0x21] sm:$0xff] %vm372, %v343
      %423 = vst.msk [vmem:[%s418 + $0x31] sm:$0xff] %vm372, %v344
      %424 = vst.msk [vmem:[%s418 + $0x39] sm:$0xff] %vm372, %v345
      %425 = vst.msk [vmem:[%s418 + $0x49] sm:$0xff] %vm372, %v346
      %426 = vst.msk [vmem:[%s418 + $0x51] sm:$0xff] %vm372, %v347
      %427 = vst.msk [vmem:[%s418 + $0x61] sm:$0xff] %vm372, %v348
      %428 = vst.msk [vmem:[%s418 + $0x69] sm:$0xff] %vm372, %v349
      %429 = vst.msk [vmem:[%s418 + $0x79] sm:$0xff] %vm372, %v350
      %430 = vst.msk [vmem:[%s418 + $0x81] sm:$0xff] %vm372, %v351
      %431 = vst.msk [vmem:[%s418 + $0x91] sm:$0xff] %vm372, %v352
      %432 = vst.msk [vmem:[%s418 + $0x99] sm:$0xff] %vm372, %v353
      %433 = vst.msk [vmem:[%s418 + $0xa9] sm:$0xff] %vm372, %v354
      %434 = vst.msk [vmem:[%s418 + $0xb1] sm:$0xff] %vm372, %v355
      %435 = vst.msk [vmem:[%s418 + $0xc1] sm:$0xff] %vm372, %v356
      %436 = vst.msk [vmem:[%s418 + $0xc9] sm:$0xff] %vm372, %v357
      %437 = vst.msk [vmem:[%s418 + $0xd9] sm:$0xff] %vm372, %v358
      %438 = vst.msk [vmem:[%s418 + $0xe1] sm:$0xff] %vm372, %v359
      %439 = vst.msk [vmem:[%s418 + $0xf1] sm:$0xff] %vm372, %v360
      %440 = vst.msk [vmem:[%s418 + $0xf9] sm:$0xff] %vm372, %v361
      %441 = vst.msk [vmem:[%s418 + $0x109] sm:$0xff] %vm372, %v362
      %442 = vst.msk [vmem:[%s418 + $0x111] sm:$0xff] %vm372, %v363
      %443 = vst.msk [vmem:[%s418 + $0x121] sm:$0xff] %vm372, %v364
      %444 = vst.msk [vmem:[%s418 + $0x129] sm:$0xff] %vm372, %v365
      %445 = vst.msk [vmem:[%s418 + $0x139] sm:$0xff] %vm372, %v366
      %446 = vst.msk [vmem:[%s418 + $0x141] sm:$0xff] %vm372, %v367
      %447 = vst.msk [vmem:[%s418 + $0x151] sm:$0xff] %vm372, %v368
      %448 = vst.msk [vmem:[%s418 + $0x159] sm:$0xff] %vm372, %v369
      %449 = vst.msk [vmem:[%s418 + $0x169] sm:$0xff] %vm372, %v370
      %450 = vst.msk [vmem:[%s418 + $0x171] sm:$0xff] %vm372, %v371
      %v451 = vld [vmem:[#allocation2] sm:$0xff]
      %v452 = vld [vmem:[#allocation2 + $0x8] sm:$0xff]
      %v453 = vld [vmem:[#allocation2 + $0x18] sm:$0xff]
      %v454 = vld [vmem:[#allocation2 + $0x20] sm:$0xff]
      %v455 = vld [vmem:[#allocation2 + $0x30] sm:$0xff]
      %v456 = vld [vmem:[#allocation2 + $0x38] sm:$0xff]
      %v457 = vld [vmem:[#allocation2 + $0x48] sm:$0xff]
      %v458 = vld [vmem:[#allocation2 + $0x50] sm:$0xff]
      %v459 = vld [vmem:[#allocation2 + $0x60] sm:$0xff]
      %v460 = vld [vmem:[#allocation2 + $0x68] sm:$0xff]
      %v461 = vld [vmem:[#allocation2 + $0x78] sm:$0xff]
      %v462 = vld [vmem:[#allocation2 + $0x80] sm:$0xff]
      %v463 = vld [vmem:[#allocation2 + $0x90] sm:$0xff]
      %v464 = vld [vmem:[#allocation2 + $0x98] sm:$0xff]
      %v465 = vld [vmem:[#allocation2 + $0xa8] sm:$0xff]
      %v466 = vld [vmem:[#allocation2 + $0xb0] sm:$0xff]
      %v467 = vld [vmem:[#allocation2 + $0xc0] sm:$0xff]
      %v468 = vld [vmem:[#allocation2 + $0xc8] sm:$0xff]
      %v469 = vld [vmem:[#allocation2 + $0xd8] sm:$0xff]
      %v470 = vld [vmem:[#allocation2 + $0xe0] sm:$0xff]
      %v471 = vld [vmem:[#allocation2 + $0xf0] sm:$0xff]
      %v472 = vld [vmem:[#allocation2 + $0xf8] sm:$0xff]
      %v473 = vld [vmem:[#allocation2 + $0x108] sm:$0xff]
      %v474 = vld [vmem:[#allocation2 + $0x110] sm:$0xff]
      %v475 = vld [vmem:[#allocation2 + $0x120] sm:$0xff]
      %v476 = vld [vmem:[#allocation2 + $0x128] sm:$0xff]
      %v477 = vld [vmem:[#allocation2 + $0x138] sm:$0xff]
      %v478 = vld [vmem:[#allocation2 + $0x140] sm:$0xff]
      %v479 = vld [vmem:[#allocation2 + $0x150] sm:$0xff]
      %v480 = vld [vmem:[#allocation2 + $0x158] sm:$0xff]
      %v481 = vld [vmem:[#allocation2 + $0x168] sm:$0xff]
      %v482 = vld [vmem:[#allocation2 + $0x170] sm:$0xff]
      %v483 = vld [vmem:[%s3] sm:$0xf]
      %v484 = vld [vmem:[#allocation2 + $0x1] sm:$0xff]
      %v485 = vld [vmem:[#allocation2 + $0x9] sm:$0xff]
      %v486 = vld [vmem:[#allocation2 + $0x19] sm:$0xff]
      %v487 = vld [vmem:[#allocation2 + $0x21] sm:$0xff]
      %v488 = vld [vmem:[#allocation2 + $0x31] sm:$0xff]
      %v489 = vld [vmem:[#allocation2 + $0x39] sm:$0xff]
      %v490 = vld [vmem:[#allocation2 + $0x49] sm:$0xff]
      %v491 = vld [vmem:[#allocation2 + $0x51] sm:$0xff]
      %v492 = vld [vmem:[#allocation2 + $0x61] sm:$0xff]
      %v493 = vld [vmem:[#allocation2 + $0x69] sm:$0xff]
      %v494 = vld [vmem:[#allocation2 + $0x79] sm:$0xff]
      %v495 = vld [vmem:[#allocation2 + $0x81] sm:$0xff]
      %v496 = vld [vmem:[#allocation2 + $0x91] sm:$0xff]
      %v497 = vld [vmem:[#allocation2 + $0x99] sm:$0xff]
      %v498 = vld [vmem:[#allocation2 + $0xa9] sm:$0xff]
      %v499 = vld [vmem:[#allocation2 + $0xb1] sm:$0xff]
      %v500 = vld [vmem:[#allocation2 + $0xc1] sm:$0xff]
      %v501 = vld [vmem:[#allocation2 + $0xc9] sm:$0xff]
      %v502 = vld [vmem:[#allocation2 + $0xd9] sm:$0xff]
      %v503 = vld [vmem:[#allocation2 + $0xe1] sm:$0xff]
      %v504 = vld [vmem:[#allocation2 + $0xf1] sm:$0xff]
      %v505 = vld [vmem:[#allocation2 + $0xf9] sm:$0xff]
      %v506 = vld [vmem:[#allocation2 + $0x109] sm:$0xff]
      %v507 = vld [vmem:[#allocation2 + $0x111] sm:$0xff]
      %v508 = vld [vmem:[#allocation2 + $0x121] sm:$0xff]
      %v509 = vld [vmem:[#allocation2 + $0x129] sm:$0xff]
      %v510 = vld [vmem:[#allocation2 + $0x139] sm:$0xff]
      %v511 = vld [vmem:[#allocation2 + $0x141] sm:$0xff]
      %v512 = vld [vmem:[#allocation2 + $0x151] sm:$0xff]
      %v513 = vld [vmem:[#allocation2 + $0x159] sm:$0xff]
      %v514 = vld [vmem:[#allocation2 + $0x169] sm:$0xff]
      %v515 = vld [vmem:[#allocation2 + $0x171] sm:$0xff]
      %s516 = scalar_lea.vmem %s3, 4
      %v517 = vld [vmem:[%s516] sm:$0xf]
      %v519 = vsel %vm372, %v484, 0
      %v522 = vsel %vm372, %v485, 0
      %v525 = vsel %vm372, %v486, 0
      %v528 = vsel %vm372, %v487, 0
      %v531 = vsel %vm372, %v488, 0
      %v534 = vsel %vm372, %v489, 0
      %v537 = vsel %vm372, %v490, 0
      %v540 = vsel %vm372, %v491, 0
      %v543 = vsel %vm372, %v492, 0
      %v546 = vsel %vm372, %v493, 0
      %v549 = vsel %vm372, %v494, 0
      %v552 = vsel %vm372, %v495, 0
      %v555 = vsel %vm372, %v496, 0
      %v558 = vsel %vm372, %v497, 0
      %v561 = vsel %vm372, %v498, 0
      %v564 = vsel %vm372, %v499, 0
      %v567 = vsel %vm372, %v500, 0
      %v570 = vsel %vm372, %v501, 0
      %v573 = vsel %vm372, %v502, 0
      %v576 = vsel %vm372, %v503, 0
      %v579 = vsel %vm372, %v504, 0
      %v582 = vsel %vm372, %v505, 0
      %v585 = vsel %vm372, %v506, 0
      %v588 = vsel %vm372, %v507, 0
      %v591 = vsel %vm372, %v508, 0
      %v594 = vsel %vm372, %v509, 0
      %v597 = vsel %vm372, %v510, 0
      %v600 = vsel %vm372, %v511, 0
      %v603 = vsel %vm372, %v512, 0
      %v606 = vsel %vm372, %v513, 0
      %v609 = vsel %vm372, %v514, 0
      %v612 = vsel %vm372, %v515, 0
      %vm614 = vcmask 1043456
      %v616 = vsel %vm614, %v517, 0
      %618 = vmatpush.msra.mxu0 0.0
      %619 = vmatpush.msra.mxu0 0.0
      %620 = vmatpush.msra.mxu0 0.0
      %621 = vmatpush.msra.mxu0 0.0
      %622 = vmatpush.msra.mxu0 0.0
      %623 = vmatpush.msra.mxu0 0.0
      %624 = vmatpush.msra.mxu0 0.0
      %625 = vmatpush.msra.mxu0 0.0
      %626 = vmatpush.msra.mxu0 0.0
      %627 = vmatpush.msra.mxu0 0.0
      %628 = vmatpush.msra.mxu0 0.0
      %629 = vmatpush.msra.mxu0 0.0
      %630 = vmatpush.msra.mxu0 0.0
      %631 = vmatpush.msra.mxu0 0.0
      %632 = vmatpush.msra.mxu0 0.0
      %633 = vmatpush.msra.mxu0 %v616
      %634 = vmatmul.f32.gmra.mxu0 %v519
      %v635 = vpop.f32.mrf.mxu0
      %v636 = vadd.f32 0.0, %v635
      %637 = vmatmul.f32.gmra.mxu0 %v522
      %v638 = vpop.f32.mrf.mxu0
      %v639 = vadd.f32 0.0, %v638
      %640 = vmatmul.f32.gmra.mxu0 %v525
      %v641 = vpop.f32.mrf.mxu0
      %v642 = vadd.f32 0.0, %v641
      %643 = vmatmul.f32.gmra.mxu0 %v528
      %v644 = vpop.f32.mrf.mxu0
      %v645 = vadd.f32 0.0, %v644
      %646 = vmatmul.f32.gmra.mxu0 %v531
      %v647 = vpop.f32.mrf.mxu0
      %v648 = vadd.f32 0.0, %v647
      %649 = vmatmul.f32.gmra.mxu0 %v534
      %v650 = vpop.f32.mrf.mxu0
      %v651 = vadd.f32 0.0, %v650
      %652 = vmatmul.f32.gmra.mxu0 %v537
      %v653 = vpop.f32.mrf.mxu0
      %v654 = vadd.f32 0.0, %v653
      %655 = vmatmul.f32.gmra.mxu0 %v540
      %v656 = vpop.f32.mrf.mxu0
      %v657 = vadd.f32 0.0, %v656
      %658 = vmatmul.f32.gmra.mxu0 %v543
      %v659 = vpop.f32.mrf.mxu0
      %v660 = vadd.f32 0.0, %v659
      %661 = vmatmul.f32.gmra.mxu0 %v546
      %v662 = vpop.f32.mrf.mxu0
      %v663 = vadd.f32 0.0, %v662
      %664 = vmatmul.f32.gmra.mxu0 %v549
      %v665 = vpop.f32.mrf.mxu0
      %v666 = vadd.f32 0.0, %v665
      %667 = vmatmul.f32.gmra.mxu0 %v552
      %v668 = vpop.f32.mrf.mxu0
      %v669 = vadd.f32 0.0, %v668
      %670 = vmatmul.f32.gmra.mxu0 %v555
      %v671 = vpop.f32.mrf.mxu0
      %v672 = vadd.f32 0.0, %v671
      %673 = vmatmul.f32.gmra.mxu0 %v558
      %v674 = vpop.f32.mrf.mxu0
      %v675 = vadd.f32 0.0, %v674
      %676 = vmatmul.f32.gmra.mxu0 %v561
      %v677 = vpop.f32.mrf.mxu0
      %v678 = vadd.f32 0.0, %v677
      %679 = vmatmul.f32.gmra.mxu0 %v564
      %v680 = vpop.f32.mrf.mxu0
      %v681 = vadd.f32 0.0, %v680
      %682 = vmatmul.f32.gmra.mxu0 %v567
      %v683 = vpop.f32.mrf.mxu0
      %v684 = vadd.f32 0.0, %v683
      %685 = vmatmul.f32.gmra.mxu0 %v570
      %v686 = vpop.f32.mrf.mxu0
      %v687 = vadd.f32 0.0, %v686
      %688 = vmatmul.f32.gmra.mxu0 %v573
      %v689 = vpop.f32.mrf.mxu0
      %v690 = vadd.f32 0.0, %v689
      %691 = vmatmul.f32.gmra.mxu0 %v576
      %v692 = vpop.f32.mrf.mxu0
      %v693 = vadd.f32 0.0, %v692
      %694 = vmatmul.f32.gmra.mxu0 %v579
      %v695 = vpop.f32.mrf.mxu0
      %v696 = vadd.f32 0.0, %v695
      %697 = vmatmul.f32.gmra.mxu0 %v582
      %v698 = vpop.f32.mrf.mxu0
      %v699 = vadd.f32 0.0, %v698
      %700 = vmatmul.f32.gmra.mxu0 %v585
      %v701 = vpop.f32.mrf.mxu0
      %v702 = vadd.f32 0.0, %v701
      %703 = vmatmul.f32.gmra.mxu0 %v588
      %v704 = vpop.f32.mrf.mxu0
      %v705 = vadd.f32 0.0, %v704
      %706 = vmatmul.f32.gmra.mxu0 %v591
      %v707 = vpop.f32.mrf.mxu0
      %v708 = vadd.f32 0.0, %v707
      %709 = vmatmul.f32.gmra.mxu0 %v594
      %v710 = vpop.f32.mrf.mxu0
      %v711 = vadd.f32 0.0, %v710
      %712 = vmatmul.f32.gmra.mxu0 %v597
      %v713 = vpop.f32.mrf.mxu0
      %v714 = vadd.f32 0.0, %v713
      %715 = vmatmul.f32.gmra.mxu0 %v600
      %v716 = vpop.f32.mrf.mxu0
      %v717 = vadd.f32 0.0, %v716
      %718 = vmatmul.f32.gmra.mxu0 %v603
      %v719 = vpop.f32.mrf.mxu0
      %v720 = vadd.f32 0.0, %v719
      %721 = vmatmul.f32.gmra.mxu0 %v606
      %v722 = vpop.f32.mrf.mxu0
      %v723 = vadd.f32 0.0, %v722
      %724 = vmatmul.f32.gmra.mxu0 %v609
      %v725 = vpop.f32.mrf.mxu0
      %v726 = vadd.f32 0.0, %v725
      %727 = vmatmul.f32.gmra.mxu0 %v612
      %v728 = vpop.f32.mrf.mxu0
      %v729 = vadd.f32 0.0, %v728
      %730 = vdwg.mxu0
      %v732 = vsel %vm372, %v451, 0
      %v735 = vsel %vm372, %v452, 0
      %v738 = vsel %vm372, %v453, 0
      %v741 = vsel %vm372, %v454, 0
      %v744 = vsel %vm372, %v455, 0
      %v747 = vsel %vm372, %v456, 0
      %v750 = vsel %vm372, %v457, 0
      %v753 = vsel %vm372, %v458, 0
      %v756 = vsel %vm372, %v459, 0
      %v759 = vsel %vm372, %v460, 0
      %v762 = vsel %vm372, %v461, 0
      %v765 = vsel %vm372, %v462, 0
      %v768 = vsel %vm372, %v463, 0
      %v771 = vsel %vm372, %v464, 0
      %v774 = vsel %vm372, %v465, 0
      %v777 = vsel %vm372, %v466, 0
      %v780 = vsel %vm372, %v467, 0
      %v783 = vsel %vm372, %v468, 0
      %v786 = vsel %vm372, %v469, 0
      %v789 = vsel %vm372, %v470, 0
      %v792 = vsel %vm372, %v471, 0
      %v795 = vsel %vm372, %v472, 0
      %v798 = vsel %vm372, %v473, 0
      %v801 = vsel %vm372, %v474, 0
      %v804 = vsel %vm372, %v475, 0
      %v807 = vsel %vm372, %v476, 0
      %v810 = vsel %vm372, %v477, 0
      %v813 = vsel %vm372, %v478, 0
      %v816 = vsel %vm372, %v479, 0
      %v819 = vsel %vm372, %v480, 0
      %v822 = vsel %vm372, %v481, 0
      %v825 = vsel %vm372, %v482, 0
      %v828 = vsel %vm614, %v483, 0
      %830 = vmatpush.msra.mxu0 0.0
      %831 = vmatpush.msra.mxu0 0.0
      %832 = vmatpush.msra.mxu0 0.0
      %833 = vmatpush.msra.mxu0 0.0
      %834 = vmatpush.msra.mxu0 0.0
      %835 = vmatpush.msra.mxu0 0.0
      %836 = vmatpush.msra.mxu0 0.0
      %837 = vmatpush.msra.mxu0 0.0
      %838 = vmatpush.msra.mxu0 0.0
      %839 = vmatpush.msra.mxu0 0.0
      %840 = vmatpush.msra.mxu0 0.0
      %841 = vmatpush.msra.mxu0 0.0
      %842 = vmatpush.msra.mxu0 0.0
      %843 = vmatpush.msra.mxu0 0.0
      %844 = vmatpush.msra.mxu0 0.0
      %845 = vmatpush.msra.mxu0 %v828
      %846 = vmatmul.f32.gmra.mxu0 %v732
      %v847 = vpop.f32.mrf.mxu0
      %v848 = vadd.f32 %v636, %v847
      %849 = vmatmul.f32.gmra.mxu0 %v735
      %v850 = vpop.f32.mrf.mxu0
      %v851 = vadd.f32 %v639, %v850
      %852 = vmatmul.f32.gmra.mxu0 %v738
      %v853 = vpop.f32.mrf.mxu0
      %v854 = vadd.f32 %v642, %v853
      %855 = vmatmul.f32.gmra.mxu0 %v741
      %v856 = vpop.f32.mrf.mxu0
      %v857 = vadd.f32 %v645, %v856
      %858 = vmatmul.f32.gmra.mxu0 %v744
      %v859 = vpop.f32.mrf.mxu0
      %v860 = vadd.f32 %v648, %v859
      %861 = vmatmul.f32.gmra.mxu0 %v747
      %v862 = vpop.f32.mrf.mxu0
      %v863 = vadd.f32 %v651, %v862
      %864 = vmatmul.f32.gmra.mxu0 %v750
      %v865 = vpop.f32.mrf.mxu0
      %v866 = vadd.f32 %v654, %v865
      %867 = vmatmul.f32.gmra.mxu0 %v753
      %v868 = vpop.f32.mrf.mxu0
      %v869 = vadd.f32 %v657, %v868
      %870 = vmatmul.f32.gmra.mxu0 %v756
      %v871 = vpop.f32.mrf.mxu0
      %v872 = vadd.f32 %v660, %v871
      %873 = vmatmul.f32.gmra.mxu0 %v759
      %v874 = vpop.f32.mrf.mxu0
      %v875 = vadd.f32 %v663, %v874
      %876 = vmatmul.f32.gmra.mxu0 %v762
      %v877 = vpop.f32.mrf.mxu0
      %v878 = vadd.f32 %v666, %v877
      %879 = vmatmul.f32.gmra.mxu0 %v765
      %v880 = vpop.f32.mrf.mxu0
      %v881 = vadd.f32 %v669, %v880
      %882 = vmatmul.f32.gmra.mxu0 %v768
      %v883 = vpop.f32.mrf.mxu0
      %v884 = vadd.f32 %v672, %v883
      %885 = vmatmul.f32.gmra.mxu0 %v771
      %v886 = vpop.f32.mrf.mxu0
      %v887 = vadd.f32 %v675, %v886
      %888 = vmatmul.f32.gmra.mxu0 %v774
      %v889 = vpop.f32.mrf.mxu0
      %v890 = vadd.f32 %v678, %v889
      %891 = vmatmul.f32.gmra.mxu0 %v777
      %v892 = vpop.f32.mrf.mxu0
      %v893 = vadd.f32 %v681, %v892
      %894 = vmatmul.f32.gmra.mxu0 %v780
      %v895 = vpop.f32.mrf.mxu0
      %v896 = vadd.f32 %v684, %v895
      %897 = vmatmul.f32.gmra.mxu0 %v783
      %v898 = vpop.f32.mrf.mxu0
      %v899 = vadd.f32 %v687, %v898
      %900 = vmatmul.f32.gmra.mxu0 %v786
      %v901 = vpop.f32.mrf.mxu0
      %v902 = vadd.f32 %v690, %v901
      %903 = vmatmul.f32.gmra.mxu0 %v789
      %v904 = vpop.f32.mrf.mxu0
      %v905 = vadd.f32 %v693, %v904
      %906 = vmatmul.f32.gmra.mxu0 %v792
      %v907 = vpop.f32.mrf.mxu0
      %v908 = vadd.f32 %v696, %v907
      %909 = vmatmul.f32.gmra.mxu0 %v795
      %v910 = vpop.f32.mrf.mxu0
      %v911 = vadd.f32 %v699, %v910
      %912 = vmatmul.f32.gmra.mxu0 %v798
      %v913 = vpop.f32.mrf.mxu0
      %v914 = vadd.f32 %v702, %v913
      %915 = vmatmul.f32.gmra.mxu0 %v801
      %v916 = vpop.f32.mrf.mxu0
      %v917 = vadd.f32 %v705, %v916
      %918 = vmatmul.f32.gmra.mxu0 %v804
      %v919 = vpop.f32.mrf.mxu0
      %v920 = vadd.f32 %v708, %v919
      %921 = vmatmul.f32.gmra.mxu0 %v807
      %v922 = vpop.f32.mrf.mxu0
      %v923 = vadd.f32 %v711, %v922
      %924 = vmatmul.f32.gmra.mxu0 %v810
      %v925 = vpop.f32.mrf.mxu0
      %v926 = vadd.f32 %v714, %v925
      %927 = vmatmul.f32.gmra.mxu0 %v813
      %v928 = vpop.f32.mrf.mxu0
      %v929 = vadd.f32 %v717, %v928
      %930 = vmatmul.f32.gmra.mxu0 %v816
      %v931 = vpop.f32.mrf.mxu0
      %v932 = vadd.f32 %v720, %v931
      %933 = vmatmul.f32.gmra.mxu0 %v819
      %v934 = vpop.f32.mrf.mxu0
      %v935 = vadd.f32 %v723, %v934
      %936 = vmatmul.f32.gmra.mxu0 %v822
      %v937 = vpop.f32.mrf.mxu0
      %v938 = vadd.f32 %v726, %v937
      %939 = vmatmul.f32.gmra.mxu0 %v825
      %v940 = vpop.f32.mrf.mxu0
      %v941 = vadd.f32 %v729, %v940
      %942 = vdwg.mxu0
      %v943 = vld [vmem:[#allocation2 + $0x2] sm:$0xff]
      %v944 = vld [vmem:[#allocation2 + $0xa] sm:$0xff]
      %v945 = vld [vmem:[#allocation2 + $0x1a] sm:$0xff]
      %v946 = vld [vmem:[#allocation2 + $0x22] sm:$0xff]
      %v947 = vld [vmem:[#allocation2 + $0x32] sm:$0xff]
      %v948 = vld [vmem:[#allocation2 + $0x3a] sm:$0xff]
      %v949 = vld [vmem:[#allocation2 + $0x4a] sm:$0xff]
      %v950 = vld [vmem:[#allocation2 + $0x52] sm:$0xff]
      %v951 = vld [vmem:[#allocation2 + $0x62] sm:$0xff]
      %v952 = vld [vmem:[#allocation2 + $0x6a] sm:$0xff]
      %v953 = vld [vmem:[#allocation2 + $0x7a] sm:$0xff]
      %v954 = vld [vmem:[#allocation2 + $0x82] sm:$0xff]
      %v955 = vld [vmem:[#allocation2 + $0x92] sm:$0xff]
      %v956 = vld [vmem:[#allocation2 + $0x9a] sm:$0xff]
      %v957 = vld [vmem:[#allocation2 + $0xaa] sm:$0xff]
      %v958 = vld [vmem:[#allocation2 + $0xb2] sm:$0xff]
      %v959 = vld [vmem:[#allocation2 + $0xc2] sm:$0xff]
      %v960 = vld [vmem:[#allocation2 + $0xca] sm:$0xff]
      %v961 = vld [vmem:[#allocation2 + $0xda] sm:$0xff]
      %v962 = vld [vmem:[#allocation2 + $0xe2] sm:$0xff]
      %v963 = vld [vmem:[#allocation2 + $0xf2] sm:$0xff]
      %v964 = vld [vmem:[#allocation2 + $0xfa] sm:$0xff]
      %v965 = vld [vmem:[#allocation2 + $0x10a] sm:$0xff]
      %v966 = vld [vmem:[#allocation2 + $0x112] sm:$0xff]
      %v967 = vld [vmem:[#allocation2 + $0x122] sm:$0xff]
      %v968 = vld [vmem:[#allocation2 + $0x12a] sm:$0xff]
      %v969 = vld [vmem:[#allocation2 + $0x13a] sm:$0xff]
      %v970 = vld [vmem:[#allocation2 + $0x142] sm:$0xff]
      %v971 = vld [vmem:[#allocation2 + $0x152] sm:$0xff]
      %v972 = vld [vmem:[#allocation2 + $0x15a] sm:$0xff]
      %v973 = vld [vmem:[#allocation2 + $0x16a] sm:$0xff]
      %v974 = vld [vmem:[#allocation2 + $0x172] sm:$0xff]
      %s975 = scalar_lea.vmem %s3, 8
      %v976 = vld [vmem:[%s975] sm:$0xf]
      %v978 = vsel %vm372, %v943, 0
      %v981 = vsel %vm372, %v944, 0
      %v984 = vsel %vm372, %v945, 0
      %v987 = vsel %vm372, %v946, 0
      %v990 = vsel %vm372, %v947, 0
      %v993 = vsel %vm372, %v948, 0
      %v996 = vsel %vm372, %v949, 0
      %v999 = vsel %vm372, %v950, 0
      %v1002 = vsel %vm372, %v951, 0
      %v1005 = vsel %vm372, %v952, 0
      %v1008 = vsel %vm372, %v953, 0
      %v1011 = vsel %vm372, %v954, 0
      %v1014 = vsel %vm372, %v955, 0
      %v1017 = vsel %vm372, %v956, 0
      %v1020 = vsel %vm372, %v957, 0
      %v1023 = vsel %vm372, %v958, 0
      %v1026 = vsel %vm372, %v959, 0
      %v1029 = vsel %vm372, %v960, 0
      %v1032 = vsel %vm372, %v961, 0
      %v1035 = vsel %vm372, %v962, 0
      %v1038 = vsel %vm372, %v963, 0
      %v1041 = vsel %vm372, %v964, 0
      %v1044 = vsel %vm372, %v965, 0
      %v1047 = vsel %vm372, %v966, 0
      %v1050 = vsel %vm372, %v967, 0
      %v1053 = vsel %vm372, %v968, 0
      %v1056 = vsel %vm372, %v969, 0
      %v1059 = vsel %vm372, %v970, 0
      %v1062 = vsel %vm372, %v971, 0
      %v1065 = vsel %vm372, %v972, 0
      %v1068 = vsel %vm372, %v973, 0
      %v1071 = vsel %vm372, %v974, 0
      %v1074 = vsel %vm614, %v976, 0
      %1076 = vmatpush.msra.mxu0 0.0
      %1077 = vmatpush.msra.mxu0 0.0
      %1078 = vmatpush.msra.mxu0 0.0
      %1079 = vmatpush.msra.mxu0 0.0
      %1080 = vmatpush.msra.mxu0 0.0
      %1081 = vmatpush.msra.mxu0 0.0
      %1082 = vmatpush.msra.mxu0 0.0
      %1083 = vmatpush.msra.mxu0 0.0
      %1084 = vmatpush.msra.mxu0 0.0
      %1085 = vmatpush.msra.mxu0 0.0
      %1086 = vmatpush.msra.mxu0 0.0
      %1087 = vmatpush.msra.mxu0 0.0
      %1088 = vmatpush.msra.mxu0 0.0
      %1089 = vmatpush.msra.mxu0 0.0
      %1090 = vmatpush.msra.mxu0 0.0
      %1091 = vmatpush.msra.mxu0 %v1074
      %1092 = vmatmul.f32.gmra.mxu0 %v978
      %v1093 = vpop.f32.mrf.mxu0
      %v1094 = vadd.f32 0.0, %v1093
      %1095 = vmatmul.f32.gmra.mxu0 %v981
      %v1096 = vpop.f32.mrf.mxu0
      %v1097 = vadd.f32 0.0, %v1096
      %1098 = vmatmul.f32.gmra.mxu0 %v984
      %v1099 = vpop.f32.mrf.mxu0
      %v1100 = vadd.f32 0.0, %v1099
      %1101 = vmatmul.f32.gmra.mxu0 %v987
      %v1102 = vpop.f32.mrf.mxu0
      %v1103 = vadd.f32 0.0, %v1102
      %1104 = vmatmul.f32.gmra.mxu0 %v990
      %v1105 = vpop.f32.mrf.mxu0
      %v1106 = vadd.f32 0.0, %v1105
      %1107 = vmatmul.f32.gmra.mxu0 %v993
      %v1108 = vpop.f32.mrf.mxu0
      %v1109 = vadd.f32 0.0, %v1108
      %1110 = vmatmul.f32.gmra.mxu0 %v996
      %v1111 = vpop.f32.mrf.mxu0
      %v1112 = vadd.f32 0.0, %v1111
      %1113 = vmatmul.f32.gmra.mxu0 %v999
      %v1114 = vpop.f32.mrf.mxu0
      %v1115 = vadd.f32 0.0, %v1114
      %1116 = vmatmul.f32.gmra.mxu0 %v1002
      %v1117 = vpop.f32.mrf.mxu0
      %v1118 = vadd.f32 0.0, %v1117
      %1119 = vmatmul.f32.gmra.mxu0 %v1005
      %v1120 = vpop.f32.mrf.mxu0
      %v1121 = vadd.f32 0.0, %v1120
      %1122 = vmatmul.f32.gmra.mxu0 %v1008
      %v1123 = vpop.f32.mrf.mxu0
      %v1124 = vadd.f32 0.0, %v1123
      %1125 = vmatmul.f32.gmra.mxu0 %v1011
      %v1126 = vpop.f32.mrf.mxu0
      %v1127 = vadd.f32 0.0, %v1126
      %1128 = vmatmul.f32.gmra.mxu0 %v1014
      %v1129 = vpop.f32.mrf.mxu0
      %v1130 = vadd.f32 0.0, %v1129
      %1131 = vmatmul.f32.gmra.mxu0 %v1017
      %v1132 = vpop.f32.mrf.mxu0
      %v1133 = vadd.f32 0.0, %v1132
      %1134 = vmatmul.f32.gmra.mxu0 %v1020
      %v1135 = vpop.f32.mrf.mxu0
      %v1136 = vadd.f32 0.0, %v1135
      %1137 = vmatmul.f32.gmra.mxu0 %v1023
      %v1138 = vpop.f32.mrf.mxu0
      %v1139 = vadd.f32 0.0, %v1138
      %1140 = vmatmul.f32.gmra.mxu0 %v1026
      %v1141 = vpop.f32.mrf.mxu0
      %v1142 = vadd.f32 0.0, %v1141
      %1143 = vmatmul.f32.gmra.mxu0 %v1029
      %v1144 = vpop.f32.mrf.mxu0
      %v1145 = vadd.f32 0.0, %v1144
      %1146 = vmatmul.f32.gmra.mxu0 %v1032
      %v1147 = vpop.f32.mrf.mxu0
      %v1148 = vadd.f32 0.0, %v1147
      %1149 = vmatmul.f32.gmra.mxu0 %v1035
      %v1150 = vpop.f32.mrf.mxu0
      %v1151 = vadd.f32 0.0, %v1150
      %1152 = vmatmul.f32.gmra.mxu0 %v1038
      %v1153 = vpop.f32.mrf.mxu0
      %v1154 = vadd.f32 0.0, %v1153
      %1155 = vmatmul.f32.gmra.mxu0 %v1041
      %v1156 = vpop.f32.mrf.mxu0
      %v1157 = vadd.f32 0.0, %v1156
      %1158 = vmatmul.f32.gmra.mxu0 %v1044
      %v1159 = vpop.f32.mrf.mxu0
      %v1160 = vadd.f32 0.0, %v1159
      %1161 = vmatmul.f32.gmra.mxu0 %v1047
      %v1162 = vpop.f32.mrf.mxu0
      %v1163 = vadd.f32 0.0, %v1162
      %1164 = vmatmul.f32.gmra.mxu0 %v1050
      %v1165 = vpop.f32.mrf.mxu0
      %v1166 = vadd.f32 0.0, %v1165
      %1167 = vmatmul.f32.gmra.mxu0 %v1053
      %v1168 = vpop.f32.mrf.mxu0
      %v1169 = vadd.f32 0.0, %v1168
      %1170 = vmatmul.f32.gmra.mxu0 %v1056
      %v1171 = vpop.f32.mrf.mxu0
      %v1172 = vadd.f32 0.0, %v1171
      %1173 = vmatmul.f32.gmra.mxu0 %v1059
      %v1174 = vpop.f32.mrf.mxu0
      %v1175 = vadd.f32 0.0, %v1174
      %1176 = vmatmul.f32.gmra.mxu0 %v1062
      %v1177 = vpop.f32.mrf.mxu0
      %v1178 = vadd.f32 0.0, %v1177
      %1179 = vmatmul.f32.gmra.mxu0 %v1065
      %v1180 = vpop.f32.mrf.mxu0
      %v1181 = vadd.f32 0.0, %v1180
      %1182 = vmatmul.f32.gmra.mxu0 %v1068
      %v1183 = vpop.f32.mrf.mxu0
      %v1184 = vadd.f32 0.0, %v1183
      %1185 = vmatmul.f32.gmra.mxu0 %v1071
      %v1186 = vpop.f32.mrf.mxu0
      %v1187 = vadd.f32 0.0, %v1186
      %1188 = vdwg.mxu0
      %v1189 = vadd.f32 %v848, %v1094
      %v1190 = vadd.f32 %v851, %v1097
      %v1191 = vadd.f32 %v854, %v1100
      %v1192 = vadd.f32 %v857, %v1103
      %v1193 = vadd.f32 %v860, %v1106
      %v1194 = vadd.f32 %v863, %v1109
      %v1195 = vadd.f32 %v866, %v1112
      %v1196 = vadd.f32 %v869, %v1115
      %v1197 = vadd.f32 %v872, %v1118
      %v1198 = vadd.f32 %v875, %v1121
      %v1199 = vadd.f32 %v878, %v1124
      %v1200 = vadd.f32 %v881, %v1127
      %v1201 = vadd.f32 %v884, %v1130
      %v1202 = vadd.f32 %v887, %v1133
      %v1203 = vadd.f32 %v890, %v1136
      %v1204 = vadd.f32 %v893, %v1139
      %v1205 = vadd.f32 %v896, %v1142
      %v1206 = vadd.f32 %v899, %v1145
      %v1207 = vadd.f32 %v902, %v1148
      %v1208 = vadd.f32 %v905, %v1151
      %v1209 = vadd.f32 %v908, %v1154
      %v1210 = vadd.f32 %v911, %v1157
      %v1211 = vadd.f32 %v914, %v1160
      %v1212 = vadd.f32 %v917, %v1163
      %v1213 = vadd.f32 %v920, %v1166
      %v1214 = vadd.f32 %v923, %v1169
      %v1215 = vadd.f32 %v926, %v1172
      %v1216 = vadd.f32 %v929, %v1175
      %v1217 = vadd.f32 %v932, %v1178
      %v1218 = vadd.f32 %v935, %v1181
      %v1219 = vadd.f32 %v938, %v1184
      %v1220 = vadd.f32 %v941, %v1187
      %v1221 = vld [vmem:[%s418] sm:$0xff]
      %v1222 = vld [vmem:[%s418 + $0x8] sm:$0xff]
      %v1223 = vld [vmem:[%s418 + $0x18] sm:$0xff]
      %v1224 = vld [vmem:[%s418 + $0x20] sm:$0xff]
      %v1225 = vld [vmem:[%s418 + $0x30] sm:$0xff]
      %v1226 = vld [vmem:[%s418 + $0x38] sm:$0xff]
      %v1227 = vld [vmem:[%s418 + $0x48] sm:$0xff]
      %v1228 = vld [vmem:[%s418 + $0x50] sm:$0xff]
      %v1229 = vld [vmem:[%s418 + $0x60] sm:$0xff]
      %v1230 = vld [vmem:[%s418 + $0x68] sm:$0xff]
      %v1231 = vld [vmem:[%s418 + $0x78] sm:$0xff]
      %v1232 = vld [vmem:[%s418 + $0x80] sm:$0xff]
      %v1233 = vld [vmem:[%s418 + $0x90] sm:$0xff]
      %v1234 = vld [vmem:[%s418 + $0x98] sm:$0xff]
      %v1235 = vld [vmem:[%s418 + $0xa8] sm:$0xff]
      %v1236 = vld [vmem:[%s418 + $0xb0] sm:$0xff]
      %v1237 = vld [vmem:[%s418 + $0xc0] sm:$0xff]
      %v1238 = vld [vmem:[%s418 + $0xc8] sm:$0xff]
      %v1239 = vld [vmem:[%s418 + $0xd8] sm:$0xff]
      %v1240 = vld [vmem:[%s418 + $0xe0] sm:$0xff]
      %v1241 = vld [vmem:[%s418 + $0xf0] sm:$0xff]
      %v1242 = vld [vmem:[%s418 + $0xf8] sm:$0xff]
      %v1243 = vld [vmem:[%s418 + $0x108] sm:$0xff]
      %v1244 = vld [vmem:[%s418 + $0x110] sm:$0xff]
      %v1245 = vld [vmem:[%s418 + $0x120] sm:$0xff]
      %v1246 = vld [vmem:[%s418 + $0x128] sm:$0xff]
      %v1247 = vld [vmem:[%s418 + $0x138] sm:$0xff]
      %v1248 = vld [vmem:[%s418 + $0x140] sm:$0xff]
      %v1249 = vld [vmem:[%s418 + $0x150] sm:$0xff]
      %v1250 = vld [vmem:[%s418 + $0x158] sm:$0xff]
      %v1251 = vld [vmem:[%s418 + $0x168] sm:$0xff]
      %v1252 = vld [vmem:[%s418 + $0x170] sm:$0xff]
      %s1253 = scalar_lea.vmem %s3, 12
      %v1254 = vld [vmem:[%s1253] sm:$0xf]
      %v1256 = vsel %vm372, %v1221, 0
      %v1259 = vsel %vm372, %v1222, 0
      %v1262 = vsel %vm372, %v1223, 0
      %v1265 = vsel %vm372, %v1224, 0
      %v1268 = vsel %vm372, %v1225, 0
      %v1271 = vsel %vm372, %v1226, 0
      %v1274 = vsel %vm372, %v1227, 0
      %v1277 = vsel %vm372, %v1228, 0
      %v1280 = vsel %vm372, %v1229, 0
      %v1283 = vsel %vm372, %v1230, 0
      %v1286 = vsel %vm372, %v1231, 0
      %v1289 = vsel %vm372, %v1232, 0
      %v1292 = vsel %vm372, %v1233, 0
      %v1295 = vsel %vm372, %v1234, 0
      %v1298 = vsel %vm372, %v1235, 0
      %v1301 = vsel %vm372, %v1236, 0
      %v1304 = vsel %vm372, %v1237, 0
      %v1307 = vsel %vm372, %v1238, 0
      %v1310 = vsel %vm372, %v1239, 0
      %v1313 = vsel %vm372, %v1240, 0
      %v1316 = vsel %vm372, %v1241, 0
      %v1319 = vsel %vm372, %v1242, 0
      %v1322 = vsel %vm372, %v1243, 0
      %v1325 = vsel %vm372, %v1244, 0
      %v1328 = vsel %vm372, %v1245, 0
      %v1331 = vsel %vm372, %v1246, 0
      %v1334 = vsel %vm372, %v1247, 0
      %v1337 = vsel %vm372, %v1248, 0
      %v1340 = vsel %vm372, %v1249, 0
      %v1343 = vsel %vm372, %v1250, 0
      %v1346 = vsel %vm372, %v1251, 0
      %v1349 = vsel %vm372, %v1252, 0
      %v1352 = vsel %vm614, %v1254, 0
      %1354 = vmatpush.msra.mxu0 0.0
      %1355 = vmatpush.msra.mxu0 0.0
      %1356 = vmatpush.msra.mxu0 0.0
      %1357 = vmatpush.msra.mxu0 0.0
      %1358 = vmatpush.msra.mxu0 0.0
      %1359 = vmatpush.msra.mxu0 0.0
      %1360 = vmatpush.msra.mxu0 0.0
      %1361 = vmatpush.msra.mxu0 0.0
      %1362 = vmatpush.msra.mxu0 0.0
      %1363 = vmatpush.msra.mxu0 0.0
      %1364 = vmatpush.msra.mxu0 0.0
      %1365 = vmatpush.msra.mxu0 0.0
      %1366 = vmatpush.msra.mxu0 0.0
      %1367 = vmatpush.msra.mxu0 0.0
      %1368 = vmatpush.msra.mxu0 0.0
      %1369 = vmatpush.msra.mxu0 %v1352
      %1370 = vmatmul.f32.gmra.mxu0 %v1256
      %v1371 = vpop.f32.mrf.mxu0
      %v1372 = vadd.f32 0.0, %v1371
      %1373 = vmatmul.f32.gmra.mxu0 %v1259
      %v1374 = vpop.f32.mrf.mxu0
      %v1375 = vadd.f32 0.0, %v1374
      %1376 = vmatmul.f32.gmra.mxu0 %v1262
      %v1377 = vpop.f32.mrf.mxu0
      %v1378 = vadd.f32 0.0, %v1377
      %1379 = vmatmul.f32.gmra.mxu0 %v1265
      %v1380 = vpop.f32.mrf.mxu0
      %v1381 = vadd.f32 0.0, %v1380
      %1382 = vmatmul.f32.gmra.mxu0 %v1268
      %v1383 = vpop.f32.mrf.mxu0
      %v1384 = vadd.f32 0.0, %v1383
      %1385 = vmatmul.f32.gmra.mxu0 %v1271
      %v1386 = vpop.f32.mrf.mxu0
      %v1387 = vadd.f32 0.0, %v1386
      %1388 = vmatmul.f32.gmra.mxu0 %v1274
      %v1389 = vpop.f32.mrf.mxu0
      %v1390 = vadd.f32 0.0, %v1389
      %1391 = vmatmul.f32.gmra.mxu0 %v1277
      %v1392 = vpop.f32.mrf.mxu0
      %v1393 = vadd.f32 0.0, %v1392
      %1394 = vmatmul.f32.gmra.mxu0 %v1280
      %v1395 = vpop.f32.mrf.mxu0
      %v1396 = vadd.f32 0.0, %v1395
      %1397 = vmatmul.f32.gmra.mxu0 %v1283
      %v1398 = vpop.f32.mrf.mxu0
      %v1399 = vadd.f32 0.0, %v1398
      %1400 = vmatmul.f32.gmra.mxu0 %v1286
      %v1401 = vpop.f32.mrf.mxu0
      %v1402 = vadd.f32 0.0, %v1401
      %1403 = vmatmul.f32.gmra.mxu0 %v1289
      %v1404 = vpop.f32.mrf.mxu0
      %v1405 = vadd.f32 0.0, %v1404
      %1406 = vmatmul.f32.gmra.mxu0 %v1292
      %v1407 = vpop.f32.mrf.mxu0
      %v1408 = vadd.f32 0.0, %v1407
      %1409 = vmatmul.f32.gmra.mxu0 %v1295
      %v1410 = vpop.f32.mrf.mxu0
      %v1411 = vadd.f32 0.0, %v1410
      %1412 = vmatmul.f32.gmra.mxu0 %v1298
      %v1413 = vpop.f32.mrf.mxu0
      %v1414 = vadd.f32 0.0, %v1413
      %1415 = vmatmul.f32.gmra.mxu0 %v1301
      %v1416 = vpop.f32.mrf.mxu0
      %v1417 = vadd.f32 0.0, %v1416
      %1418 = vmatmul.f32.gmra.mxu0 %v1304
      %v1419 = vpop.f32.mrf.mxu0
      %v1420 = vadd.f32 0.0, %v1419
      %1421 = vmatmul.f32.gmra.mxu0 %v1307
      %v1422 = vpop.f32.mrf.mxu0
      %v1423 = vadd.f32 0.0, %v1422
      %1424 = vmatmul.f32.gmra.mxu0 %v1310
      %v1425 = vpop.f32.mrf.mxu0
      %v1426 = vadd.f32 0.0, %v1425
      %1427 = vmatmul.f32.gmra.mxu0 %v1313
      %v1428 = vpop.f32.mrf.mxu0
      %v1429 = vadd.f32 0.0, %v1428
      %1430 = vmatmul.f32.gmra.mxu0 %v1316
      %v1431 = vpop.f32.mrf.mxu0
      %v1432 = vadd.f32 0.0, %v1431
      %1433 = vmatmul.f32.gmra.mxu0 %v1319
      %v1434 = vpop.f32.mrf.mxu0
      %v1435 = vadd.f32 0.0, %v1434
      %1436 = vmatmul.f32.gmra.mxu0 %v1322
      %v1437 = vpop.f32.mrf.mxu0
      %v1438 = vadd.f32 0.0, %v1437
      %1439 = vmatmul.f32.gmra.mxu0 %v1325
      %v1440 = vpop.f32.mrf.mxu0
      %v1441 = vadd.f32 0.0, %v1440
      %1442 = vmatmul.f32.gmra.mxu0 %v1328
      %v1443 = vpop.f32.mrf.mxu0
      %v1444 = vadd.f32 0.0, %v1443
      %1445 = vmatmul.f32.gmra.mxu0 %v1331
      %v1446 = vpop.f32.mrf.mxu0
      %v1447 = vadd.f32 0.0, %v1446
      %1448 = vmatmul.f32.gmra.mxu0 %v1334
      %v1449 = vpop.f32.mrf.mxu0
      %v1450 = vadd.f32 0.0, %v1449
      %1451 = vmatmul.f32.gmra.mxu0 %v1337
      %v1452 = vpop.f32.mrf.mxu0
      %v1453 = vadd.f32 0.0, %v1452
      %1454 = vmatmul.f32.gmra.mxu0 %v1340
      %v1455 = vpop.f32.mrf.mxu0
      %v1456 = vadd.f32 0.0, %v1455
      %1457 = vmatmul.f32.gmra.mxu0 %v1343
      %v1458 = vpop.f32.mrf.mxu0
      %v1459 = vadd.f32 0.0, %v1458
      %1460 = vmatmul.f32.gmra.mxu0 %v1346
      %v1461 = vpop.f32.mrf.mxu0
      %v1462 = vadd.f32 0.0, %v1461
      %1463 = vmatmul.f32.gmra.mxu0 %v1349
      %v1464 = vpop.f32.mrf.mxu0
      %v1465 = vadd.f32 0.0, %v1464
      %1466 = vdwg.mxu0
      %v1467 = vadd.f32 %v1189, %v1372
      %v1468 = vadd.f32 %v1190, %v1375
      %v1469 = vadd.f32 %v1191, %v1378
      %v1470 = vadd.f32 %v1192, %v1381
      %v1471 = vadd.f32 %v1193, %v1384
      %v1472 = vadd.f32 %v1194, %v1387
      %v1473 = vadd.f32 %v1195, %v1390
      %v1474 = vadd.f32 %v1196, %v1393
      %v1475 = vadd.f32 %v1197, %v1396
      %v1476 = vadd.f32 %v1198, %v1399
      %v1477 = vadd.f32 %v1199, %v1402
      %v1478 = vadd.f32 %v1200, %v1405
      %v1479 = vadd.f32 %v1201, %v1408
      %v1480 = vadd.f32 %v1202, %v1411
      %v1481 = vadd.f32 %v1203, %v1414
      %v1482 = vadd.f32 %v1204, %v1417
      %v1483 = vadd.f32 %v1205, %v1420
      %v1484 = vadd.f32 %v1206, %v1423
      %v1485 = vadd.f32 %v1207, %v1426
      %v1486 = vadd.f32 %v1208, %v1429
      %v1487 = vadd.f32 %v1209, %v1432
      %v1488 = vadd.f32 %v1210, %v1435
      %v1489 = vadd.f32 %v1211, %v1438
      %v1490 = vadd.f32 %v1212, %v1441
      %v1491 = vadd.f32 %v1213, %v1444
      %v1492 = vadd.f32 %v1214, %v1447
      %v1493 = vadd.f32 %v1215, %v1450
      %v1494 = vadd.f32 %v1216, %v1453
      %v1495 = vadd.f32 %v1217, %v1456
      %v1496 = vadd.f32 %v1218, %v1459
      %v1497 = vadd.f32 %v1219, %v1462
      %v1498 = vadd.f32 %v1220, %v1465
      %v1499 = vld [vmem:[%s418 + $0x1] sm:$0xff]
      %v1500 = vld [vmem:[%s418 + $0x9] sm:$0xff]
      %v1501 = vld [vmem:[%s418 + $0x19] sm:$0xff]
      %v1502 = vld [vmem:[%s418 + $0x21] sm:$0xff]
      %v1503 = vld [vmem:[%s418 + $0x31] sm:$0xff]
      %v1504 = vld [vmem:[%s418 + $0x39] sm:$0xff]
      %v1505 = vld [vmem:[%s418 + $0x49] sm:$0xff]
      %v1506 = vld [vmem:[%s418 + $0x51] sm:$0xff]
      %v1507 = vld [vmem:[%s418 + $0x61] sm:$0xff]
      %v1508 = vld [vmem:[%s418 + $0x69] sm:$0xff]
      %v1509 = vld [vmem:[%s418 + $0x79] sm:$0xff]
      %v1510 = vld [vmem:[%s418 + $0x81] sm:$0xff]
      %v1511 = vld [vmem:[%s418 + $0x91] sm:$0xff]
      %v1512 = vld [vmem:[%s418 + $0x99] sm:$0xff]
      %v1513 = vld [vmem:[%s418 + $0xa9] sm:$0xff]
      %v1514 = vld [vmem:[%s418 + $0xb1] sm:$0xff]
      %v1515 = vld [vmem:[%s418 + $0xc1] sm:$0xff]
      %v1516 = vld [vmem:[%s418 + $0xc9] sm:$0xff]
      %v1517 = vld [vmem:[%s418 + $0xd9] sm:$0xff]
      %v1518 = vld [vmem:[%s418 + $0xe1] sm:$0xff]
      %v1519 = vld [vmem:[%s418 + $0xf1] sm:$0xff]
      %v1520 = vld [vmem:[%s418 + $0xf9] sm:$0xff]
      %v1521 = vld [vmem:[%s418 + $0x109] sm:$0xff]
      %v1522 = vld [vmem:[%s418 + $0x111] sm:$0xff]
      %v1523 = vld [vmem:[%s418 + $0x121] sm:$0xff]
      %v1524 = vld [vmem:[%s418 + $0x129] sm:$0xff]
      %v1525 = vld [vmem:[%s418 + $0x139] sm:$0xff]
      %v1526 = vld [vmem:[%s418 + $0x141] sm:$0xff]
      %v1527 = vld [vmem:[%s418 + $0x151] sm:$0xff]
      %v1528 = vld [vmem:[%s418 + $0x159] sm:$0xff]
      %v1529 = vld [vmem:[%s418 + $0x169] sm:$0xff]
      %v1530 = vld [vmem:[%s418 + $0x171] sm:$0xff]
      %s1531 = scalar_lea.vmem %s3, 16
      %v1532 = vld [vmem:[%s1531] sm:$0xf]
      %v1534 = vsel %vm372, %v1499, 0
      %v1537 = vsel %vm372, %v1500, 0
      %v1540 = vsel %vm372, %v1501, 0
      %v1543 = vsel %vm372, %v1502, 0
      %v1546 = vsel %vm372, %v1503, 0
      %v1549 = vsel %vm372, %v1504, 0
      %v1552 = vsel %vm372, %v1505, 0
      %v1555 = vsel %vm372, %v1506, 0
      %v1558 = vsel %vm372, %v1507, 0
      %v1561 = vsel %vm372, %v1508, 0
      %v1564 = vsel %vm372, %v1509, 0
      %v1567 = vsel %vm372, %v1510, 0
      %v1570 = vsel %vm372, %v1511, 0
      %v1573 = vsel %vm372, %v1512, 0
      %v1576 = vsel %vm372, %v1513, 0
      %v1579 = vsel %vm372, %v1514, 0
      %v1582 = vsel %vm372, %v1515, 0
      %v1585 = vsel %vm372, %v1516, 0
      %v1588 = vsel %vm372, %v1517, 0
      %v1591 = vsel %vm372, %v1518, 0
      %v1594 = vsel %vm372, %v1519, 0
      %v1597 = vsel %vm372, %v1520, 0
      %v1600 = vsel %vm372, %v1521, 0
      %v1603 = vsel %vm372, %v1522, 0
      %v1606 = vsel %vm372, %v1523, 0
      %v1609 = vsel %vm372, %v1524, 0
      %v1612 = vsel %vm372, %v1525, 0
      %v1615 = vsel %vm372, %v1526, 0
      %v1618 = vsel %vm372, %v1527, 0
      %v1621 = vsel %vm372, %v1528, 0
      %v1624 = vsel %vm372, %v1529, 0
      %v1627 = vsel %vm372, %v1530, 0
      %v1630 = vsel %vm614, %v1532, 0
      %1632 = vmatpush.msra.mxu0 0.0
      %1633 = vmatpush.msra.mxu0 0.0
      %1634 = vmatpush.msra.mxu0 0.0
      %1635 = vmatpush.msra.mxu0 0.0
      %1636 = vmatpush.msra.mxu0 0.0
      %1637 = vmatpush.msra.mxu0 0.0
      %1638 = vmatpush.msra.mxu0 0.0
      %1639 = vmatpush.msra.mxu0 0.0
      %1640 = vmatpush.msra.mxu0 0.0
      %1641 = vmatpush.msra.mxu0 0.0
      %1642 = vmatpush.msra.mxu0 0.0
      %1643 = vmatpush.msra.mxu0 0.0
      %1644 = vmatpush.msra.mxu0 0.0
      %1645 = vmatpush.msra.mxu0 0.0
      %1646 = vmatpush.msra.mxu0 0.0
      %1647 = vmatpush.msra.mxu0 %v1630
      %1648 = vmatmul.f32.gmra.mxu0 %v1534
      %v1649 = vpop.f32.mrf.mxu0
      %v1650 = vadd.f32 0.0, %v1649
      %1651 = vmatmul.f32.gmra.mxu0 %v1537
      %v1652 = vpop.f32.mrf.mxu0
      %v1653 = vadd.f32 0.0, %v1652
      %1654 = vmatmul.f32.gmra.mxu0 %v1540
      %v1655 = vpop.f32.mrf.mxu0
      %v1656 = vadd.f32 0.0, %v1655
      %1657 = vmatmul.f32.gmra.mxu0 %v1543
      %v1658 = vpop.f32.mrf.mxu0
      %v1659 = vadd.f32 0.0, %v1658
      %1660 = vmatmul.f32.gmra.mxu0 %v1546
      %v1661 = vpop.f32.mrf.mxu0
      %v1662 = vadd.f32 0.0, %v1661
      %1663 = vmatmul.f32.gmra.mxu0 %v1549
      %v1664 = vpop.f32.mrf.mxu0
      %v1665 = vadd.f32 0.0, %v1664
      %1666 = vmatmul.f32.gmra.mxu0 %v1552
      %v1667 = vpop.f32.mrf.mxu0
      %v1668 = vadd.f32 0.0, %v1667
      %1669 = vmatmul.f32.gmra.mxu0 %v1555
      %v1670 = vpop.f32.mrf.mxu0
      %v1671 = vadd.f32 0.0, %v1670
      %1672 = vmatmul.f32.gmra.mxu0 %v1558
      %v1673 = vpop.f32.mrf.mxu0
      %v1674 = vadd.f32 0.0, %v1673
      %1675 = vmatmul.f32.gmra.mxu0 %v1561
      %v1676 = vpop.f32.mrf.mxu0
      %v1677 = vadd.f32 0.0, %v1676
      %1678 = vmatmul.f32.gmra.mxu0 %v1564
      %v1679 = vpop.f32.mrf.mxu0
      %v1680 = vadd.f32 0.0, %v1679
      %1681 = vmatmul.f32.gmra.mxu0 %v1567
      %v1682 = vpop.f32.mrf.mxu0
      %v1683 = vadd.f32 0.0, %v1682
      %1684 = vmatmul.f32.gmra.mxu0 %v1570
      %v1685 = vpop.f32.mrf.mxu0
      %v1686 = vadd.f32 0.0, %v1685
      %1687 = vmatmul.f32.gmra.mxu0 %v1573
      %v1688 = vpop.f32.mrf.mxu0
      %v1689 = vadd.f32 0.0, %v1688
      %1690 = vmatmul.f32.gmra.mxu0 %v1576
      %v1691 = vpop.f32.mrf.mxu0
      %v1692 = vadd.f32 0.0, %v1691
      %1693 = vmatmul.f32.gmra.mxu0 %v1579
      %v1694 = vpop.f32.mrf.mxu0
      %v1695 = vadd.f32 0.0, %v1694
      %1696 = vmatmul.f32.gmra.mxu0 %v1582
      %v1697 = vpop.f32.mrf.mxu0
      %v1698 = vadd.f32 0.0, %v1697
      %1699 = vmatmul.f32.gmra.mxu0 %v1585
      %v1700 = vpop.f32.mrf.mxu0
      %v1701 = vadd.f32 0.0, %v1700
      %1702 = vmatmul.f32.gmra.mxu0 %v1588
      %v1703 = vpop.f32.mrf.mxu0
      %v1704 = vadd.f32 0.0, %v1703
      %1705 = vmatmul.f32.gmra.mxu0 %v1591
      %v1706 = vpop.f32.mrf.mxu0
      %v1707 = vadd.f32 0.0, %v1706
      %1708 = vmatmul.f32.gmra.mxu0 %v1594
      %v1709 = vpop.f32.mrf.mxu0
      %v1710 = vadd.f32 0.0, %v1709
      %1711 = vmatmul.f32.gmra.mxu0 %v1597
      %v1712 = vpop.f32.mrf.mxu0
      %v1713 = vadd.f32 0.0, %v1712
      %1714 = vmatmul.f32.gmra.mxu0 %v1600
      %v1715 = vpop.f32.mrf.mxu0
      %v1716 = vadd.f32 0.0, %v1715
      %1717 = vmatmul.f32.gmra.mxu0 %v1603
      %v1718 = vpop.f32.mrf.mxu0
      %v1719 = vadd.f32 0.0, %v1718
      %1720 = vmatmul.f32.gmra.mxu0 %v1606
      %v1721 = vpop.f32.mrf.mxu0
      %v1722 = vadd.f32 0.0, %v1721
      %1723 = vmatmul.f32.gmra.mxu0 %v1609
      %v1724 = vpop.f32.mrf.mxu0
      %v1725 = vadd.f32 0.0, %v1724
      %1726 = vmatmul.f32.gmra.mxu0 %v1612
      %v1727 = vpop.f32.mrf.mxu0
      %v1728 = vadd.f32 0.0, %v1727
      %1729 = vmatmul.f32.gmra.mxu0 %v1615
      %v1730 = vpop.f32.mrf.mxu0
      %v1731 = vadd.f32 0.0, %v1730
      %1732 = vmatmul.f32.gmra.mxu0 %v1618
      %v1733 = vpop.f32.mrf.mxu0
      %v1734 = vadd.f32 0.0, %v1733
      %1735 = vmatmul.f32.gmra.mxu0 %v1621
      %v1736 = vpop.f32.mrf.mxu0
      %v1737 = vadd.f32 0.0, %v1736
      %1738 = vmatmul.f32.gmra.mxu0 %v1624
      %v1739 = vpop.f32.mrf.mxu0
      %v1740 = vadd.f32 0.0, %v1739
      %1741 = vmatmul.f32.gmra.mxu0 %v1627
      %v1742 = vpop.f32.mrf.mxu0
      %v1743 = vadd.f32 0.0, %v1742
      %1744 = vdwg.mxu0
      %v1745 = vadd.f32 %v1467, %v1650
      %v1746 = vadd.f32 %v1468, %v1653
      %v1747 = vadd.f32 %v1469, %v1656
      %v1748 = vadd.f32 %v1470, %v1659
      %v1749 = vadd.f32 %v1471, %v1662
      %v1750 = vadd.f32 %v1472, %v1665
      %v1751 = vadd.f32 %v1473, %v1668
      %v1752 = vadd.f32 %v1474, %v1671
      %v1753 = vadd.f32 %v1475, %v1674
      %v1754 = vadd.f32 %v1476, %v1677
      %v1755 = vadd.f32 %v1477, %v1680
      %v1756 = vadd.f32 %v1478, %v1683
      %v1757 = vadd.f32 %v1479, %v1686
      %v1758 = vadd.f32 %v1480, %v1689
      %v1759 = vadd.f32 %v1481, %v1692
      %v1760 = vadd.f32 %v1482, %v1695
      %v1761 = vadd.f32 %v1483, %v1698
      %v1762 = vadd.f32 %v1484, %v1701
      %v1763 = vadd.f32 %v1485, %v1704
      %v1764 = vadd.f32 %v1486, %v1707
      %v1765 = vadd.f32 %v1487, %v1710
      %v1766 = vadd.f32 %v1488, %v1713
      %v1767 = vadd.f32 %v1489, %v1716
      %v1768 = vadd.f32 %v1490, %v1719
      %v1769 = vadd.f32 %v1491, %v1722
      %v1770 = vadd.f32 %v1492, %v1725
      %v1771 = vadd.f32 %v1493, %v1728
      %v1772 = vadd.f32 %v1494, %v1731
      %v1773 = vadd.f32 %v1495, %v1734
      %v1774 = vadd.f32 %v1496, %v1737
      %v1775 = vadd.f32 %v1497, %v1740
      %v1776 = vadd.f32 %v1498, %v1743
      %v1777 = vld [vmem:[%s418 + $0x2] sm:$0xff]
      %v1778 = vld [vmem:[%s418 + $0xa] sm:$0xff]
      %v1779 = vld [vmem:[%s418 + $0x1a] sm:$0xff]
      %v1780 = vld [vmem:[%s418 + $0x22] sm:$0xff]
      %v1781 = vld [vmem:[%s418 + $0x32] sm:$0xff]
      %v1782 = vld [vmem:[%s418 + $0x3a] sm:$0xff]
      %v1783 = vld [vmem:[%s418 + $0x4a] sm:$0xff]
      %v1784 = vld [vmem:[%s418 + $0x52] sm:$0xff]
      %v1785 = vld [vmem:[%s418 + $0x62] sm:$0xff]
      %v1786 = vld [vmem:[%s418 + $0x6a] sm:$0xff]
      %v1787 = vld [vmem:[%s418 + $0x7a] sm:$0xff]
      %v1788 = vld [vmem:[%s418 + $0x82] sm:$0xff]
      %v1789 = vld [vmem:[%s418 + $0x92] sm:$0xff]
      %v1790 = vld [vmem:[%s418 + $0x9a] sm:$0xff]
      %v1791 = vld [vmem:[%s418 + $0xaa] sm:$0xff]
      %v1792 = vld [vmem:[%s418 + $0xb2] sm:$0xff]
      %v1793 = vld [vmem:[%s418 + $0xc2] sm:$0xff]
      %v1794 = vld [vmem:[%s418 + $0xca] sm:$0xff]
      %v1795 = vld [vmem:[%s418 + $0xda] sm:$0xff]
      %v1796 = vld [vmem:[%s418 + $0xe2] sm:$0xff]
      %v1797 = vld [vmem:[%s418 + $0xf2] sm:$0xff]
      %v1798 = vld [vmem:[%s418 + $0xfa] sm:$0xff]
      %v1799 = vld [vmem:[%s418 + $0x10a] sm:$0xff]
      %v1800 = vld [vmem:[%s418 + $0x112] sm:$0xff]
      %v1801 = vld [vmem:[%s418 + $0x122] sm:$0xff]
      %v1802 = vld [vmem:[%s418 + $0x12a] sm:$0xff]
      %v1803 = vld [vmem:[%s418 + $0x13a] sm:$0xff]
      %v1804 = vld [vmem:[%s418 + $0x142] sm:$0xff]
      %v1805 = vld [vmem:[%s418 + $0x152] sm:$0xff]
      %v1806 = vld [vmem:[%s418 + $0x15a] sm:$0xff]
      %v1807 = vld [vmem:[%s418 + $0x16a] sm:$0xff]
      %v1808 = vld [vmem:[%s418 + $0x172] sm:$0xff]
      %s1809 = scalar_lea.vmem %s3, 20
      %v1810 = vld [vmem:[%s1809] sm:$0xf]
      %v1812 = vsel %vm372, %v1777, 0
      %v1815 = vsel %vm372, %v1778, 0
      %v1818 = vsel %vm372, %v1779, 0
      %v1821 = vsel %vm372, %v1780, 0
      %v1824 = vsel %vm372, %v1781, 0
      %v1827 = vsel %vm372, %v1782, 0
      %v1830 = vsel %vm372, %v1783, 0
      %v1833 = vsel %vm372, %v1784, 0
      %v1836 = vsel %vm372, %v1785, 0
      %v1839 = vsel %vm372, %v1786, 0
      %v1842 = vsel %vm372, %v1787, 0
      %v1845 = vsel %vm372, %v1788, 0
      %v1848 = vsel %vm372, %v1789, 0
      %v1851 = vsel %vm372, %v1790, 0
      %v1854 = vsel %vm372, %v1791, 0
      %v1857 = vsel %vm372, %v1792, 0
      %v1860 = vsel %vm372, %v1793, 0
      %v1863 = vsel %vm372, %v1794, 0
      %v1866 = vsel %vm372, %v1795, 0
      %v1869 = vsel %vm372, %v1796, 0
      %v1872 = vsel %vm372, %v1797, 0
      %v1875 = vsel %vm372, %v1798, 0
      %v1878 = vsel %vm372, %v1799, 0
      %v1881 = vsel %vm372, %v1800, 0
      %v1884 = vsel %vm372, %v1801, 0
      %v1887 = vsel %vm372, %v1802, 0
      %v1890 = vsel %vm372, %v1803, 0
      %v1893 = vsel %vm372, %v1804, 0
      %v1896 = vsel %vm372, %v1805, 0
      %v1899 = vsel %vm372, %v1806, 0
      %v1902 = vsel %vm372, %v1807, 0
      %v1905 = vsel %vm372, %v1808, 0
      %v1908 = vsel %vm614, %v1810, 0
      %1910 = vmatpush.msra.mxu0 0.0
      %1911 = vmatpush.msra.mxu0 0.0
      %1912 = vmatpush.msra.mxu0 0.0
      %1913 = vmatpush.msra.mxu0 0.0
      %1914 = vmatpush.msra.mxu0 0.0
      %1915 = vmatpush.msra.mxu0 0.0
      %1916 = vmatpush.msra.mxu0 0.0
      %1917 = vmatpush.msra.mxu0 0.0
      %1918 = vmatpush.msra.mxu0 0.0
      %1919 = vmatpush.msra.mxu0 0.0
      %1920 = vmatpush.msra.mxu0 0.0
      %1921 = vmatpush.msra.mxu0 0.0
      %1922 = vmatpush.msra.mxu0 0.0
      %1923 = vmatpush.msra.mxu0 0.0
      %1924 = vmatpush.msra.mxu0 0.0
      %1925 = vmatpush.msra.mxu0 %v1908
      %1926 = vmatmul.f32.gmra.mxu0 %v1812
      %v1927 = vpop.f32.mrf.mxu0
      %v1928 = vadd.f32 0.0, %v1927
      %1929 = vmatmul.f32.gmra.mxu0 %v1815
      %v1930 = vpop.f32.mrf.mxu0
      %v1931 = vadd.f32 0.0, %v1930
      %1932 = vmatmul.f32.gmra.mxu0 %v1818
      %v1933 = vpop.f32.mrf.mxu0
      %v1934 = vadd.f32 0.0, %v1933
      %1935 = vmatmul.f32.gmra.mxu0 %v1821
      %v1936 = vpop.f32.mrf.mxu0
      %v1937 = vadd.f32 0.0, %v1936
      %1938 = vmatmul.f32.gmra.mxu0 %v1824
      %v1939 = vpop.f32.mrf.mxu0
      %v1940 = vadd.f32 0.0, %v1939
      %1941 = vmatmul.f32.gmra.mxu0 %v1827
      %v1942 = vpop.f32.mrf.mxu0
      %v1943 = vadd.f32 0.0, %v1942
      %1944 = vmatmul.f32.gmra.mxu0 %v1830
      %v1945 = vpop.f32.mrf.mxu0
      %v1946 = vadd.f32 0.0, %v1945
      %1947 = vmatmul.f32.gmra.mxu0 %v1833
      %v1948 = vpop.f32.mrf.mxu0
      %v1949 = vadd.f32 0.0, %v1948
      %1950 = vmatmul.f32.gmra.mxu0 %v1836
      %v1951 = vpop.f32.mrf.mxu0
      %v1952 = vadd.f32 0.0, %v1951
      %1953 = vmatmul.f32.gmra.mxu0 %v1839
      %v1954 = vpop.f32.mrf.mxu0
      %v1955 = vadd.f32 0.0, %v1954
      %1956 = vmatmul.f32.gmra.mxu0 %v1842
      %v1957 = vpop.f32.mrf.mxu0
      %v1958 = vadd.f32 0.0, %v1957
      %1959 = vmatmul.f32.gmra.mxu0 %v1845
      %v1960 = vpop.f32.mrf.mxu0
      %v1961 = vadd.f32 0.0, %v1960
      %1962 = vmatmul.f32.gmra.mxu0 %v1848
      %v1963 = vpop.f32.mrf.mxu0
      %v1964 = vadd.f32 0.0, %v1963
      %1965 = vmatmul.f32.gmra.mxu0 %v1851
      %v1966 = vpop.f32.mrf.mxu0
      %v1967 = vadd.f32 0.0, %v1966
      %1968 = vmatmul.f32.gmra.mxu0 %v1854
      %v1969 = vpop.f32.mrf.mxu0
      %v1970 = vadd.f32 0.0, %v1969
      %1971 = vmatmul.f32.gmra.mxu0 %v1857
      %v1972 = vpop.f32.mrf.mxu0
      %v1973 = vadd.f32 0.0, %v1972
      %1974 = vmatmul.f32.gmra.mxu0 %v1860
      %v1975 = vpop.f32.mrf.mxu0
      %v1976 = vadd.f32 0.0, %v1975
      %1977 = vmatmul.f32.gmra.mxu0 %v1863
      %v1978 = vpop.f32.mrf.mxu0
      %v1979 = vadd.f32 0.0, %v1978
      %1980 = vmatmul.f32.gmra.mxu0 %v1866
      %v1981 = vpop.f32.mrf.mxu0
      %v1982 = vadd.f32 0.0, %v1981
      %1983 = vmatmul.f32.gmra.mxu0 %v1869
      %v1984 = vpop.f32.mrf.mxu0
      %v1985 = vadd.f32 0.0, %v1984
      %1986 = vmatmul.f32.gmra.mxu0 %v1872
      %v1987 = vpop.f32.mrf.mxu0
      %v1988 = vadd.f32 0.0, %v1987
      %1989 = vmatmul.f32.gmra.mxu0 %v1875
      %v1990 = vpop.f32.mrf.mxu0
      %v1991 = vadd.f32 0.0, %v1990
      %1992 = vmatmul.f32.gmra.mxu0 %v1878
      %v1993 = vpop.f32.mrf.mxu0
      %v1994 = vadd.f32 0.0, %v1993
      %1995 = vmatmul.f32.gmra.mxu0 %v1881
      %v1996 = vpop.f32.mrf.mxu0
      %v1997 = vadd.f32 0.0, %v1996
      %1998 = vmatmul.f32.gmra.mxu0 %v1884
      %v1999 = vpop.f32.mrf.mxu0
      %v2000 = vadd.f32 0.0, %v1999
      %2001 = vmatmul.f32.gmra.mxu0 %v1887
      %v2002 = vpop.f32.mrf.mxu0
      %v2003 = vadd.f32 0.0, %v2002
      %2004 = vmatmul.f32.gmra.mxu0 %v1890
      %v2005 = vpop.f32.mrf.mxu0
      %v2006 = vadd.f32 0.0, %v2005
      %2007 = vmatmul.f32.gmra.mxu0 %v1893
      %v2008 = vpop.f32.mrf.mxu0
      %v2009 = vadd.f32 0.0, %v2008
      %2010 = vmatmul.f32.gmra.mxu0 %v1896
      %v2011 = vpop.f32.mrf.mxu0
      %v2012 = vadd.f32 0.0, %v2011
      %2013 = vmatmul.f32.gmra.mxu0 %v1899
      %v2014 = vpop.f32.mrf.mxu0
      %v2015 = vadd.f32 0.0, %v2014
      %2016 = vmatmul.f32.gmra.mxu0 %v1902
      %v2017 = vpop.f32.mrf.mxu0
      %v2018 = vadd.f32 0.0, %v2017
      %2019 = vmatmul.f32.gmra.mxu0 %v1905
      %v2020 = vpop.f32.mrf.mxu0
      %v2021 = vadd.f32 0.0, %v2020
      %2022 = vdwg.mxu0
      %v2023 = vadd.f32 %v1745, %v1928
      %v2024 = vadd.f32 %v1746, %v1931
      %v2025 = vadd.f32 %v1747, %v1934
      %v2026 = vadd.f32 %v1748, %v1937
      %v2027 = vadd.f32 %v1749, %v1940
      %v2028 = vadd.f32 %v1750, %v1943
      %v2029 = vadd.f32 %v1751, %v1946
      %v2030 = vadd.f32 %v1752, %v1949
      %v2031 = vadd.f32 %v1753, %v1952
      %v2032 = vadd.f32 %v1754, %v1955
      %v2033 = vadd.f32 %v1755, %v1958
      %v2034 = vadd.f32 %v1756, %v1961
      %v2035 = vadd.f32 %v1757, %v1964
      %v2036 = vadd.f32 %v1758, %v1967
      %v2037 = vadd.f32 %v1759, %v1970
      %v2038 = vadd.f32 %v1760, %v1973
      %v2039 = vadd.f32 %v1761, %v1976
      %v2040 = vadd.f32 %v1762, %v1979
      %v2041 = vadd.f32 %v1763, %v1982
      %v2042 = vadd.f32 %v1764, %v1985
      %v2043 = vadd.f32 %v1765, %v1988
      %v2044 = vadd.f32 %v1766, %v1991
      %v2045 = vadd.f32 %v1767, %v1994
      %v2046 = vadd.f32 %v1768, %v1997
      %v2047 = vadd.f32 %v1769, %v2000
      %v2048 = vadd.f32 %v1770, %v2003
      %v2049 = vadd.f32 %v1771, %v2006
      %v2050 = vadd.f32 %v1772, %v2009
      %v2051 = vadd.f32 %v1773, %v2012
      %v2052 = vadd.f32 %v1774, %v2015
      %v2053 = vadd.f32 %v1775, %v2018
      %v2054 = vadd.f32 %v1776, %v2021
      %s2055 = scalar_lea.vmem [#allocation2], 48
      %v2056 = vld [vmem:[%s2055] sm:$0xff]
      %v2057 = vld [vmem:[%s2055 + $0x8] sm:$0xff]
      %v2058 = vld [vmem:[%s2055 + $0x18] sm:$0xff]
      %v2059 = vld [vmem:[%s2055 + $0x20] sm:$0xff]
      %v2060 = vld [vmem:[%s2055 + $0x30] sm:$0xff]
      %v2061 = vld [vmem:[%s2055 + $0x38] sm:$0xff]
      %v2062 = vld [vmem:[%s2055 + $0x48] sm:$0xff]
      %v2063 = vld [vmem:[%s2055 + $0x50] sm:$0xff]
      %v2064 = vld [vmem:[%s2055 + $0x60] sm:$0xff]
      %v2065 = vld [vmem:[%s2055 + $0x68] sm:$0xff]
      %v2066 = vld [vmem:[%s2055 + $0x78] sm:$0xff]
      %v2067 = vld [vmem:[%s2055 + $0x80] sm:$0xff]
      %v2068 = vld [vmem:[%s2055 + $0x90] sm:$0xff]
      %v2069 = vld [vmem:[%s2055 + $0x98] sm:$0xff]
      %v2070 = vld [vmem:[%s2055 + $0xa8] sm:$0xff]
      %v2071 = vld [vmem:[%s2055 + $0xb0] sm:$0xff]
      %v2072 = vld [vmem:[%s2055 + $0xc0] sm:$0xff]
      %v2073 = vld [vmem:[%s2055 + $0xc8] sm:$0xff]
      %v2074 = vld [vmem:[%s2055 + $0xd8] sm:$0xff]
      %v2075 = vld [vmem:[%s2055 + $0xe0] sm:$0xff]
      %v2076 = vld [vmem:[%s2055 + $0xf0] sm:$0xff]
      %v2077 = vld [vmem:[%s2055 + $0xf8] sm:$0xff]
      %v2078 = vld [vmem:[%s2055 + $0x108] sm:$0xff]
      %v2079 = vld [vmem:[%s2055 + $0x110] sm:$0xff]
      %v2080 = vld [vmem:[%s2055 + $0x120] sm:$0xff]
      %v2081 = vld [vmem:[%s2055 + $0x128] sm:$0xff]
      %v2082 = vld [vmem:[%s2055 + $0x138] sm:$0xff]
      %v2083 = vld [vmem:[%s2055 + $0x140] sm:$0xff]
      %v2084 = vld [vmem:[%s2055 + $0x150] sm:$0xff]
      %v2085 = vld [vmem:[%s2055 + $0x158] sm:$0xff]
      %v2086 = vld [vmem:[%s2055 + $0x168] sm:$0xff]
      %v2087 = vld [vmem:[%s2055 + $0x170] sm:$0xff]
      %s2088 = scalar_lea.vmem %s3, 24
      %v2089 = vld [vmem:[%s2088] sm:$0xf]
      %v2091 = vsel %vm372, %v2056, 0
      %v2094 = vsel %vm372, %v2057, 0
      %v2097 = vsel %vm372, %v2058, 0
      %v2100 = vsel %vm372, %v2059, 0
      %v2103 = vsel %vm372, %v2060, 0
      %v2106 = vsel %vm372, %v2061, 0
      %v2109 = vsel %vm372, %v2062, 0
      %v2112 = vsel %vm372, %v2063, 0
      %v2115 = vsel %vm372, %v2064, 0
      %v2118 = vsel %vm372, %v2065, 0
      %v2121 = vsel %vm372, %v2066, 0
      %v2124 = vsel %vm372, %v2067, 0
      %v2127 = vsel %vm372, %v2068, 0
      %v2130 = vsel %vm372, %v2069, 0
      %v2133 = vsel %vm372, %v2070, 0
      %v2136 = vsel %vm372, %v2071, 0
      %v2139 = vsel %vm372, %v2072, 0
      %v2142 = vsel %vm372, %v2073, 0
      %v2145 = vsel %vm372, %v2074, 0
      %v2148 = vsel %vm372, %v2075, 0
      %v2151 = vsel %vm372, %v2076, 0
      %v2154 = vsel %vm372, %v2077, 0
      %v2157 = vsel %vm372, %v2078, 0
      %v2160 = vsel %vm372, %v2079, 0
      %v2163 = vsel %vm372, %v2080, 0
      %v2166 = vsel %vm372, %v2081, 0
      %v2169 = vsel %vm372, %v2082, 0
      %v2172 = vsel %vm372, %v2083, 0
      %v2175 = vsel %vm372, %v2084, 0
      %v2178 = vsel %vm372, %v2085, 0
      %v2181 = vsel %vm372, %v2086, 0
      %v2184 = vsel %vm372, %v2087, 0
      %v2187 = vsel %vm614, %v2089, 0
      %2189 = vmatpush.msra.mxu0 0.0
      %2190 = vmatpush.msra.mxu0 0.0
      %2191 = vmatpush.msra.mxu0 0.0
      %2192 = vmatpush.msra.mxu0 0.0
      %2193 = vmatpush.msra.mxu0 0.0
      %2194 = vmatpush.msra.mxu0 0.0
      %2195 = vmatpush.msra.mxu0 0.0
      %2196 = vmatpush.msra.mxu0 0.0
      %2197 = vmatpush.msra.mxu0 0.0
      %2198 = vmatpush.msra.mxu0 0.0
      %2199 = vmatpush.msra.mxu0 0.0
      %2200 = vmatpush.msra.mxu0 0.0
      %2201 = vmatpush.msra.mxu0 0.0
      %2202 = vmatpush.msra.mxu0 0.0
      %2203 = vmatpush.msra.mxu0 0.0
      %2204 = vmatpush.msra.mxu0 %v2187
      %2205 = vmatmul.f32.gmra.mxu0 %v2091
      %v2206 = vpop.f32.mrf.mxu0
      %v2207 = vadd.f32 0.0, %v2206
      %2208 = vmatmul.f32.gmra.mxu0 %v2094
      %v2209 = vpop.f32.mrf.mxu0
      %v2210 = vadd.f32 0.0, %v2209
      %2211 = vmatmul.f32.gmra.mxu0 %v2097
      %v2212 = vpop.f32.mrf.mxu0
      %v2213 = vadd.f32 0.0, %v2212
      %2214 = vmatmul.f32.gmra.mxu0 %v2100
      %v2215 = vpop.f32.mrf.mxu0
      %v2216 = vadd.f32 0.0, %v2215
      %2217 = vmatmul.f32.gmra.mxu0 %v2103
      %v2218 = vpop.f32.mrf.mxu0
      %v2219 = vadd.f32 0.0, %v2218
      %2220 = vmatmul.f32.gmra.mxu0 %v2106
      %v2221 = vpop.f32.mrf.mxu0
      %v2222 = vadd.f32 0.0, %v2221
      %2223 = vmatmul.f32.gmra.mxu0 %v2109
      %v2224 = vpop.f32.mrf.mxu0
      %v2225 = vadd.f32 0.0, %v2224
      %2226 = vmatmul.f32.gmra.mxu0 %v2112
      %v2227 = vpop.f32.mrf.mxu0
      %v2228 = vadd.f32 0.0, %v2227
      %2229 = vmatmul.f32.gmra.mxu0 %v2115
      %v2230 = vpop.f32.mrf.mxu0
      %v2231 = vadd.f32 0.0, %v2230
      %2232 = vmatmul.f32.gmra.mxu0 %v2118
      %v2233 = vpop.f32.mrf.mxu0
      %v2234 = vadd.f32 0.0, %v2233
      %2235 = vmatmul.f32.gmra.mxu0 %v2121
      %v2236 = vpop.f32.mrf.mxu0
      %v2237 = vadd.f32 0.0, %v2236
      %2238 = vmatmul.f32.gmra.mxu0 %v2124
      %v2239 = vpop.f32.mrf.mxu0
      %v2240 = vadd.f32 0.0, %v2239
      %2241 = vmatmul.f32.gmra.mxu0 %v2127
      %v2242 = vpop.f32.mrf.mxu0
      %v2243 = vadd.f32 0.0, %v2242
      %2244 = vmatmul.f32.gmra.mxu0 %v2130
      %v2245 = vpop.f32.mrf.mxu0
      %v2246 = vadd.f32 0.0, %v2245
      %2247 = vmatmul.f32.gmra.mxu0 %v2133
      %v2248 = vpop.f32.mrf.mxu0
      %v2249 = vadd.f32 0.0, %v2248
      %2250 = vmatmul.f32.gmra.mxu0 %v2136
      %v2251 = vpop.f32.mrf.mxu0
      %v2252 = vadd.f32 0.0, %v2251
      %2253 = vmatmul.f32.gmra.mxu0 %v2139
      %v2254 = vpop.f32.mrf.mxu0
      %v2255 = vadd.f32 0.0, %v2254
      %2256 = vmatmul.f32.gmra.mxu0 %v2142
      %v2257 = vpop.f32.mrf.mxu0
      %v2258 = vadd.f32 0.0, %v2257
      %2259 = vmatmul.f32.gmra.mxu0 %v2145
      %v2260 = vpop.f32.mrf.mxu0
      %v2261 = vadd.f32 0.0, %v2260
      %2262 = vmatmul.f32.gmra.mxu0 %v2148
      %v2263 = vpop.f32.mrf.mxu0
      %v2264 = vadd.f32 0.0, %v2263
      %2265 = vmatmul.f32.gmra.mxu0 %v2151
      %v2266 = vpop.f32.mrf.mxu0
      %v2267 = vadd.f32 0.0, %v2266
      %2268 = vmatmul.f32.gmra.mxu0 %v2154
      %v2269 = vpop.f32.mrf.mxu0
      %v2270 = vadd.f32 0.0, %v2269
      %2271 = vmatmul.f32.gmra.mxu0 %v2157
      %v2272 = vpop.f32.mrf.mxu0
      %v2273 = vadd.f32 0.0, %v2272
      %2274 = vmatmul.f32.gmra.mxu0 %v2160
      %v2275 = vpop.f32.mrf.mxu0
      %v2276 = vadd.f32 0.0, %v2275
      %2277 = vmatmul.f32.gmra.mxu0 %v2163
      %v2278 = vpop.f32.mrf.mxu0
      %v2279 = vadd.f32 0.0, %v2278
      %2280 = vmatmul.f32.gmra.mxu0 %v2166
      %v2281 = vpop.f32.mrf.mxu0
      %v2282 = vadd.f32 0.0, %v2281
      %2283 = vmatmul.f32.gmra.mxu0 %v2169
      %v2284 = vpop.f32.mrf.mxu0
      %v2285 = vadd.f32 0.0, %v2284
      %2286 = vmatmul.f32.gmra.mxu0 %v2172
      %v2287 = vpop.f32.mrf.mxu0
      %v2288 = vadd.f32 0.0, %v2287
      %2289 = vmatmul.f32.gmra.mxu0 %v2175
      %v2290 = vpop.f32.mrf.mxu0
      %v2291 = vadd.f32 0.0, %v2290
      %2292 = vmatmul.f32.gmra.mxu0 %v2178
      %v2293 = vpop.f32.mrf.mxu0
      %v2294 = vadd.f32 0.0, %v2293
      %2295 = vmatmul.f32.gmra.mxu0 %v2181
      %v2296 = vpop.f32.mrf.mxu0
      %v2297 = vadd.f32 0.0, %v2296
      %2298 = vmatmul.f32.gmra.mxu0 %v2184
      %v2299 = vpop.f32.mrf.mxu0
      %v2300 = vadd.f32 0.0, %v2299
      %2301 = vdwg.mxu0
      %v2302 = vadd.f32 %v2023, %v2207
      %v2303 = vadd.f32 %v2024, %v2210
      %v2304 = vadd.f32 %v2025, %v2213
      %v2305 = vadd.f32 %v2026, %v2216
      %v2306 = vadd.f32 %v2027, %v2219
      %v2307 = vadd.f32 %v2028, %v2222
      %v2308 = vadd.f32 %v2029, %v2225
      %v2309 = vadd.f32 %v2030, %v2228
      %v2310 = vadd.f32 %v2031, %v2231
      %v2311 = vadd.f32 %v2032, %v2234
      %v2312 = vadd.f32 %v2033, %v2237
      %v2313 = vadd.f32 %v2034, %v2240
      %v2314 = vadd.f32 %v2035, %v2243
      %v2315 = vadd.f32 %v2036, %v2246
      %v2316 = vadd.f32 %v2037, %v2249
      %v2317 = vadd.f32 %v2038, %v2252
      %v2318 = vadd.f32 %v2039, %v2255
      %v2319 = vadd.f32 %v2040, %v2258
      %v2320 = vadd.f32 %v2041, %v2261
      %v2321 = vadd.f32 %v2042, %v2264
      %v2322 = vadd.f32 %v2043, %v2267
      %v2323 = vadd.f32 %v2044, %v2270
      %v2324 = vadd.f32 %v2045, %v2273
      %v2325 = vadd.f32 %v2046, %v2276
      %v2326 = vadd.f32 %v2047, %v2279
      %v2327 = vadd.f32 %v2048, %v2282
      %v2328 = vadd.f32 %v2049, %v2285
      %v2329 = vadd.f32 %v2050, %v2288
      %v2330 = vadd.f32 %v2051, %v2291
      %v2331 = vadd.f32 %v2052, %v2294
      %v2332 = vadd.f32 %v2053, %v2297
      %v2333 = vadd.f32 %v2054, %v2300
      %v2334 = vld [vmem:[%s2055 + $0x1] sm:$0xff]
      %v2335 = vld [vmem:[%s2055 + $0x9] sm:$0xff]
      %v2336 = vld [vmem:[%s2055 + $0x19] sm:$0xff]
      %v2337 = vld [vmem:[%s2055 + $0x21] sm:$0xff]
      %v2338 = vld [vmem:[%s2055 + $0x31] sm:$0xff]
      %v2339 = vld [vmem:[%s2055 + $0x39] sm:$0xff]
      %v2340 = vld [vmem:[%s2055 + $0x49] sm:$0xff]
      %v2341 = vld [vmem:[%s2055 + $0x51] sm:$0xff]
      %v2342 = vld [vmem:[%s2055 + $0x61] sm:$0xff]
      %v2343 = vld [vmem:[%s2055 + $0x69] sm:$0xff]
      %v2344 = vld [vmem:[%s2055 + $0x79] sm:$0xff]
      %v2345 = vld [vmem:[%s2055 + $0x81] sm:$0xff]
      %v2346 = vld [vmem:[%s2055 + $0x91] sm:$0xff]
      %v2347 = vld [vmem:[%s2055 + $0x99] sm:$0xff]
      %v2348 = vld [vmem:[%s2055 + $0xa9] sm:$0xff]
      %v2349 = vld [vmem:[%s2055 + $0xb1] sm:$0xff]
      %v2350 = vld [vmem:[%s2055 + $0xc1] sm:$0xff]
      %v2351 = vld [vmem:[%s2055 + $0xc9] sm:$0xff]
      %v2352 = vld [vmem:[%s2055 + $0xd9] sm:$0xff]
      %v2353 = vld [vmem:[%s2055 + $0xe1] sm:$0xff]
      %v2354 = vld [vmem:[%s2055 + $0xf1] sm:$0xff]
      %v2355 = vld [vmem:[%s2055 + $0xf9] sm:$0xff]
      %v2356 = vld [vmem:[%s2055 + $0x109] sm:$0xff]
      %v2357 = vld [vmem:[%s2055 + $0x111] sm:$0xff]
      %v2358 = vld [vmem:[%s2055 + $0x121] sm:$0xff]
      %v2359 = vld [vmem:[%s2055 + $0x129] sm:$0xff]
      %v2360 = vld [vmem:[%s2055 + $0x139] sm:$0xff]
      %v2361 = vld [vmem:[%s2055 + $0x141] sm:$0xff]
      %v2362 = vld [vmem:[%s2055 + $0x151] sm:$0xff]
      %v2363 = vld [vmem:[%s2055 + $0x159] sm:$0xff]
      %v2364 = vld [vmem:[%s2055 + $0x169] sm:$0xff]
      %v2365 = vld [vmem:[%s2055 + $0x171] sm:$0xff]
      %s2366 = scalar_lea.vmem %s3, 28
      %v2367 = vld [vmem:[%s2366] sm:$0xf]
      %v2369 = vsel %vm372, %v2334, 0
      %v2372 = vsel %vm372, %v2335, 0
      %v2375 = vsel %vm372, %v2336, 0
      %v2378 = vsel %vm372, %v2337, 0
      %v2381 = vsel %vm372, %v2338, 0
      %v2384 = vsel %vm372, %v2339, 0
      %v2387 = vsel %vm372, %v2340, 0
      %v2390 = vsel %vm372, %v2341, 0
      %v2393 = vsel %vm372, %v2342, 0
      %v2396 = vsel %vm372, %v2343, 0
      %v2399 = vsel %vm372, %v2344, 0
      %v2402 = vsel %vm372, %v2345, 0
      %v2405 = vsel %vm372, %v2346, 0
      %v2408 = vsel %vm372, %v2347, 0
      %v2411 = vsel %vm372, %v2348, 0
      %v2414 = vsel %vm372, %v2349, 0
      %v2417 = vsel %vm372, %v2350, 0
      %v2420 = vsel %vm372, %v2351, 0
      %v2423 = vsel %vm372, %v2352, 0
      %v2426 = vsel %vm372, %v2353, 0
      %v2429 = vsel %vm372, %v2354, 0
      %v2432 = vsel %vm372, %v2355, 0
      %v2435 = vsel %vm372, %v2356, 0
      %v2438 = vsel %vm372, %v2357, 0
      %v2441 = vsel %vm372, %v2358, 0
      %v2444 = vsel %vm372, %v2359, 0
      %v2447 = vsel %vm372, %v2360, 0
      %v2450 = vsel %vm372, %v2361, 0
      %v2453 = vsel %vm372, %v2362, 0
      %v2456 = vsel %vm372, %v2363, 0
      %v2459 = vsel %vm372, %v2364, 0
      %v2462 = vsel %vm372, %v2365, 0
      %v2465 = vsel %vm614, %v2367, 0
      %2467 = vmatpush.msra.mxu0 0.0
      %2468 = vmatpush.msra.mxu0 0.0
      %2469 = vmatpush.msra.mxu0 0.0
      %2470 = vmatpush.msra.mxu0 0.0
      %2471 = vmatpush.msra.mxu0 0.0
      %2472 = vmatpush.msra.mxu0 0.0
      %2473 = vmatpush.msra.mxu0 0.0
      %2474 = vmatpush.msra.mxu0 0.0
      %2475 = vmatpush.msra.mxu0 0.0
      %2476 = vmatpush.msra.mxu0 0.0
      %2477 = vmatpush.msra.mxu0 0.0
      %2478 = vmatpush.msra.mxu0 0.0
      %2479 = vmatpush.msra.mxu0 0.0
      %2480 = vmatpush.msra.mxu0 0.0
      %2481 = vmatpush.msra.mxu0 0.0
      %2482 = vmatpush.msra.mxu0 %v2465
      %2483 = vmatmul.f32.gmra.mxu0 %v2369
      %v2484 = vpop.f32.mrf.mxu0
      %v2485 = vadd.f32 0.0, %v2484
      %2486 = vmatmul.f32.gmra.mxu0 %v2372
      %v2487 = vpop.f32.mrf.mxu0
      %v2488 = vadd.f32 0.0, %v2487
      %2489 = vmatmul.f32.gmra.mxu0 %v2375
      %v2490 = vpop.f32.mrf.mxu0
      %v2491 = vadd.f32 0.0, %v2490
      %2492 = vmatmul.f32.gmra.mxu0 %v2378
      %v2493 = vpop.f32.mrf.mxu0
      %v2494 = vadd.f32 0.0, %v2493
      %2495 = vmatmul.f32.gmra.mxu0 %v2381
      %v2496 = vpop.f32.mrf.mxu0
      %v2497 = vadd.f32 0.0, %v2496
      %2498 = vmatmul.f32.gmra.mxu0 %v2384
      %v2499 = vpop.f32.mrf.mxu0
      %v2500 = vadd.f32 0.0, %v2499
      %2501 = vmatmul.f32.gmra.mxu0 %v2387
      %v2502 = vpop.f32.mrf.mxu0
      %v2503 = vadd.f32 0.0, %v2502
      %2504 = vmatmul.f32.gmra.mxu0 %v2390
      %v2505 = vpop.f32.mrf.mxu0
      %v2506 = vadd.f32 0.0, %v2505
      %2507 = vmatmul.f32.gmra.mxu0 %v2393
      %v2508 = vpop.f32.mrf.mxu0
      %v2509 = vadd.f32 0.0, %v2508
      %2510 = vmatmul.f32.gmra.mxu0 %v2396
      %v2511 = vpop.f32.mrf.mxu0
      %v2512 = vadd.f32 0.0, %v2511
      %2513 = vmatmul.f32.gmra.mxu0 %v2399
      %v2514 = vpop.f32.mrf.mxu0
      %v2515 = vadd.f32 0.0, %v2514
      %2516 = vmatmul.f32.gmra.mxu0 %v2402
      %v2517 = vpop.f32.mrf.mxu0
      %v2518 = vadd.f32 0.0, %v2517
      %2519 = vmatmul.f32.gmra.mxu0 %v2405
      %v2520 = vpop.f32.mrf.mxu0
      %v2521 = vadd.f32 0.0, %v2520
      %2522 = vmatmul.f32.gmra.mxu0 %v2408
      %v2523 = vpop.f32.mrf.mxu0
      %v2524 = vadd.f32 0.0, %v2523
      %2525 = vmatmul.f32.gmra.mxu0 %v2411
      %v2526 = vpop.f32.mrf.mxu0
      %v2527 = vadd.f32 0.0, %v2526
      %2528 = vmatmul.f32.gmra.mxu0 %v2414
      %v2529 = vpop.f32.mrf.mxu0
      %v2530 = vadd.f32 0.0, %v2529
      %2531 = vmatmul.f32.gmra.mxu0 %v2417
      %v2532 = vpop.f32.mrf.mxu0
      %v2533 = vadd.f32 0.0, %v2532
      %2534 = vmatmul.f32.gmra.mxu0 %v2420
      %v2535 = vpop.f32.mrf.mxu0
      %v2536 = vadd.f32 0.0, %v2535
      %2537 = vmatmul.f32.gmra.mxu0 %v2423
      %v2538 = vpop.f32.mrf.mxu0
      %v2539 = vadd.f32 0.0, %v2538
      %2540 = vmatmul.f32.gmra.mxu0 %v2426
      %v2541 = vpop.f32.mrf.mxu0
      %v2542 = vadd.f32 0.0, %v2541
      %2543 = vmatmul.f32.gmra.mxu0 %v2429
      %v2544 = vpop.f32.mrf.mxu0
      %v2545 = vadd.f32 0.0, %v2544
      %2546 = vmatmul.f32.gmra.mxu0 %v2432
      %v2547 = vpop.f32.mrf.mxu0
      %v2548 = vadd.f32 0.0, %v2547
      %2549 = vmatmul.f32.gmra.mxu0 %v2435
      %v2550 = vpop.f32.mrf.mxu0
      %v2551 = vadd.f32 0.0, %v2550
      %2552 = vmatmul.f32.gmra.mxu0 %v2438
      %v2553 = vpop.f32.mrf.mxu0
      %v2554 = vadd.f32 0.0, %v2553
      %2555 = vmatmul.f32.gmra.mxu0 %v2441
      %v2556 = vpop.f32.mrf.mxu0
      %v2557 = vadd.f32 0.0, %v2556
      %2558 = vmatmul.f32.gmra.mxu0 %v2444
      %v2559 = vpop.f32.mrf.mxu0
      %v2560 = vadd.f32 0.0, %v2559
      %2561 = vmatmul.f32.gmra.mxu0 %v2447
      %v2562 = vpop.f32.mrf.mxu0
      %v2563 = vadd.f32 0.0, %v2562
      %2564 = vmatmul.f32.gmra.mxu0 %v2450
      %v2565 = vpop.f32.mrf.mxu0
      %v2566 = vadd.f32 0.0, %v2565
      %2567 = vmatmul.f32.gmra.mxu0 %v2453
      %v2568 = vpop.f32.mrf.mxu0
      %v2569 = vadd.f32 0.0, %v2568
      %2570 = vmatmul.f32.gmra.mxu0 %v2456
      %v2571 = vpop.f32.mrf.mxu0
      %v2572 = vadd.f32 0.0, %v2571
      %2573 = vmatmul.f32.gmra.mxu0 %v2459
      %v2574 = vpop.f32.mrf.mxu0
      %v2575 = vadd.f32 0.0, %v2574
      %2576 = vmatmul.f32.gmra.mxu0 %v2462
      %v2577 = vpop.f32.mrf.mxu0
      %v2578 = vadd.f32 0.0, %v2577
      %2579 = vdwg.mxu0
      %v2580 = vadd.f32 %v2302, %v2485
      %v2581 = vadd.f32 %v2303, %v2488
      %v2582 = vadd.f32 %v2304, %v2491
      %v2583 = vadd.f32 %v2305, %v2494
      %v2584 = vadd.f32 %v2306, %v2497
      %v2585 = vadd.f32 %v2307, %v2500
      %v2586 = vadd.f32 %v2308, %v2503
      %v2587 = vadd.f32 %v2309, %v2506
      %v2588 = vadd.f32 %v2310, %v2509
      %v2589 = vadd.f32 %v2311, %v2512
      %v2590 = vadd.f32 %v2312, %v2515
      %v2591 = vadd.f32 %v2313, %v2518
      %v2592 = vadd.f32 %v2314, %v2521
      %v2593 = vadd.f32 %v2315, %v2524
      %v2594 = vadd.f32 %v2316, %v2527
      %v2595 = vadd.f32 %v2317, %v2530
      %v2596 = vadd.f32 %v2318, %v2533
      %v2597 = vadd.f32 %v2319, %v2536
      %v2598 = vadd.f32 %v2320, %v2539
      %v2599 = vadd.f32 %v2321, %v2542
      %v2600 = vadd.f32 %v2322, %v2545
      %v2601 = vadd.f32 %v2323, %v2548
      %v2602 = vadd.f32 %v2324, %v2551
      %v2603 = vadd.f32 %v2325, %v2554
      %v2604 = vadd.f32 %v2326, %v2557
      %v2605 = vadd.f32 %v2327, %v2560
      %v2606 = vadd.f32 %v2328, %v2563
      %v2607 = vadd.f32 %v2329, %v2566
      %v2608 = vadd.f32 %v2330, %v2569
      %v2609 = vadd.f32 %v2331, %v2572
      %v2610 = vadd.f32 %v2332, %v2575
      %v2611 = vadd.f32 %v2333, %v2578
      %v2612 = vld [vmem:[%s2055 + $0x2] sm:$0xff]
      %v2613 = vld [vmem:[%s2055 + $0xa] sm:$0xff]
      %v2614 = vld [vmem:[%s2055 + $0x1a] sm:$0xff]
      %v2615 = vld [vmem:[%s2055 + $0x22] sm:$0xff]
      %v2616 = vld [vmem:[%s2055 + $0x32] sm:$0xff]
      %v2617 = vld [vmem:[%s2055 + $0x3a] sm:$0xff]
      %v2618 = vld [vmem:[%s2055 + $0x4a] sm:$0xff]
      %v2619 = vld [vmem:[%s2055 + $0x52] sm:$0xff]
      %v2620 = vld [vmem:[%s2055 + $0x62] sm:$0xff]
      %v2621 = vld [vmem:[%s2055 + $0x6a] sm:$0xff]
      %v2622 = vld [vmem:[%s2055 + $0x7a] sm:$0xff]
      %v2623 = vld [vmem:[%s2055 + $0x82] sm:$0xff]
      %v2624 = vld [vmem:[%s2055 + $0x92] sm:$0xff]
      %v2625 = vld [vmem:[%s2055 + $0x9a] sm:$0xff]
      %v2626 = vld [vmem:[%s2055 + $0xaa] sm:$0xff]
      %v2627 = vld [vmem:[%s2055 + $0xb2] sm:$0xff]
      %v2628 = vld [vmem:[%s2055 + $0xc2] sm:$0xff]
      %v2629 = vld [vmem:[%s2055 + $0xca] sm:$0xff]
      %v2630 = vld [vmem:[%s2055 + $0xda] sm:$0xff]
      %v2631 = vld [vmem:[%s2055 + $0xe2] sm:$0xff]
      %v2632 = vld [vmem:[%s2055 + $0xf2] sm:$0xff]
      %v2633 = vld [vmem:[%s2055 + $0xfa] sm:$0xff]
      %v2634 = vld [vmem:[%s2055 + $0x10a] sm:$0xff]
      %v2635 = vld [vmem:[%s2055 + $0x112] sm:$0xff]
      %v2636 = vld [vmem:[%s2055 + $0x122] sm:$0xff]
      %v2637 = vld [vmem:[%s2055 + $0x12a] sm:$0xff]
      %v2638 = vld [vmem:[%s2055 + $0x13a] sm:$0xff]
      %v2639 = vld [vmem:[%s2055 + $0x142] sm:$0xff]
      %v2640 = vld [vmem:[%s2055 + $0x152] sm:$0xff]
      %v2641 = vld [vmem:[%s2055 + $0x15a] sm:$0xff]
      %v2642 = vld [vmem:[%s2055 + $0x16a] sm:$0xff]
      %v2643 = vld [vmem:[%s2055 + $0x172] sm:$0xff]
      %s2644 = scalar_lea.vmem %s3, 32
      %v2645 = vld [vmem:[%s2644] sm:$0xf]
      %v2647 = vsel %vm372, %v2612, 0
      %v2650 = vsel %vm372, %v2613, 0
      %v2653 = vsel %vm372, %v2614, 0
      %v2656 = vsel %vm372, %v2615, 0
      %v2659 = vsel %vm372, %v2616, 0
      %v2662 = vsel %vm372, %v2617, 0
      %v2665 = vsel %vm372, %v2618, 0
      %v2668 = vsel %vm372, %v2619, 0
      %v2671 = vsel %vm372, %v2620, 0
      %v2674 = vsel %vm372, %v2621, 0
      %v2677 = vsel %vm372, %v2622, 0
      %v2680 = vsel %vm372, %v2623, 0
      %v2683 = vsel %vm372, %v2624, 0
      %v2686 = vsel %vm372, %v2625, 0
      %v2689 = vsel %vm372, %v2626, 0
      %v2692 = vsel %vm372, %v2627, 0
      %v2695 = vsel %vm372, %v2628, 0
      %v2698 = vsel %vm372, %v2629, 0
      %v2701 = vsel %vm372, %v2630, 0
      %v2704 = vsel %vm372, %v2631, 0
      %v2707 = vsel %vm372, %v2632, 0
      %v2710 = vsel %vm372, %v2633, 0
      %v2713 = vsel %vm372, %v2634, 0
      %v2716 = vsel %vm372, %v2635, 0
      %v2719 = vsel %vm372, %v2636, 0
      %v2722 = vsel %vm372, %v2637, 0
      %v2725 = vsel %vm372, %v2638, 0
      %v2728 = vsel %vm372, %v2639, 0
      %v2731 = vsel %vm372, %v2640, 0
      %v2734 = vsel %vm372, %v2641, 0
      %v2737 = vsel %vm372, %v2642, 0
      %v2740 = vsel %vm372, %v2643, 0
      %v2743 = vsel %vm614, %v2645, 0
      %2745 = vmatpush.msra.mxu0 0.0
      %2746 = vmatpush.msra.mxu0 0.0
      %2747 = vmatpush.msra.mxu0 0.0
      %2748 = vmatpush.msra.mxu0 0.0
      %2749 = vmatpush.msra.mxu0 0.0
      %2750 = vmatpush.msra.mxu0 0.0
      %2751 = vmatpush.msra.mxu0 0.0
      %2752 = vmatpush.msra.mxu0 0.0
      %2753 = vmatpush.msra.mxu0 0.0
      %2754 = vmatpush.msra.mxu0 0.0
      %2755 = vmatpush.msra.mxu0 0.0
      %2756 = vmatpush.msra.mxu0 0.0
      %2757 = vmatpush.msra.mxu0 0.0
      %2758 = vmatpush.msra.mxu0 0.0
      %2759 = vmatpush.msra.mxu0 0.0
      %2760 = vmatpush.msra.mxu0 %v2743
      %2761 = vmatmul.f32.gmra.mxu0 %v2647
      %v2762 = vpop.f32.mrf.mxu0
      %v2763 = vadd.f32 0.0, %v2762
      %2764 = vmatmul.f32.gmra.mxu0 %v2650
      %v2765 = vpop.f32.mrf.mxu0
      %v2766 = vadd.f32 0.0, %v2765
      %2767 = vmatmul.f32.gmra.mxu0 %v2653
      %v2768 = vpop.f32.mrf.mxu0
      %v2769 = vadd.f32 0.0, %v2768
      %2770 = vmatmul.f32.gmra.mxu0 %v2656
      %v2771 = vpop.f32.mrf.mxu0
      %v2772 = vadd.f32 0.0, %v2771
      %2773 = vmatmul.f32.gmra.mxu0 %v2659
      %v2774 = vpop.f32.mrf.mxu0
      %v2775 = vadd.f32 0.0, %v2774
      %2776 = vmatmul.f32.gmra.mxu0 %v2662
      %v2777 = vpop.f32.mrf.mxu0
      %v2778 = vadd.f32 0.0, %v2777
      %2779 = vmatmul.f32.gmra.mxu0 %v2665
      %v2780 = vpop.f32.mrf.mxu0
      %v2781 = vadd.f32 0.0, %v2780
      %2782 = vmatmul.f32.gmra.mxu0 %v2668
      %v2783 = vpop.f32.mrf.mxu0
      %v2784 = vadd.f32 0.0, %v2783
      %2785 = vmatmul.f32.gmra.mxu0 %v2671
      %v2786 = vpop.f32.mrf.mxu0
      %v2787 = vadd.f32 0.0, %v2786
      %2788 = vmatmul.f32.gmra.mxu0 %v2674
      %v2789 = vpop.f32.mrf.mxu0
      %v2790 = vadd.f32 0.0, %v2789
      %2791 = vmatmul.f32.gmra.mxu0 %v2677
      %v2792 = vpop.f32.mrf.mxu0
      %v2793 = vadd.f32 0.0, %v2792
      %2794 = vmatmul.f32.gmra.mxu0 %v2680
      %v2795 = vpop.f32.mrf.mxu0
      %v2796 = vadd.f32 0.0, %v2795
      %2797 = vmatmul.f32.gmra.mxu0 %v2683
      %v2798 = vpop.f32.mrf.mxu0
      %v2799 = vadd.f32 0.0, %v2798
      %2800 = vmatmul.f32.gmra.mxu0 %v2686
      %v2801 = vpop.f32.mrf.mxu0
      %v2802 = vadd.f32 0.0, %v2801
      %2803 = vmatmul.f32.gmra.mxu0 %v2689
      %v2804 = vpop.f32.mrf.mxu0
      %v2805 = vadd.f32 0.0, %v2804
      %2806 = vmatmul.f32.gmra.mxu0 %v2692
      %v2807 = vpop.f32.mrf.mxu0
      %v2808 = vadd.f32 0.0, %v2807
      %2809 = vmatmul.f32.gmra.mxu0 %v2695
      %v2810 = vpop.f32.mrf.mxu0
      %v2811 = vadd.f32 0.0, %v2810
      %2812 = vmatmul.f32.gmra.mxu0 %v2698
      %v2813 = vpop.f32.mrf.mxu0
      %v2814 = vadd.f32 0.0, %v2813
      %2815 = vmatmul.f32.gmra.mxu0 %v2701
      %v2816 = vpop.f32.mrf.mxu0
      %v2817 = vadd.f32 0.0, %v2816
      %2818 = vmatmul.f32.gmra.mxu0 %v2704
      %v2819 = vpop.f32.mrf.mxu0
      %v2820 = vadd.f32 0.0, %v2819
      %2821 = vmatmul.f32.gmra.mxu0 %v2707
      %v2822 = vpop.f32.mrf.mxu0
      %v2823 = vadd.f32 0.0, %v2822
      %2824 = vmatmul.f32.gmra.mxu0 %v2710
      %v2825 = vpop.f32.mrf.mxu0
      %v2826 = vadd.f32 0.0, %v2825
      %2827 = vmatmul.f32.gmra.mxu0 %v2713
      %v2828 = vpop.f32.mrf.mxu0
      %v2829 = vadd.f32 0.0, %v2828
      %2830 = vmatmul.f32.gmra.mxu0 %v2716
      %v2831 = vpop.f32.mrf.mxu0
      %v2832 = vadd.f32 0.0, %v2831
      %2833 = vmatmul.f32.gmra.mxu0 %v2719
      %v2834 = vpop.f32.mrf.mxu0
      %v2835 = vadd.f32 0.0, %v2834
      %2836 = vmatmul.f32.gmra.mxu0 %v2722
      %v2837 = vpop.f32.mrf.mxu0
      %v2838 = vadd.f32 0.0, %v2837
      %2839 = vmatmul.f32.gmra.mxu0 %v2725
      %v2840 = vpop.f32.mrf.mxu0
      %v2841 = vadd.f32 0.0, %v2840
      %2842 = vmatmul.f32.gmra.mxu0 %v2728
      %v2843 = vpop.f32.mrf.mxu0
      %v2844 = vadd.f32 0.0, %v2843
      %2845 = vmatmul.f32.gmra.mxu0 %v2731
      %v2846 = vpop.f32.mrf.mxu0
      %v2847 = vadd.f32 0.0, %v2846
      %2848 = vmatmul.f32.gmra.mxu0 %v2734
      %v2849 = vpop.f32.mrf.mxu0
      %v2850 = vadd.f32 0.0, %v2849
      %2851 = vmatmul.f32.gmra.mxu0 %v2737
      %v2852 = vpop.f32.mrf.mxu0
      %v2853 = vadd.f32 0.0, %v2852
      %2854 = vmatmul.f32.gmra.mxu0 %v2740
      %v2855 = vpop.f32.mrf.mxu0
      %v2856 = vadd.f32 0.0, %v2855
      %2857 = vdwg.mxu0
      %v2858 = vadd.f32 %v2580, %v2763
      %v2859 = vadd.f32 %v2581, %v2766
      %v2860 = vadd.f32 %v2582, %v2769
      %v2861 = vadd.f32 %v2583, %v2772
      %v2862 = vadd.f32 %v2584, %v2775
      %v2863 = vadd.f32 %v2585, %v2778
      %v2864 = vadd.f32 %v2586, %v2781
      %v2865 = vadd.f32 %v2587, %v2784
      %v2866 = vadd.f32 %v2588, %v2787
      %v2867 = vadd.f32 %v2589, %v2790
      %v2868 = vadd.f32 %v2590, %v2793
      %v2869 = vadd.f32 %v2591, %v2796
      %v2870 = vadd.f32 %v2592, %v2799
      %v2871 = vadd.f32 %v2593, %v2802
      %v2872 = vadd.f32 %v2594, %v2805
      %v2873 = vadd.f32 %v2595, %v2808
      %v2874 = vadd.f32 %v2596, %v2811
      %v2875 = vadd.f32 %v2597, %v2814
      %v2876 = vadd.f32 %v2598, %v2817
      %v2877 = vadd.f32 %v2599, %v2820
      %v2878 = vadd.f32 %v2600, %v2823
      %v2879 = vadd.f32 %v2601, %v2826
      %v2880 = vadd.f32 %v2602, %v2829
      %v2881 = vadd.f32 %v2603, %v2832
      %v2882 = vadd.f32 %v2604, %v2835
      %v2883 = vadd.f32 %v2605, %v2838
      %v2884 = vadd.f32 %v2606, %v2841
      %v2885 = vadd.f32 %v2607, %v2844
      %v2886 = vadd.f32 %v2608, %v2847
      %v2887 = vadd.f32 %v2609, %v2850
      %v2888 = vadd.f32 %v2610, %v2853
      %v2889 = vadd.f32 %v2611, %v2856
      %2890 = vst.msk [vmem:[%s231] sm:$0xff] %vm372, %v2858
      %2891 = vst.msk [vmem:[%s231 + $0x8] sm:$0xff] %vm372, %v2859
      %2892 = vst.msk [vmem:[%s231 + $0x10] sm:$0xff] %vm372, %v2860
      %2893 = vst.msk [vmem:[%s231 + $0x18] sm:$0xff] %vm372, %v2861
      %2894 = vst.msk [vmem:[%s231 + $0x20] sm:$0xff] %vm372, %v2862
      %2895 = vst.msk [vmem:[%s231 + $0x28] sm:$0xff] %vm372, %v2863
      %2896 = vst.msk [vmem:[%s231 + $0x30] sm:$0xff] %vm372, %v2864
      %2897 = vst.msk [vmem:[%s231 + $0x38] sm:$0xff] %vm372, %v2865
      %2898 = vst.msk [vmem:[%s231 + $0x40] sm:$0xff] %vm372, %v2866
      %2899 = vst.msk [vmem:[%s231 + $0x48] sm:$0xff] %vm372, %v2867
      %2900 = vst.msk [vmem:[%s231 + $0x50] sm:$0xff] %vm372, %v2868
      %2901 = vst.msk [vmem:[%s231 + $0x58] sm:$0xff] %vm372, %v2869
      %2902 = vst.msk [vmem:[%s231 + $0x60] sm:$0xff] %vm372, %v2870
      %2903 = vst.msk [vmem:[%s231 + $0x68] sm:$0xff] %vm372, %v2871
      %2904 = vst.msk [vmem:[%s231 + $0x70] sm:$0xff] %vm372, %v2872
      %2905 = vst.msk [vmem:[%s231 + $0x78] sm:$0xff] %vm372, %v2873
      %2906 = vst.msk [vmem:[%s231 + $0x80] sm:$0xff] %vm372, %v2874
      %2907 = vst.msk [vmem:[%s231 + $0x88] sm:$0xff] %vm372, %v2875
      %2908 = vst.msk [vmem:[%s231 + $0x90] sm:$0xff] %vm372, %v2876
      %2909 = vst.msk [vmem:[%s231 + $0x98] sm:$0xff] %vm372, %v2877
      %2910 = vst.msk [vmem:[%s231 + $0xa0] sm:$0xff] %vm372, %v2878
      %2911 = vst.msk [vmem:[%s231 + $0xa8] sm:$0xff] %vm372, %v2879
      %2912 = vst.msk [vmem:[%s231 + $0xb0] sm:$0xff] %vm372, %v2880
      %2913 = vst.msk [vmem:[%s231 + $0xb8] sm:$0xff] %vm372, %v2881
      %2914 = vst.msk [vmem:[%s231 + $0xc0] sm:$0xff] %vm372, %v2882
      %2915 = vst.msk [vmem:[%s231 + $0xc8] sm:$0xff] %vm372, %v2883
      %2916 = vst.msk [vmem:[%s231 + $0xd0] sm:$0xff] %vm372, %v2884
      %2917 = vst.msk [vmem:[%s231 + $0xd8] sm:$0xff] %vm372, %v2885
      %2918 = vst.msk [vmem:[%s231 + $0xe0] sm:$0xff] %vm372, %v2886
      %2919 = vst.msk [vmem:[%s231 + $0xe8] sm:$0xff] %vm372, %v2887
      %2920 = vst.msk [vmem:[%s231 + $0xf0] sm:$0xff] %vm372, %v2888
      %2921 = vst.msk [vmem:[%s231 + $0xf8] sm:$0xff] %vm372, %v2889
      %v2922 = vsel %vm372, %v2858, 0.0
      %v2923 = vsel %vm372, %v2859, 0.0
      %v2924 = vadd.f32 %v2922, %v2923
      %v2925 = vsel %vm372, %v2860, 0.0
      %v2926 = vadd.f32 %v2924, %v2925
      %v2927 = vsel %vm372, %v2861, 0.0
      %v2928 = vadd.f32 %v2926, %v2927
      %v2929 = vsel %vm372, %v2862, 0.0
      %v2930 = vadd.f32 %v2928, %v2929
      %v2931 = vsel %vm372, %v2863, 0.0
      %v2932 = vadd.f32 %v2930, %v2931
      %v2933 = vsel %vm372, %v2864, 0.0
      %v2934 = vadd.f32 %v2932, %v2933
      %v2935 = vsel %vm372, %v2865, 0.0
      %v2936 = vadd.f32 %v2934, %v2935
      %v2937 = vsel %vm372, %v2866, 0.0
      %v2938 = vadd.f32 %v2936, %v2937
      %v2939 = vsel %vm372, %v2867, 0.0
      %v2940 = vadd.f32 %v2938, %v2939
      %v2941 = vsel %vm372, %v2868, 0.0
      %v2942 = vadd.f32 %v2940, %v2941
      %v2943 = vsel %vm372, %v2869, 0.0
      %v2944 = vadd.f32 %v2942, %v2943
      %v2945 = vsel %vm372, %v2870, 0.0
      %v2946 = vadd.f32 %v2944, %v2945
      %v2947 = vsel %vm372, %v2871, 0.0
      %v2948 = vadd.f32 %v2946, %v2947
      %v2949 = vsel %vm372, %v2872, 0.0
      %v2950 = vadd.f32 %v2948, %v2949
      %v2951 = vsel %vm372, %v2873, 0.0
      %v2952 = vadd.f32 %v2950, %v2951
      %v2953 = vsel %vm372, %v2874, 0.0
      %v2954 = vadd.f32 %v2952, %v2953
      %v2955 = vsel %vm372, %v2875, 0.0
      %v2956 = vadd.f32 %v2954, %v2955
      %v2957 = vsel %vm372, %v2876, 0.0
      %v2958 = vadd.f32 %v2956, %v2957
      %v2959 = vsel %vm372, %v2877, 0.0
      %v2960 = vadd.f32 %v2958, %v2959
      %v2961 = vsel %vm372, %v2878, 0.0
      %v2962 = vadd.f32 %v2960, %v2961
      %v2963 = vsel %vm372, %v2879, 0.0
      %v2964 = vadd.f32 %v2962, %v2963
      %v2965 = vsel %vm372, %v2880, 0.0
      %v2966 = vadd.f32 %v2964, %v2965
      %v2967 = vsel %vm372, %v2881, 0.0
      %v2968 = vadd.f32 %v2966, %v2967
      %v2969 = vsel %vm372, %v2882, 0.0
      %v2970 = vadd.f32 %v2968, %v2969
      %v2971 = vsel %vm372, %v2883, 0.0
      %v2972 = vadd.f32 %v2970, %v2971
      %v2973 = vsel %vm372, %v2884, 0.0
      %v2974 = vadd.f32 %v2972, %v2973
      %v2975 = vsel %vm372, %v2885, 0.0
      %v2976 = vadd.f32 %v2974, %v2975
      %v2977 = vsel %vm372, %v2886, 0.0
      %v2978 = vadd.f32 %v2976, %v2977
      %v2979 = vsel %vm372, %v2887, 0.0
      %v2980 = vadd.f32 %v2978, %v2979
      %v2981 = vsel %vm372, %v2888, 0.0
      %v2982 = vadd.f32 %v2980, %v2981
      %v2983 = vsel %vm372, %v2889, 0.0
      %v2984 = vadd.f32 %v2982, %v2983
      %v2985 = vrot.slane %v2984, 4
      %v2986 = vadd.f32 %v2984, %v2985
      %v2987 = vrot.slane %v2986, 2
      %v2988 = vadd.f32 %v2986, %v2987
      %v2989 = vrot.slane %v2988, 1
      %v2990 = vadd.f32 %v2988, %v2989
      %2991 = vst.msk [vmem:[%s235] sm:$0x1] %vm381, %v2990
      %v2992 = vmul.f32 %v2858, %v2858
      %v2993 = vmul.f32 %v2859, %v2859
      %v2994 = vmul.f32 %v2860, %v2860
      %v2995 = vmul.f32 %v2861, %v2861
      %v2996 = vmul.f32 %v2862, %v2862
      %v2997 = vmul.f32 %v2863, %v2863
      %v2998 = vmul.f32 %v2864, %v2864
      %v2999 = vmul.f32 %v2865, %v2865
      %v3000 = vmul.f32 %v2866, %v2866
      %v3001 = vmul.f32 %v2867, %v2867
      %v3002 = vmul.f32 %v2868, %v2868
      %v3003 = vmul.f32 %v2869, %v2869
      %v3004 = vmul.f32 %v2870, %v2870
      %v3005 = vmul.f32 %v2871, %v2871
      %v3006 = vmul.f32 %v2872, %v2872
      %v3007 = vmul.f32 %v2873, %v2873
      %v3008 = vmul.f32 %v2874, %v2874
      %v3009 = vmul.f32 %v2875, %v2875
      %v3010 = vmul.f32 %v2876, %v2876
      %v3011 = vmul.f32 %v2877, %v2877
      %v3012 = vmul.f32 %v2878, %v2878
      %v3013 = vmul.f32 %v2879, %v2879
      %v3014 = vmul.f32 %v2880, %v2880
      %v3015 = vmul.f32 %v2881, %v2881
      %v3016 = vmul.f32 %v2882, %v2882
      %v3017 = vmul.f32 %v2883, %v2883
      %v3018 = vmul.f32 %v2884, %v2884
      %v3019 = vmul.f32 %v2885, %v2885
      %v3020 = vmul.f32 %v2886, %v2886
      %v3021 = vmul.f32 %v2887, %v2887
      %v3022 = vmul.f32 %v2888, %v2888
      %v3023 = vmul.f32 %v2889, %v2889
      %v3024 = vsel %vm372, %v2992, 0.0
      %v3025 = vsel %vm372, %v2993, 0.0
      %v3026 = vadd.f32 %v3024, %v3025
      %v3027 = vsel %vm372, %v2994, 0.0
      %v3028 = vadd.f32 %v3026, %v3027
      %v3029 = vsel %vm372, %v2995, 0.0
      %v3030 = vadd.f32 %v3028, %v3029
      %v3031 = vsel %vm372, %v2996, 0.0
      %v3032 = vadd.f32 %v3030, %v3031
      %v3033 = vsel %vm372, %v2997, 0.0
      %v3034 = vadd.f32 %v3032, %v3033
      %v3035 = vsel %vm372, %v2998, 0.0
      %v3036 = vadd.f32 %v3034, %v3035
      %v3037 = vsel %vm372, %v2999, 0.0
      %v3038 = vadd.f32 %v3036, %v3037
      %v3039 = vsel %vm372, %v3000, 0.0
      %v3040 = vadd.f32 %v3038, %v3039
      %v3041 = vsel %vm372, %v3001, 0.0
      %v3042 = vadd.f32 %v3040, %v3041
      %v3043 = vsel %vm372, %v3002, 0.0
      %v3044 = vadd.f32 %v3042, %v3043
      %v3045 = vsel %vm372, %v3003, 0.0
      %v3046 = vadd.f32 %v3044, %v3045
      %v3047 = vsel %vm372, %v3004, 0.0
      %v3048 = vadd.f32 %v3046, %v3047
      %v3049 = vsel %vm372, %v3005, 0.0
      %v3050 = vadd.f32 %v3048, %v3049
      %v3051 = vsel %vm372, %v3006, 0.0
      %v3052 = vadd.f32 %v3050, %v3051
      %v3053 = vsel %vm372, %v3007, 0.0
      %v3054 = vadd.f32 %v3052, %v3053
      %v3055 = vsel %vm372, %v3008, 0.0
      %v3056 = vadd.f32 %v3054, %v3055
      %v3057 = vsel %vm372, %v3009, 0.0
      %v3058 = vadd.f32 %v3056, %v3057
      %v3059 = vsel %vm372, %v3010, 0.0
      %v3060 = vadd.f32 %v3058, %v3059
      %v3061 = vsel %vm372, %v3011, 0.0
      %v3062 = vadd.f32 %v3060, %v3061
      %v3063 = vsel %vm372, %v3012, 0.0
      %v3064 = vadd.f32 %v3062, %v3063
      %v3065 = vsel %vm372, %v3013, 0.0
      %v3066 = vadd.f32 %v3064, %v3065
      %v3067 = vsel %vm372, %v3014, 0.0
      %v3068 = vadd.f32 %v3066, %v3067
      %v3069 = vsel %vm372, %v3015, 0.0
      %v3070 = vadd.f32 %v3068, %v3069
      %v3071 = vsel %vm372, %v3016, 0.0
      %v3072 = vadd.f32 %v3070, %v3071
      %v3073 = vsel %vm372, %v3017, 0.0
      %v3074 = vadd.f32 %v3072, %v3073
      %v3075 = vsel %vm372, %v3018, 0.0
      %v3076 = vadd.f32 %v3074, %v3075
      %v3077 = vsel %vm372, %v3019, 0.0
      %v3078 = vadd.f32 %v3076, %v3077
      %v3079 = vsel %vm372, %v3020, 0.0
      %v3080 = vadd.f32 %v3078, %v3079
      %v3081 = vsel %vm372, %v3021, 0.0
      %v3082 = vadd.f32 %v3080, %v3081
      %v3083 = vsel %vm372, %v3022, 0.0
      %v3084 = vadd.f32 %v3082, %v3083
      %v3085 = vsel %vm372, %v3023, 0.0
      %v3086 = vadd.f32 %v3084, %v3085
      %v3087 = vrot.slane %v3086, 4
      %v3088 = vadd.f32 %v3086, %v3087
      %v3089 = vrot.slane %v3088, 2
      %v3090 = vadd.f32 %v3088, %v3089
      %v3091 = vrot.slane %v3090, 1
      %v3092 = vadd.f32 %v3090, %v3091
      %3093 = vst.msk [vmem:[%s235 + $0x1] sm:$0x1] %vm381, %v3092
      %p3094 = scmp.lt.s32.totalorder %s17, 1
      %s3095 = scalar_select %p3094, %s17, 1
      %s3096 = smul.addr %s3095, 32
      %s3097 = smul.addr %s3096, 8
      %s3098 = scalar_lea.vmem %s4, %s3097
      %p3099 = scmp.lt.s32.totalorder %s17, 1
      %s3100 = scalar_select %p3099, %s17, 1
      %s3101 = smul.addr %s3100, 2
      %s3102 = scalar_lea.vmem %s5, %s3101
      // Predicated region
      $region37: #{residual_block_nchw.4} parent=35 // pred_check
        %p3103 = pneg %p124
      $region38: #{residual_block_nchw.4} parent=35 // pred_check_branch
        %3105 = sbr.rel (%p3103) target = $region40
      $region39: #{residual_block_nchw.4} parent=35 // pred_region
        _
      $region40: #{residual_block_nchw.4} parent=35 // pred_fallthru
        _
      // Predicated region
      $region41: #{residual_block_nchw.4} parent=35 // pred_check
        %p3106 = pneg %p150
      $region42: #{residual_block_nchw.4} parent=35 // pred_check_branch
        %3108 = sbr.rel (%p3106) target = $region44
      $region43: #{residual_block_nchw.4} parent=35 // pred_region
        _
      $region44: #{residual_block_nchw.4} parent=35 // pred_fallthru
        _
    $region36: #{residual_block_nchw.4} parent=5 // pred_fallthru
      _
    %p3109 = scmp.le.s32.totalorder 2, %s12
    // Predicated region
    $region45: #{residual_block_nchw.4} parent=5 // pred_check
      %p3110 = pneg %p3109
    $region46: #{residual_block_nchw.4} parent=5 // pred_check_branch
      %3112 = sbr.rel (%p3110) target = $region48
    $region47: #{residual_block_nchw.4} parent=5 // pred_region
      %s3113 = ssub.s32 %s12, 2
      // Predicated region
      $region49: #{residual_block_nchw.4} parent=47 // pred_check
        %p3114 = pneg %p130
      $region50: #{residual_block_nchw.4} parent=47 // pred_check_branch
        %3116 = sbr.rel (%p3114) target = $region52
      $region51: #{residual_block_nchw.4} parent=47 // pred_region
        %p3117 = scmp.lt.s32.totalorder %s18, 1
        %s3118 = scalar_select %p3117, %s18, 1
        %s3119 = smul.addr %s3118, 32
        %s3120 = smul.addr %s3119, 8
        %s3121 = scalar_lea.vmem %s4, %s3120
      $region52: #{residual_block_nchw.4} parent=47 // pred_fallthru
        _
      // Predicated region
      $region53: #{residual_block_nchw.4} parent=47 // pred_check
        %p3122 = pneg %p156
      $region54: #{residual_block_nchw.4} parent=47 // pred_check_branch
        %3124 = sbr.rel (%p3122) target = $region56
      $region55: #{residual_block_nchw.4} parent=47 // pred_region
        %p3125 = scmp.lt.s32.totalorder %s18, 1
        %s3126 = scalar_select %p3125, %s18, 1
        %s3127 = smul.addr %s3126, 2
        %s3128 = scalar_lea.vmem %s5, %s3127
      $region56: #{residual_block_nchw.4} parent=47 // pred_fallthru
        _
    $region48: #{residual_block_nchw.4} parent=5 // pred_fallthru
      _
  $region6: #{residual_block_nchw.4} parent=0 // loop_footer
    %s16 = sadd.s32 1, %s12
  $region7: #{residual_block_nchw.4} parent=0 // loop_footer_branch
    %11 = sbr.rel target = $region3
  $region8: #{residual_block_nchw.4} parent=0 // loop_exit
    _

</llo_original>
